<compile_context>
chip_gen: v6e
topology: v6e:2x2x1
jax: 0.10.0
libtpu: 0.0.40
codegen_flags: <defaults>
</compile_context>

<pallas_src>
import functools

import jax
import jax.numpy as jnp
from jax import lax
from jax.experimental import pallas as pl
from jax.experimental.pallas import tpu as pltpu

C_IN = 64
C_OUT = 3
C_OUT_PAD = 8           # pad the 3 output channels to a full sublane tile
EPS = 1e-5              # PyTorch nn.LayerNorm default

_INV_SQRT2 = 0.7071067811865476
_ERF_P = 0.3275911
_ERF_A = (0.254829592, -0.284496736, 1.421413741, -1.453152027, 1.061405429)


def _erf(x):
    # Abramowitz & Stegun 7.1.26 (|err| <= 1.5e-7): the transcendental is one
    # EUP exp plus a short VPU polynomial; lowers cleanly in Mosaic.
    a = jnp.abs(x)
    t = 1.0 / (1.0 + _ERF_P * a)
    a1, a2, a3, a4, a5 = _ERF_A
    poly = ((((a5 * t + a4) * t + a3) * t + a2) * t + a1) * t
    y = 1.0 - poly * jnp.exp(-a * a)
    return jnp.where(x < 0.0, -y, y)


def _gelu(z):
    # matches torch.nn.GELU() (exact / erf form) to ~1.5e-7
    return 0.5 * z * (1.0 + _erf(z * _INV_SQRT2))


def _round_up(n, m):
    return ((n + m - 1) // m) * m


def head_kernel(xc_ref, wdw_ref, bdw_ref, gamma_ref, beta_ref,
                w1_ref, b1_ref, w2_ref, b2_ref, o_ref, *, tb, wp, chunk):
    # xc_ref : (TB, 64, chunk+ext)  margin-extended flat-token chunk, ext=2*wp+2
    # wdw    : (64, 9)   depthwise taps, tap = dy*3+dx on the lane axis
    # bdw/gamma/beta/b1 : (64, 1); w1 : (64, 64)  (PyTorch (out, in))
    # w2     : (8, 64)   row-padded Linear2 weight; b2 : (8, 1)
    # o_ref  : (TB, 8, chunk)  lane-dense output slab (rows 3..7 are padding)
    n_tok = tb * chunk

    wdw = wdw_ref[...]
    w1 = w1_ref[...]
    w2 = w2_ref[...]

    # Hoisted, grid-step-invariant broadcasts (JAX does not CSE broadcast_in_dim).
    taps = [jnp.broadcast_to(wdw[:, t:t + 1], (C_IN, chunk)) for t in range(9)]
    bdw = jnp.broadcast_to(bdw_ref[...], (C_IN, chunk))
    gamma = jnp.broadcast_to(gamma_ref[...], (C_IN, n_tok))
    beta = jnp.broadcast_to(beta_ref[...], (C_IN, n_tok))
    b1 = jnp.broadcast_to(b1_ref[...], (C_IN, n_tok))
    b2 = jnp.broadcast_to(b2_ref[...], (C_OUT_PAD, n_tok))

    # Depthwise 3x3 conv: 9 lane-shifted windows sliced straight off the ref
    # (live set is one (64, chunk) accumulator per image, not the whole image).
    # All TB images' results are concatenated into a single (64, TB*chunk)
    # slab so the rest of the pipeline runs exactly once per grid step.
    conv = []
    for b in range(tb):
        acc = xc_ref[b, :, 0:chunk] * taps[0] + bdw        # tap 0 + bias init
        for dy in range(3):
            for dx in range(3):
                t = dy * 3 + dx
                if t == 0:
                    continue
                s = dy * wp + dx                           # static lane offset
                acc = acc + xc_ref[b, :, s:s + chunk] * taps[t]
        conv.append(acc)
    z = conv[0] if tb == 1 else jnp.concatenate(conv, axis=1)    # (64, n_tok)

    # LayerNorm over channels: both channel reductions go to the (otherwise
    # idle) MXU as (8,64)x(64,n_tok) matmuls; rsqrt stays on the EUP.
    ones_row = jnp.full((8, C_IN), 1.0 / C_IN, dtype=jnp.float32)

    def layernorm(v):
        mu = jnp.dot(ones_row, v, preferred_element_type=jnp.float32)[0:1]
        ms = jnp.dot(ones_row, v * v, preferred_element_type=jnp.float32)[0:1]
        inv = lax.rsqrt(ms - mu * mu + EPS)
        return (v - mu) * inv * gamma + beta

    t1 = _gelu(layernorm(z))
    t1 = jnp.dot(w1, t1, preferred_element_type=jnp.float32) + b1
    t1 = _gelu(layernorm(t1))
    y = jnp.dot(w2, t1, preferred_element_type=jnp.float32) + b2   # (8, n_tok)

    if tb == 1:
        o_ref[0] = y.astype(o_ref.dtype)
    else:
        for b in range(tb):
            o_ref[b] = y[:, b * chunk:(b + 1) * chunk].astype(o_ref.dtype)


def _choose_tb(batch, chunk, ext, vmem_budget_bytes):
    """Images per grid step: amortize per-step overhead, keep the 2x
    double-buffered input+output blocks inside the VMEM budget, and keep the
    grid >= 2 steps so both v7x TensorCores get work."""
    in_bytes = C_IN * (chunk + ext) * 4
    out_bytes = C_OUT_PAD * chunk * 4
    per_img = 2 * (in_bytes + out_bytes)
    tb = min(batch, 8,
             max(1, vmem_budget_bytes // max(per_img, 1)),
             max(1, 2048 // chunk))          # bound the in-kernel slab width
    if batch >= 2:
        tb = min(tb, batch // 2)             # grid >= 2 (v7x megacore)
    tb = max(tb, 1)
    while batch % tb:                        # must divide batch
        tb -= 1
    return tb


def head_forward(x_nchw, params):
    B, C, H, W = x_nchw.shape
    assert C == C_IN
    Hp, Wp = H + 2, W + 2
    NP = Hp * Wp                      # tokens per halo-padded image
    ext = 2 * Wp + 2                  # flat-token margin needed by the 9 taps

    # Token-chunk tiling of the flattened spatial axis (lane-aligned chunks).
    chunk = min(512, _round_up(NP, 128))
    NPC = _round_up(NP, chunk)
    n_chunks = NPC // chunk
    NF = NPC + 2 * (Wp + 1)

    # Generation-aware VMEM budget (v7x: 64 MiB/TC; v5e/v6e: 128 MiB).
    try:
        vmem_cap = pltpu.get_tpu_info().vmem_capacity_bytes
    except Exception:
        vmem_cap = 64 << 20
    vmem_limit = int(min(48 << 20, (vmem_cap * 3) // 8))

    x = x_nchw.astype(jnp.float32)
    # 'same' halo pad, flatten spatial, margin-pad the flat token axis, then
    # slice overlapping per-chunk windows (only the small tap margin is
    # duplicated). No transposes anywhere; XLA fuses the pads/slices.
    xp = jnp.pad(x, ((0, 0), (0, 0), (1, 1), (1, 1)))              # (B,64,Hp,Wp)
    xf = jnp.pad(xp.reshape(B, C_IN, NP),
                 ((0, 0), (0, 0), (Wp + 1, NF - NP - (Wp + 1))))   # (B,64,NF)
    xc = jnp.stack([xf[:, :, c * chunk: c * chunk + chunk + ext]
                    for c in range(n_chunks)], axis=1)             # (B,nc,64,chunk+ext)

    wdw = params["conv_w"].reshape(C_IN, 9)
    bdw = params["conv_b"].reshape(C_IN, 1)
    gamma = params["ln_g"].reshape(C_IN, 1)
    beta = params["ln_b"].reshape(C_IN, 1)
    w1 = params["w1"]                                              # (64, 64)
    b1 = params["b1"].reshape(C_IN, 1)
    # Pad Linear2 to 8 output rows: full-sublane MXU result + unmasked stores;
    # the wrapper (which already drops the halo) slices the 3 real rows.
    w2p = jnp.zeros((C_OUT_PAD, C_IN), jnp.float32).at[:C_OUT].set(params["w2"])
    b2p = jnp.zeros((C_OUT_PAD, 1), jnp.float32).at[:C_OUT, 0].set(params["b2"])

    TB = _choose_tb(B, chunk, ext, vmem_limit // 2)
    kernel = functools.partial(head_kernel, tb=TB, wp=Wp, chunk=chunk)

    def rep(shape):
        return pl.BlockSpec(shape, lambda g, c, _n=len(shape): (0,) * _n)

    y_flat = pl.pallas_call(
        kernel,
        out_shape=jax.ShapeDtypeStruct((B, C_OUT_PAD, NPC), jnp.float32),
        grid_spec=pltpu.PrefetchScalarGridSpec(
            num_scalar_prefetch=0,
            grid=(B // TB, n_chunks),
            in_specs=[
                pl.BlockSpec((TB, None, C_IN, chunk + ext),
                             lambda g, c: (g, c, 0, 0)),
                rep((C_IN, 9)),
                rep((C_IN, 1)),
                rep((C_IN, 1)),
                rep((C_IN, 1)),
                rep((C_IN, C_IN)),
                rep((C_IN, 1)),
                rep((C_OUT_PAD, C_IN)),
                rep((C_OUT_PAD, 1)),
            ],
            out_specs=pl.BlockSpec((TB, C_OUT_PAD, chunk),
                                   lambda g, c: (g, 0, c)),
        ),
        compiler_params=pltpu.CompilerParams(
            dimension_semantics=("parallel", "parallel"),
            vmem_limit_bytes=vmem_limit),
    )(xc, wdw, bdw, gamma, beta, w1, b1, w2p, b2p)

    # NOTE: conv windows wrap across row boundaries on the flat token axis;
    # this only affects tokens in the halo ring, which are discarded below.
    y = y_flat[:, :C_OUT, :NP].reshape(B, C_OUT, Hp, Wp)[:, :, 1:H + 1, 1:W + 1]
    return y


def head_reference(x_nchw, params):
    """Pure-JAX reference mirroring the PyTorch forward pass."""
    x = jnp.transpose(x_nchw, (0, 2, 3, 1)).astype(jnp.float32)  # NHWC
    B, H, W, C = x.shape
    xp = jnp.pad(x, ((0, 0), (1, 1), (1, 1), (0, 0)))
    acc = jnp.zeros_like(x)
    for dy in range(3):
        for dx in range(3):
            acc = acc + xp[:, dy:dy + H, dx:dx + W, :] * params["conv_w"][:, dy, dx]
    acc = acc + params["conv_b"]

    def ln(z):
        mu = z.mean(-1, keepdims=True)
        var = ((z - mu) ** 2).mean(-1, keepdims=True)
        return (z - mu) / jnp.sqrt(var + EPS) * params["ln_g"] + params["ln_b"]

    t = jax.nn.gelu(ln(acc), approximate=False)
    t = t @ params["w1"].T + params["b1"]
    t = jax.nn.gelu(ln(t), approximate=False)
    y = t @ params["w2"].T + params["b2"]
    return jnp.transpose(y, (0, 3, 1, 2))


def init_params(key):
    ks = jax.random.split(key, 6)
    return {
        # nn.Conv2d(64, 64, 3, groups=64): weight (64, 1, 3, 3) -> (64, 3, 3)
        "conv_w": 0.1 * jax.random.normal(ks[0], (C_IN, 3, 3), jnp.float32),
        "conv_b": 0.1 * jax.random.normal(ks[1], (C_IN,), jnp.float32),
        # nn.LayerNorm(64)
        "ln_g": jnp.ones((C_IN,), jnp.float32),
        "ln_b": jnp.zeros((C_IN,), jnp.float32),
        # nn.Linear(64, 64)
        "w1": 0.1 * jax.random.normal(ks[2], (C_IN, C_IN), jnp.float32),
        "b1": 0.1 * jax.random.normal(ks[3], (C_IN,), jnp.float32),
        # nn.Linear(64, 3)
        "w2": 0.1 * jax.random.normal(ks[4], (C_OUT, C_IN), jnp.float32),
        "b2": 0.1 * jax.random.normal(ks[5], (C_OUT,), jnp.float32),
    }


if __name__ == "__main__":
    key = jax.random.PRNGKey(0)
    kx, kp = jax.random.split(key)

    B, H, W = 2, 16, 16
    x = jax.random.normal(kx, (B, C_IN, H, W), jnp.float32)   # NCHW like PyTorch
    params = init_params(kp)

    y = jax.block_until_ready(head_forward(x, params))

    y_ref = head_reference(x, params)
    assert y.shape == (B, C_OUT, H, W)
    assert jnp.allclose(y, y_ref, atol=2e-4, rtol=2e-4), "mismatch vs reference"

    print("KERNEL_OK")
</pallas_src>

<mosaic_0001>
module attributes {stable_mosaic.version = 11 : i64} {
  func.func @head_kernel(%arg0: i32, %arg1: i32, %arg2: memref<1x1x64x422xf32, #tpu.memory_space<vmem>>, %arg3: memref<64x9xf32, #tpu.memory_space<vmem>>, %arg4: memref<64x1xf32, #tpu.memory_space<vmem>>, %arg5: memref<64x1xf32, #tpu.memory_space<vmem>>, %arg6: memref<64x1xf32, #tpu.memory_space<vmem>>, %arg7: memref<64x64xf32, #tpu.memory_space<vmem>>, %arg8: memref<64x1xf32, #tpu.memory_space<vmem>>, %arg9: memref<8x64xf32, #tpu.memory_space<vmem>>, %arg10: memref<8x1xf32, #tpu.memory_space<vmem>>, %arg11: memref<1x8x384xf32, #tpu.memory_space<vmem>>) attributes {dimension_semantics = [#tpu.dimension_semantics<parallel>, #tpu.dimension_semantics<parallel>], iteration_bounds = array<i64: 2, 1>, scalar_prefetch = 0 : i64, scratch_operands = 0 : i64, tpu.core_type = #tpu.core_type<tc>, window_params = [{transform_indices = @transform_0, window_bounds = array<i64: 1, 1, 64, 422>}, {pipeline_mode = #tpu.pipeline_mode<synchronous>, transform_indices = @transform_1, window_bounds = array<i64: 64, 9>}, {pipeline_mode = #tpu.pipeline_mode<synchronous>, transform_indices = @transform_2, window_bounds = array<i64: 64, 1>}, {pipeline_mode = #tpu.pipeline_mode<synchronous>, transform_indices = @transform_3, window_bounds = array<i64: 64, 1>}, {pipeline_mode = #tpu.pipeline_mode<synchronous>, transform_indices = @transform_4, window_bounds = array<i64: 64, 1>}, {pipeline_mode = #tpu.pipeline_mode<synchronous>, transform_indices = @transform_5, window_bounds = array<i64: 64, 64>}, {pipeline_mode = #tpu.pipeline_mode<synchronous>, transform_indices = @transform_6, window_bounds = array<i64: 64, 1>}, {pipeline_mode = #tpu.pipeline_mode<synchronous>, transform_indices = @transform_7, window_bounds = array<i64: 8, 64>}, {pipeline_mode = #tpu.pipeline_mode<synchronous>, transform_indices = @transform_8, window_bounds = array<i64: 8, 1>}, {transform_indices = @transform_9, window_bounds = array<i64: 1, 8, 384>}]} {
    %c0 = arith.constant 0 : index
    %c0_0 = arith.constant 0 : index
    %0 = vector.load %arg3[%c0, %c0_0] : memref<64x9xf32, #tpu.memory_space<vmem>>, vector<64x9xf32>
    %c0_1 = arith.constant 0 : index
    %c0_2 = arith.constant 0 : index
    %1 = vector.load %arg7[%c0_1, %c0_2] : memref<64x64xf32, #tpu.memory_space<vmem>>, vector<64x64xf32>
    %c0_3 = arith.constant 0 : index
    %c0_4 = arith.constant 0 : index
    %2 = vector.load %arg9[%c0_3, %c0_4] : memref<8x64xf32, #tpu.memory_space<vmem>>, vector<8x64xf32>
    %3 = vector.extract_strided_slice %0 {offsets = [0, 0], sizes = [64, 1], strides = [1, 1]} : vector<64x9xf32> to vector<64x1xf32>
    %4 = vector.shape_cast %3 : vector<64x1xf32> to vector<64x1xf32>
    %5 = vector.broadcast %4 : vector<64x1xf32> to vector<64x384xf32>
    %6 = vector.extract_strided_slice %0 {offsets = [0, 1], sizes = [64, 1], strides = [1, 1]} : vector<64x9xf32> to vector<64x1xf32>
    %7 = vector.shape_cast %6 : vector<64x1xf32> to vector<64x1xf32>
    %8 = vector.broadcast %7 : vector<64x1xf32> to vector<64x384xf32>
    %9 = vector.extract_strided_slice %0 {offsets = [0, 2], sizes = [64, 1], strides = [1, 1]} : vector<64x9xf32> to vector<64x1xf32>
    %10 = vector.shape_cast %9 : vector<64x1xf32> to vector<64x1xf32>
    %11 = vector.broadcast %10 : vector<64x1xf32> to vector<64x384xf32>
    %12 = vector.extract_strided_slice %0 {offsets = [0, 3], sizes = [64, 1], strides = [1, 1]} : vector<64x9xf32> to vector<64x1xf32>
    %13 = vector.shape_cast %12 : vector<64x1xf32> to vector<64x1xf32>
    %14 = vector.broadcast %13 : vector<64x1xf32> to vector<64x384xf32>
    %15 = vector.extract_strided_slice %0 {offsets = [0, 4], sizes = [64, 1], strides = [1, 1]} : vector<64x9xf32> to vector<64x1xf32>
    %16 = vector.shape_cast %15 : vector<64x1xf32> to vector<64x1xf32>
    %17 = vector.broadcast %16 : vector<64x1xf32> to vector<64x384xf32>
    %18 = vector.extract_strided_slice %0 {offsets = [0, 5], sizes = [64, 1], strides = [1, 1]} : vector<64x9xf32> to vector<64x1xf32>
    %19 = vector.shape_cast %18 : vector<64x1xf32> to vector<64x1xf32>
    %20 = vector.broadcast %19 : vector<64x1xf32> to vector<64x384xf32>
    %21 = vector.extract_strided_slice %0 {offsets = [0, 6], sizes = [64, 1], strides = [1, 1]} : vector<64x9xf32> to vector<64x1xf32>
    %22 = vector.shape_cast %21 : vector<64x1xf32> to vector<64x1xf32>
    %23 = vector.broadcast %22 : vector<64x1xf32> to vector<64x384xf32>
    %24 = vector.extract_strided_slice %0 {offsets = [0, 7], sizes = [64, 1], strides = [1, 1]} : vector<64x9xf32> to vector<64x1xf32>
    %25 = vector.shape_cast %24 : vector<64x1xf32> to vector<64x1xf32>
    %26 = vector.broadcast %25 : vector<64x1xf32> to vector<64x384xf32>
    %27 = vector.extract_strided_slice %0 {offsets = [0, 8], sizes = [64, 1], strides = [1, 1]} : vector<64x9xf32> to vector<64x1xf32>
    %28 = vector.shape_cast %27 : vector<64x1xf32> to vector<64x1xf32>
    %29 = vector.broadcast %28 : vector<64x1xf32> to vector<64x384xf32>
    %c0_5 = arith.constant 0 : index
    %c0_6 = arith.constant 0 : index
    %30 = vector.load %arg4[%c0_5, %c0_6] : memref<64x1xf32, #tpu.memory_space<vmem>>, vector<64x1xf32>
    %31 = vector.shape_cast %30 : vector<64x1xf32> to vector<64x1xf32>
    %32 = vector.broadcast %31 : vector<64x1xf32> to vector<64x384xf32>
    %c0_7 = arith.constant 0 : index
    %c0_8 = arith.constant 0 : index
    %33 = vector.load %arg5[%c0_7, %c0_8] : memref<64x1xf32, #tpu.memory_space<vmem>>, vector<64x1xf32>
    %34 = vector.shape_cast %33 : vector<64x1xf32> to vector<64x1xf32>
    %35 = vector.broadcast %34 : vector<64x1xf32> to vector<64x384xf32>
    %c0_9 = arith.constant 0 : index
    %c0_10 = arith.constant 0 : index
    %36 = vector.load %arg6[%c0_9, %c0_10] : memref<64x1xf32, #tpu.memory_space<vmem>>, vector<64x1xf32>
    %37 = vector.shape_cast %36 : vector<64x1xf32> to vector<64x1xf32>
    %38 = vector.broadcast %37 : vector<64x1xf32> to vector<64x384xf32>
    %c0_11 = arith.constant 0 : index
    %c0_12 = arith.constant 0 : index
    %39 = vector.load %arg8[%c0_11, %c0_12] : memref<64x1xf32, #tpu.memory_space<vmem>>, vector<64x1xf32>
    %40 = vector.shape_cast %39 : vector<64x1xf32> to vector<64x1xf32>
    %41 = vector.broadcast %40 : vector<64x1xf32> to vector<64x384xf32>
    %c0_13 = arith.constant 0 : index
    %c0_14 = arith.constant 0 : index
    %42 = vector.load %arg10[%c0_13, %c0_14] : memref<8x1xf32, #tpu.memory_space<vmem>>, vector<8x1xf32>
    %43 = vector.shape_cast %42 : vector<8x1xf32> to vector<8x1xf32>
    %44 = vector.broadcast %43 : vector<8x1xf32> to vector<8x384xf32>
    %c0_15 = arith.constant 0 : index
    %c0_16 = arith.constant 0 : index
    %c0_17 = arith.constant 0 : index
    %c0_18 = arith.constant 0 : index
    %45 = vector.load %arg2[%c0_15, %c0_16, %c0_17, %c0_18] : memref<1x1x64x422xf32, #tpu.memory_space<vmem>>, vector<1x1x64x384xf32>
    %46 = vector.shape_cast %45 : vector<1x1x64x384xf32> to vector<64x384xf32>
    %47 = arith.mulf %46, %5 : vector<64x384xf32>
    %48 = arith.addf %47, %32 : vector<64x384xf32>
    %c0_19 = arith.constant 0 : index
    %c0_20 = arith.constant 0 : index
    %c0_21 = arith.constant 0 : index
    %c1 = arith.constant 1 : index
    %49 = vector.load %arg2[%c0_19, %c0_20, %c0_21, %c1] : memref<1x1x64x422xf32, #tpu.memory_space<vmem>>, vector<1x1x64x384xf32>
    %50 = vector.shape_cast %49 : vector<1x1x64x384xf32> to vector<64x384xf32>
    %51 = arith.mulf %50, %8 : vector<64x384xf32>
    %52 = arith.addf %48, %51 : vector<64x384xf32>
    %c0_22 = arith.constant 0 : index
    %c0_23 = arith.constant 0 : index
    %c0_24 = arith.constant 0 : index
    %c2 = arith.constant 2 : index
    %53 = vector.load %arg2[%c0_22, %c0_23, %c0_24, %c2] : memref<1x1x64x422xf32, #tpu.memory_space<vmem>>, vector<1x1x64x384xf32>
    %54 = vector.shape_cast %53 : vector<1x1x64x384xf32> to vector<64x384xf32>
    %55 = arith.mulf %54, %11 : vector<64x384xf32>
    %56 = arith.addf %52, %55 : vector<64x384xf32>
    %c0_25 = arith.constant 0 : index
    %c0_26 = arith.constant 0 : index
    %c0_27 = arith.constant 0 : index
    %c18 = arith.constant 18 : index
    %57 = vector.load %arg2[%c0_25, %c0_26, %c0_27, %c18] : memref<1x1x64x422xf32, #tpu.memory_space<vmem>>, vector<1x1x64x384xf32>
    %58 = vector.shape_cast %57 : vector<1x1x64x384xf32> to vector<64x384xf32>
    %59 = arith.mulf %58, %14 : vector<64x384xf32>
    %60 = arith.addf %56, %59 : vector<64x384xf32>
    %c0_28 = arith.constant 0 : index
    %c0_29 = arith.constant 0 : index
    %c0_30 = arith.constant 0 : index
    %c19 = arith.constant 19 : index
    %61 = vector.load %arg2[%c0_28, %c0_29, %c0_30, %c19] : memref<1x1x64x422xf32, #tpu.memory_space<vmem>>, vector<1x1x64x384xf32>
    %62 = vector.shape_cast %61 : vector<1x1x64x384xf32> to vector<64x384xf32>
    %63 = arith.mulf %62, %17 : vector<64x384xf32>
    %64 = arith.addf %60, %63 : vector<64x384xf32>
    %c0_31 = arith.constant 0 : index
    %c0_32 = arith.constant 0 : index
    %c0_33 = arith.constant 0 : index
    %c20 = arith.constant 20 : index
    %65 = vector.load %arg2[%c0_31, %c0_32, %c0_33, %c20] : memref<1x1x64x422xf32, #tpu.memory_space<vmem>>, vector<1x1x64x384xf32>
    %66 = vector.shape_cast %65 : vector<1x1x64x384xf32> to vector<64x384xf32>
    %67 = arith.mulf %66, %20 : vector<64x384xf32>
    %68 = arith.addf %64, %67 : vector<64x384xf32>
    %c0_34 = arith.constant 0 : index
    %c0_35 = arith.constant 0 : index
    %c0_36 = arith.constant 0 : index
    %c36 = arith.constant 36 : index
    %69 = vector.load %arg2[%c0_34, %c0_35, %c0_36, %c36] : memref<1x1x64x422xf32, #tpu.memory_space<vmem>>, vector<1x1x64x384xf32>
    %70 = vector.shape_cast %69 : vector<1x1x64x384xf32> to vector<64x384xf32>
    %71 = arith.mulf %70, %23 : vector<64x384xf32>
    %72 = arith.addf %68, %71 : vector<64x384xf32>
    %c0_37 = arith.constant 0 : index
    %c0_38 = arith.constant 0 : index
    %c0_39 = arith.constant 0 : index
    %c37 = arith.constant 37 : index
    %73 = vector.load %arg2[%c0_37, %c0_38, %c0_39, %c37] : memref<1x1x64x422xf32, #tpu.memory_space<vmem>>, vector<1x1x64x384xf32>
    %74 = vector.shape_cast %73 : vector<1x1x64x384xf32> to vector<64x384xf32>
    %75 = arith.mulf %74, %26 : vector<64x384xf32>
    %76 = arith.addf %72, %75 : vector<64x384xf32>
    %c0_40 = arith.constant 0 : index
    %c0_41 = arith.constant 0 : index
    %c0_42 = arith.constant 0 : index
    %c38 = arith.constant 38 : index
    %77 = vector.load %arg2[%c0_40, %c0_41, %c0_42, %c38] : memref<1x1x64x422xf32, #tpu.memory_space<vmem>>, vector<1x1x64x384xf32>
    %78 = vector.shape_cast %77 : vector<1x1x64x384xf32> to vector<64x384xf32>
    %79 = arith.mulf %78, %29 : vector<64x384xf32>
    %80 = arith.addf %76, %79 : vector<64x384xf32>
    %cst = arith.constant 1.562500e-02 : f32
    %81 = vector.broadcast %cst : f32 to vector<8x64xf32>
    %cst_43 = arith.constant dense<0.000000e+00> : vector<8x384xf32>
    %82 = tpu.matmul %81, %80, %cst_43 {dimension_numbers = #tpu.dot_dimension_numbers<[1], [0], [0], [1], [0, 0, 1, 1], [], []>} : vector<8x64xf32>, vector<64x384xf32>, vector<8x384xf32> -> vector<8x384xf32>
    %83 = vector.extract_strided_slice %82 {offsets = [0, 0], sizes = [1, 384], strides = [1, 1]} : vector<8x384xf32> to vector<1x384xf32>
    %84 = arith.mulf %80, %80 : vector<64x384xf32>
    %cst_44 = arith.constant dense<0.000000e+00> : vector<8x384xf32>
    %85 = tpu.matmul %81, %84, %cst_44 {dimension_numbers = #tpu.dot_dimension_numbers<[1], [0], [0], [1], [0, 0, 1, 1], [], []>} : vector<8x64xf32>, vector<64x384xf32>, vector<8x384xf32> -> vector<8x384xf32>
    %86 = vector.extract_strided_slice %85 {offsets = [0, 0], sizes = [1, 384], strides = [1, 1]} : vector<8x384xf32> to vector<1x384xf32>
    %87 = arith.mulf %83, %83 : vector<1x384xf32>
    %88 = arith.subf %86, %87 : vector<1x384xf32>
    %cst_45 = arith.constant 9.99999974E-6 : f32
    %89 = vector.broadcast %cst_45 : f32 to vector<1x384xf32>
    %90 = arith.addf %88, %89 : vector<1x384xf32>
    %91 = math.rsqrt %90 : vector<1x384xf32>
    %92 = vector.broadcast %83 : vector<1x384xf32> to vector<64x384xf32>
    %93 = arith.subf %80, %92 : vector<64x384xf32>
    %94 = vector.broadcast %91 : vector<1x384xf32> to vector<64x384xf32>
    %95 = arith.mulf %93, %94 : vector<64x384xf32>
    %96 = arith.mulf %95, %35 : vector<64x384xf32>
    %97 = arith.addf %96, %38 : vector<64x384xf32>
    %cst_46 = arith.constant 5.000000e-01 : f32
    %98 = vector.broadcast %cst_46 : f32 to vector<64x384xf32>
    %99 = arith.mulf %98, %97 : vector<64x384xf32>
    %cst_47 = arith.constant 0.707106769 : f32
    %100 = vector.broadcast %cst_47 : f32 to vector<64x384xf32>
    %101 = arith.mulf %97, %100 : vector<64x384xf32>
    %102 = math.absf %101 : vector<64x384xf32>
    %cst_48 = arith.constant 0.327591091 : f32
    %103 = vector.broadcast %cst_48 : f32 to vector<64x384xf32>
    %104 = arith.mulf %103, %102 : vector<64x384xf32>
    %cst_49 = arith.constant 1.000000e+00 : f32
    %105 = vector.broadcast %cst_49 : f32 to vector<64x384xf32>
    %106 = arith.addf %105, %104 : vector<64x384xf32>
    %cst_50 = arith.constant 1.000000e+00 : f32
    %107 = vector.broadcast %cst_50 : f32 to vector<64x384xf32>
    %108 = arith.divf %107, %106 : vector<64x384xf32>
    %cst_51 = arith.constant 1.06140542 : f32
    %109 = vector.broadcast %cst_51 : f32 to vector<64x384xf32>
    %110 = arith.mulf %109, %108 : vector<64x384xf32>
    %cst_52 = arith.constant -1.45315206 : f32
    %111 = vector.broadcast %cst_52 : f32 to vector<64x384xf32>
    %112 = arith.addf %110, %111 : vector<64x384xf32>
    %113 = arith.mulf %112, %108 : vector<64x384xf32>
    %cst_53 = arith.constant 1.42141378 : f32
    %114 = vector.broadcast %cst_53 : f32 to vector<64x384xf32>
    %115 = arith.addf %113, %114 : vector<64x384xf32>
    %116 = arith.mulf %115, %108 : vector<64x384xf32>
    %cst_54 = arith.constant -0.284496725 : f32
    %117 = vector.broadcast %cst_54 : f32 to vector<64x384xf32>
    %118 = arith.addf %116, %117 : vector<64x384xf32>
    %119 = arith.mulf %118, %108 : vector<64x384xf32>
    %cst_55 = arith.constant 0.254829586 : f32
    %120 = vector.broadcast %cst_55 : f32 to vector<64x384xf32>
    %121 = arith.addf %119, %120 : vector<64x384xf32>
    %122 = arith.mulf %121, %108 : vector<64x384xf32>
    %cst_56 = arith.constant 0.000000e+00 : f32
    %123 = vector.broadcast %cst_56 : f32 to vector<64x384xf32>
    %124 = arith.subf %123, %102 : vector<64x384xf32>
    %125 = arith.mulf %124, %102 : vector<64x384xf32>
    %126 = math.exp %125 : vector<64x384xf32>
    %127 = arith.mulf %122, %126 : vector<64x384xf32>
    %cst_57 = arith.constant 1.000000e+00 : f32
    %128 = vector.broadcast %cst_57 : f32 to vector<64x384xf32>
    %129 = arith.subf %128, %127 : vector<64x384xf32>
    %cst_58 = arith.constant 0.000000e+00 : f32
    %130 = vector.broadcast %cst_58 : f32 to vector<64x384xf32>
    %131 = arith.cmpf olt, %101, %130 : vector<64x384xf32>
    %cst_59 = arith.constant 0.000000e+00 : f32
    %132 = vector.broadcast %cst_59 : f32 to vector<64x384xf32>
    %133 = arith.subf %132, %129 : vector<64x384xf32>
    %134 = arith.select %131, %133, %129 : vector<64x384xi1>, vector<64x384xf32>
    %cst_60 = arith.constant 1.000000e+00 : f32
    %135 = vector.broadcast %cst_60 : f32 to vector<64x384xf32>
    %136 = arith.addf %135, %134 : vector<64x384xf32>
    %137 = arith.mulf %99, %136 : vector<64x384xf32>
    %cst_61 = arith.constant dense<0.000000e+00> : vector<64x384xf32>
    %138 = tpu.matmul %1, %137, %cst_61 {dimension_numbers = #tpu.dot_dimension_numbers<[1], [0], [0], [1], [0, 0, 1, 1], [], []>} : vector<64x64xf32>, vector<64x384xf32>, vector<64x384xf32> -> vector<64x384xf32>
    %139 = arith.addf %138, %41 : vector<64x384xf32>
    %cst_62 = arith.constant dense<0.000000e+00> : vector<8x384xf32>
    %140 = tpu.matmul %81, %139, %cst_62 {dimension_numbers = #tpu.dot_dimension_numbers<[1], [0], [0], [1], [0, 0, 1, 1], [], []>} : vector<8x64xf32>, vector<64x384xf32>, vector<8x384xf32> -> vector<8x384xf32>
    %141 = vector.extract_strided_slice %140 {offsets = [0, 0], sizes = [1, 384], strides = [1, 1]} : vector<8x384xf32> to vector<1x384xf32>
    %142 = arith.mulf %139, %139 : vector<64x384xf32>
    %cst_63 = arith.constant dense<0.000000e+00> : vector<8x384xf32>
    %143 = tpu.matmul %81, %142, %cst_63 {dimension_numbers = #tpu.dot_dimension_numbers<[1], [0], [0], [1], [0, 0, 1, 1], [], []>} : vector<8x64xf32>, vector<64x384xf32>, vector<8x384xf32> -> vector<8x384xf32>
    %144 = vector.extract_strided_slice %143 {offsets = [0, 0], sizes = [1, 384], strides = [1, 1]} : vector<8x384xf32> to vector<1x384xf32>
    %145 = arith.mulf %141, %141 : vector<1x384xf32>
    %146 = arith.subf %144, %145 : vector<1x384xf32>
    %cst_64 = arith.constant 9.99999974E-6 : f32
    %147 = vector.broadcast %cst_64 : f32 to vector<1x384xf32>
    %148 = arith.addf %146, %147 : vector<1x384xf32>
    %149 = math.rsqrt %148 : vector<1x384xf32>
    %150 = vector.broadcast %141 : vector<1x384xf32> to vector<64x384xf32>
    %151 = arith.subf %139, %150 : vector<64x384xf32>
    %152 = vector.broadcast %149 : vector<1x384xf32> to vector<64x384xf32>
    %153 = arith.mulf %151, %152 : vector<64x384xf32>
    %154 = arith.mulf %153, %35 : vector<64x384xf32>
    %155 = arith.addf %154, %38 : vector<64x384xf32>
    %cst_65 = arith.constant 5.000000e-01 : f32
    %156 = vector.broadcast %cst_65 : f32 to vector<64x384xf32>
    %157 = arith.mulf %156, %155 : vector<64x384xf32>
    %cst_66 = arith.constant 0.707106769 : f32
    %158 = vector.broadcast %cst_66 : f32 to vector<64x384xf32>
    %159 = arith.mulf %155, %158 : vector<64x384xf32>
    %160 = math.absf %159 : vector<64x384xf32>
    %cst_67 = arith.constant 0.327591091 : f32
    %161 = vector.broadcast %cst_67 : f32 to vector<64x384xf32>
    %162 = arith.mulf %161, %160 : vector<64x384xf32>
    %cst_68 = arith.constant 1.000000e+00 : f32
    %163 = vector.broadcast %cst_68 : f32 to vector<64x384xf32>
    %164 = arith.addf %163, %162 : vector<64x384xf32>
    %cst_69 = arith.constant 1.000000e+00 : f32
    %165 = vector.broadcast %cst_69 : f32 to vector<64x384xf32>
    %166 = arith.divf %165, %164 : vector<64x384xf32>
    %cst_70 = arith.constant 1.06140542 : f32
    %167 = vector.broadcast %cst_70 : f32 to vector<64x384xf32>
    %168 = arith.mulf %167, %166 : vector<64x384xf32>
    %cst_71 = arith.constant -1.45315206 : f32
    %169 = vector.broadcast %cst_71 : f32 to vector<64x384xf32>
    %170 = arith.addf %168, %169 : vector<64x384xf32>
    %171 = arith.mulf %170, %166 : vector<64x384xf32>
    %cst_72 = arith.constant 1.42141378 : f32
    %172 = vector.broadcast %cst_72 : f32 to vector<64x384xf32>
    %173 = arith.addf %171, %172 : vector<64x384xf32>
    %174 = arith.mulf %173, %166 : vector<64x384xf32>
    %cst_73 = arith.constant -0.284496725 : f32
    %175 = vector.broadcast %cst_73 : f32 to vector<64x384xf32>
    %176 = arith.addf %174, %175 : vector<64x384xf32>
    %177 = arith.mulf %176, %166 : vector<64x384xf32>
    %cst_74 = arith.constant 0.254829586 : f32
    %178 = vector.broadcast %cst_74 : f32 to vector<64x384xf32>
    %179 = arith.addf %177, %178 : vector<64x384xf32>
    %180 = arith.mulf %179, %166 : vector<64x384xf32>
    %cst_75 = arith.constant 0.000000e+00 : f32
    %181 = vector.broadcast %cst_75 : f32 to vector<64x384xf32>
    %182 = arith.subf %181, %160 : vector<64x384xf32>
    %183 = arith.mulf %182, %160 : vector<64x384xf32>
    %184 = math.exp %183 : vector<64x384xf32>
    %185 = arith.mulf %180, %184 : vector<64x384xf32>
    %cst_76 = arith.constant 1.000000e+00 : f32
    %186 = vector.broadcast %cst_76 : f32 to vector<64x384xf32>
    %187 = arith.subf %186, %185 : vector<64x384xf32>
    %cst_77 = arith.constant 0.000000e+00 : f32
    %188 = vector.broadcast %cst_77 : f32 to vector<64x384xf32>
    %189 = arith.cmpf olt, %159, %188 : vector<64x384xf32>
    %cst_78 = arith.constant 0.000000e+00 : f32
    %190 = vector.broadcast %cst_78 : f32 to vector<64x384xf32>
    %191 = arith.subf %190, %187 : vector<64x384xf32>
    %192 = arith.select %189, %191, %187 : vector<64x384xi1>, vector<64x384xf32>
    %cst_79 = arith.constant 1.000000e+00 : f32
    %193 = vector.broadcast %cst_79 : f32 to vector<64x384xf32>
    %194 = arith.addf %193, %192 : vector<64x384xf32>
    %195 = arith.mulf %157, %194 : vector<64x384xf32>
    %cst_80 = arith.constant dense<0.000000e+00> : vector<8x384xf32>
    %196 = tpu.matmul %2, %195, %cst_80 {dimension_numbers = #tpu.dot_dimension_numbers<[1], [0], [0], [1], [0, 0, 1, 1], [], []>} : vector<8x64xf32>, vector<64x384xf32>, vector<8x384xf32> -> vector<8x384xf32>
    %197 = arith.addf %196, %44 : vector<8x384xf32>
    %c0_81 = arith.constant 0 : index
    %c0_82 = arith.constant 0 : index
    %c0_83 = arith.constant 0 : index
    %198 = vector.load %arg11[%c0_81, %c0_82, %c0_83] : memref<1x8x384xf32, #tpu.memory_space<vmem>>, vector<1x8x384xf32>
    %199 = vector.shape_cast %198 : vector<1x8x384xf32> to vector<8x384xf32>
    %200 = vector.shape_cast %197 : vector<8x384xf32> to vector<1x8x384xf32>
    tpu.vector_store %arg11[%c0_81, %c0_82, %c0_83], %200 {strides = array<i32>} : memref<1x8x384xf32, #tpu.memory_space<vmem>>, vector<1x8x384xf32>,
    return
  }
  func.func @transform_0(%arg0: i32, %arg1: i32) -> (i32, i32, i32, i32) {
    %c0_i32 = arith.constant 0 : i32
    %c0_i32_0 = arith.constant 0 : i32
    %c0_i32_1 = arith.constant 0 : i32
    return %arg0, %arg1, %c0_i32, %c0_i32_0 : i32, i32, i32, i32
  }
  func.func @transform_1(%arg0: i32, %arg1: i32) -> (i32, i32) {
    %c0_i32 = arith.constant 0 : i32
    %c0_i32_0 = arith.constant 0 : i32
    %c0_i32_1 = arith.constant 0 : i32
    return %c0_i32, %c0_i32_0 : i32, i32
  }
  func.func @transform_2(%arg0: i32, %arg1: i32) -> (i32, i32) {
    %c0_i32 = arith.constant 0 : i32
    %c0_i32_0 = arith.constant 0 : i32
    %c0_i32_1 = arith.constant 0 : i32
    return %c0_i32, %c0_i32_0 : i32, i32
  }
  func.func @transform_3(%arg0: i32, %arg1: i32) -> (i32, i32) {
    %c0_i32 = arith.constant 0 : i32
    %c0_i32_0 = arith.constant 0 : i32
    %c0_i32_1 = arith.constant 0 : i32
    return %c0_i32, %c0_i32_0 : i32, i32
  }
  func.func @transform_4(%arg0: i32, %arg1: i32) -> (i32, i32) {
    %c0_i32 = arith.constant 0 : i32
    %c0_i32_0 = arith.constant 0 : i32
    %c0_i32_1 = arith.constant 0 : i32
    return %c0_i32, %c0_i32_0 : i32, i32
  }
  func.func @transform_5(%arg0: i32, %arg1: i32) -> (i32, i32) {
    %c0_i32 = arith.constant 0 : i32
    %c0_i32_0 = arith.constant 0 : i32
    %c0_i32_1 = arith.constant 0 : i32
    return %c0_i32, %c0_i32_0 : i32, i32
  }
  func.func @transform_6(%arg0: i32, %arg1: i32) -> (i32, i32) {
    %c0_i32 = arith.constant 0 : i32
    %c0_i32_0 = arith.constant 0 : i32
    %c0_i32_1 = arith.constant 0 : i32
    return %c0_i32, %c0_i32_0 : i32, i32
  }
  func.func @transform_7(%arg0: i32, %arg1: i32) -> (i32, i32) {
    %c0_i32 = arith.constant 0 : i32
    %c0_i32_0 = arith.constant 0 : i32
    %c0_i32_1 = arith.constant 0 : i32
    return %c0_i32, %c0_i32_0 : i32, i32
  }
  func.func @transform_8(%arg0: i32, %arg1: i32) -> (i32, i32) {
    %c0_i32 = arith.constant 0 : i32
    %c0_i32_0 = arith.constant 0 : i32
    %c0_i32_1 = arith.constant 0 : i32
    return %c0_i32, %c0_i32_0 : i32, i32
  }
  func.func @transform_9(%arg0: i32, %arg1: i32) -> (i32, i32, i32) {
    %c0_i32 = arith.constant 0 : i32
    %c0_i32_0 = arith.constant 0 : i32
    return %arg0, %c0_i32, %arg1 : i32, i32, i32
  }
}

</mosaic_0001>

<llo_original>
// kernel: tpu_custom_call.1
$region0: #{tpu_custom_call.1}
  #allocation0 [shape = 'u32[]', space=smem, size = 0x4, offset = 0x4, fixed_abs, tag = 'smem constant byte address 0x4 - core index']
  #allocation1 [shape = 'u32[144,128]{1,0:T(1,128)}', space=vmem, size = 0x12000, scoped, tag = 'internal scratch']
  %s0 = inlined_call_operand.hbm [shape: f32[2,1,64,422], index: 0, kind: input, shape index: {}]
  %s1 = inlined_call_operand.vmem [shape: f32[64,9], index: 1, kind: input, shape index: {}]
  %s2 = inlined_call_operand.vmem [shape: f32[64,1], index: 2, kind: input, shape index: {}]
  %s3 = inlined_call_operand.vmem [shape: f32[64,1], index: 3, kind: input, shape index: {}]
  %s4 = inlined_call_operand.vmem [shape: f32[64,1], index: 4, kind: input, shape index: {}]
  %s5 = inlined_call_operand.vmem [shape: f32[64,64], index: 5, kind: input, shape index: {}]
  %s6 = inlined_call_operand.vmem [shape: f32[64,1], index: 6, kind: input, shape index: {}]
  %s7 = inlined_call_operand.vmem [shape: f32[8,64], index: 7, kind: input, shape index: {}]
  %s8 = inlined_call_operand.vmem [shape: f32[8,1], index: 8, kind: input, shape index: {}]
  %s9 = inlined_call_operand.hbm [shape: f32[2,8,384], index: 9, kind: output, shape index: {}]
  %s10 = sld [smem:[#allocation0]]
  $region73: #{tpu_custom_call.1} parent=0
    _
  %s12 = ssub.s32 1, %s10
  %s13 = scalar_select 0, %s12, %s10
  $region1: #{tpu_custom_call.1} parent=0
    #allocation2 [shape = 'u8[262144]{0}', space=vmem, size = 0x40000, scoped, tag = 'input window, operand 0']
    #allocation3 [shape = 's32[2]{0}', space=sflag, size = 0x8, scoped, tag = 'scoped memory for tpu_custom_call.1']
    #allocation4 [shape = 's32[2]{0}', space=sflag, size = 0x8, scoped, tag = 'scoped memory for tpu_custom_call.1']
    #allocation5 [shape = 'u8[24576]{0}', space=vmem, size = 0x6000, scoped, tag = 'output window, operand 0']
    %14 = vsyncpa [#allocation3], 0
    %s15 = scalar_lea.sflag [#allocation3], 1
    %16 = vsyncpa %s15, 0
    %17 = vsyncpa [#allocation4], 0
    %s18 = scalar_lea.sflag [#allocation4], 1
    %19 = vsyncpa %s18, 0
    loop: start=0, step=1, limit=4
    $region2: #{tpu_custom_call.1} parent=1 // loop_pre_header
      _
    $region3: #{tpu_custom_call.1} parent=1 // loop_header
      %s21 = sphi 0, %s25
      %p22 = scmp.ge.s32.totalorder %s21, 4
      %s28 = sphi 0, %s40
      %s29 = sphi 0, %s36
      %s30 = sphi 0, %s28
      %s31 = sphi 0, %s29
      %s32 = sphi 0, %s30
      %s33 = sphi 0, %s31
      %s45 = sphi 0, %s47
      %s48 = sphi 0, %s45
      %s49 = sphi 0, %s48
      %s65 = sphi 0, %s49
      %s69 = sphi 0, %s69
      %s71 = sphi 0, %s69
      %s72 = sphi 0, %s71
      %s86 = sphi 0, %s72
      %s90 = sphi 0, %s90
      %s92 = sphi 0, %s90
      %s93 = sphi 0, %s92
      %s107 = sphi 0, %s93
      %s111 = sphi 0, %s111
      %s113 = sphi 0, %s111
      %s114 = sphi 0, %s113
      %s128 = sphi 0, %s114
      %s132 = sphi 0, %s132
      %s134 = sphi 0, %s132
      %s135 = sphi 0, %s134
      %s149 = sphi 0, %s135
      %s153 = sphi 0, %s153
      %s155 = sphi 0, %s153
      %s156 = sphi 0, %s155
      %s170 = sphi 0, %s156
      %s174 = sphi 0, %s174
      %s176 = sphi 0, %s174
      %s177 = sphi 0, %s176
      %s191 = sphi 0, %s177
      %s195 = sphi 0, %s195
      %s197 = sphi 0, %s195
      %s198 = sphi 0, %s197
      %s212 = sphi 0, %s198
      %s216 = sphi 0, %s216
      %s218 = sphi 0, %s216
      %s219 = sphi 0, %s218
      %s233 = sphi 0, %s219
      %s241 = sphi 0, %s243
      %s244 = sphi 0, %s241
      %s245 = sphi 0, %s244
      %s261 = sphi 0, %s245
    $region4: #{tpu_custom_call.1} parent=1 // loop_header_branch
      %24 = sbr.rel (%p22) target = $region8
    $region5: #{tpu_custom_call.1} parent=1 // loop_body
      %s26 = ssub.s32 %s21, 1
      %s27 = ssub.s32 %s21, 2
      %s34 = sadd.s32 1, %s29
      %p35 = scmp.ge.s32.totalorder %s34, 1
      %s36 = scalar_select %p35, 0, %s34
      %s37 = sadd.s32 1, %s28
      %s38 = scalar_select %p35, %s37, %s28
      %p39 = scmp.ge.s32.totalorder %s38, 2
      %s40 = scalar_select %p39, 0, %s38
      %s41 = ssub.s32 %s28, %s40
      %s42 = ssub.s32 %s29, %s36
      %s43 = sor.u32 %s41, %s42
      %p44 = scmp.eq.s32.totalorder %s43, 0
      %s46 = sadd.s32 %s45, 1
      %s47 = scalar_select %p44, %s45, %s46
      %p50 = pneg %p44
      %p51 = scmp.eq.s32.totalorder %s21, 1
      %p52 = por %p50, %p51
      %p53 = scmp.ne.s32.totalorder %s45, %s48
      %p54 = scmp.eq.s32.totalorder %s21, 0
      %p55 = por %p53, %p54
      %p56 = scmp.ne.s32.totalorder %s45, %s48
      %p57 = scmp.eq.s32.totalorder %s26, 1
      %p58 = por %p56, %p57
      %p59 = scmp.ne.s32.totalorder %s48, %s49
      %p60 = scmp.eq.s32.totalorder %s26, 0
      %p61 = por %p59, %p60
      %p62 = scmp.ne.s32.totalorder %s48, %s49
      %p63 = scmp.eq.s32.totalorder %s27, 1
      %p64 = por %p62, %p63
      %p66 = scmp.ne.s32.totalorder %s49, %s65
      %p67 = scmp.eq.s32.totalorder %s27, 0
      %p68 = por %p66, %p67
      %s70 = sadd.s32 %s69, 1
      %p73 = scmp.eq.s32.totalorder %s21, 1
      %p74 = scmp.ne.s32.totalorder %s69, %s71
      %p75 = scmp.eq.s32.totalorder %s21, 0
      %p76 = por %p74, %p75
      %p77 = scmp.ne.s32.totalorder %s69, %s71
      %p78 = scmp.eq.s32.totalorder %s26, 1
      %p79 = por %p77, %p78
      %p80 = scmp.ne.s32.totalorder %s71, %s72
      %p81 = scmp.eq.s32.totalorder %s26, 0
      %p82 = por %p80, %p81
      %p83 = scmp.ne.s32.totalorder %s71, %s72
      %p84 = scmp.eq.s32.totalorder %s27, 1
      %p85 = por %p83, %p84
      %p87 = scmp.ne.s32.totalorder %s72, %s86
      %p88 = scmp.eq.s32.totalorder %s27, 0
      %p89 = por %p87, %p88
      %s91 = sadd.s32 %s90, 1
      %p94 = scmp.eq.s32.totalorder %s21, 1
      %p95 = scmp.ne.s32.totalorder %s90, %s92
      %p96 = scmp.eq.s32.totalorder %s21, 0
      %p97 = por %p95, %p96
      %p98 = scmp.ne.s32.totalorder %s90, %s92
      %p99 = scmp.eq.s32.totalorder %s26, 1
      %p100 = por %p98, %p99
      %p101 = scmp.ne.s32.totalorder %s92, %s93
      %p102 = scmp.eq.s32.totalorder %s26, 0
      %p103 = por %p101, %p102
      %p104 = scmp.ne.s32.totalorder %s92, %s93
      %p105 = scmp.eq.s32.totalorder %s27, 1
      %p106 = por %p104, %p105
      %p108 = scmp.ne.s32.totalorder %s93, %s107
      %p109 = scmp.eq.s32.totalorder %s27, 0
      %p110 = por %p108, %p109
      %s112 = sadd.s32 %s111, 1
      %p115 = scmp.eq.s32.totalorder %s21, 1
      %p116 = scmp.ne.s32.totalorder %s111, %s113
      %p117 = scmp.eq.s32.totalorder %s21, 0
      %p118 = por %p116, %p117
      %p119 = scmp.ne.s32.totalorder %s111, %s113
      %p120 = scmp.eq.s32.totalorder %s26, 1
      %p121 = por %p119, %p120
      %p122 = scmp.ne.s32.totalorder %s113, %s114
      %p123 = scmp.eq.s32.totalorder %s26, 0
      %p124 = por %p122, %p123
      %p125 = scmp.ne.s32.totalorder %s113, %s114
      %p126 = scmp.eq.s32.totalorder %s27, 1
      %p127 = por %p125, %p126
      %p129 = scmp.ne.s32.totalorder %s114, %s128
      %p130 = scmp.eq.s32.totalorder %s27, 0
      %p131 = por %p129, %p130
      %s133 = sadd.s32 %s132, 1
      %p136 = scmp.eq.s32.totalorder %s21, 1
      %p137 = scmp.ne.s32.totalorder %s132, %s134
      %p138 = scmp.eq.s32.totalorder %s21, 0
      %p139 = por %p137, %p138
      %p140 = scmp.ne.s32.totalorder %s132, %s134
      %p141 = scmp.eq.s32.totalorder %s26, 1
      %p142 = por %p140, %p141
      %p143 = scmp.ne.s32.totalorder %s134, %s135
      %p144 = scmp.eq.s32.totalorder %s26, 0
      %p145 = por %p143, %p144
      %p146 = scmp.ne.s32.totalorder %s134, %s135
      %p147 = scmp.eq.s32.totalorder %s27, 1
      %p148 = por %p146, %p147
      %p150 = scmp.ne.s32.totalorder %s135, %s149
      %p151 = scmp.eq.s32.totalorder %s27, 0
      %p152 = por %p150, %p151
      %s154 = sadd.s32 %s153, 1
      %p157 = scmp.eq.s32.totalorder %s21, 1
      %p158 = scmp.ne.s32.totalorder %s153, %s155
      %p159 = scmp.eq.s32.totalorder %s21, 0
      %p160 = por %p158, %p159
      %p161 = scmp.ne.s32.totalorder %s153, %s155
      %p162 = scmp.eq.s32.totalorder %s26, 1
      %p163 = por %p161, %p162
      %p164 = scmp.ne.s32.totalorder %s155, %s156
      %p165 = scmp.eq.s32.totalorder %s26, 0
      %p166 = por %p164, %p165
      %p167 = scmp.ne.s32.totalorder %s155, %s156
      %p168 = scmp.eq.s32.totalorder %s27, 1
      %p169 = por %p167, %p168
      %p171 = scmp.ne.s32.totalorder %s156, %s170
      %p172 = scmp.eq.s32.totalorder %s27, 0
      %p173 = por %p171, %p172
      %s175 = sadd.s32 %s174, 1
      %p178 = scmp.eq.s32.totalorder %s21, 1
      %p179 = scmp.ne.s32.totalorder %s174, %s176
      %p180 = scmp.eq.s32.totalorder %s21, 0
      %p181 = por %p179, %p180
      %p182 = scmp.ne.s32.totalorder %s174, %s176
      %p183 = scmp.eq.s32.totalorder %s26, 1
      %p184 = por %p182, %p183
      %p185 = scmp.ne.s32.totalorder %s176, %s177
      %p186 = scmp.eq.s32.totalorder %s26, 0
      %p187 = por %p185, %p186
      %p188 = scmp.ne.s32.totalorder %s176, %s177
      %p189 = scmp.eq.s32.totalorder %s27, 1
      %p190 = por %p188, %p189
      %p192 = scmp.ne.s32.totalorder %s177, %s191
      %p193 = scmp.eq.s32.totalorder %s27, 0
      %p194 = por %p192, %p193
      %s196 = sadd.s32 %s195, 1
      %p199 = scmp.eq.s32.totalorder %s21, 1
      %p200 = scmp.ne.s32.totalorder %s195, %s197
      %p201 = scmp.eq.s32.totalorder %s21, 0
      %p202 = por %p200, %p201
      %p203 = scmp.ne.s32.totalorder %s195, %s197
      %p204 = scmp.eq.s32.totalorder %s26, 1
      %p205 = por %p203, %p204
      %p206 = scmp.ne.s32.totalorder %s197, %s198
      %p207 = scmp.eq.s32.totalorder %s26, 0
      %p208 = por %p206, %p207
      %p209 = scmp.ne.s32.totalorder %s197, %s198
      %p210 = scmp.eq.s32.totalorder %s27, 1
      %p211 = por %p209, %p210
      %p213 = scmp.ne.s32.totalorder %s198, %s212
      %p214 = scmp.eq.s32.totalorder %s27, 0
      %p215 = por %p213, %p214
      %s217 = sadd.s32 %s216, 1
      %p220 = scmp.eq.s32.totalorder %s21, 1
      %p221 = scmp.ne.s32.totalorder %s216, %s218
      %p222 = scmp.eq.s32.totalorder %s21, 0
      %p223 = por %p221, %p222
      %p224 = scmp.ne.s32.totalorder %s216, %s218
      %p225 = scmp.eq.s32.totalorder %s26, 1
      %p226 = por %p224, %p225
      %p227 = scmp.ne.s32.totalorder %s218, %s219
      %p228 = scmp.eq.s32.totalorder %s26, 0
      %p229 = por %p227, %p228
      %p230 = scmp.ne.s32.totalorder %s218, %s219
      %p231 = scmp.eq.s32.totalorder %s27, 1
      %p232 = por %p230, %p231
      %p234 = scmp.ne.s32.totalorder %s219, %s233
      %p235 = scmp.eq.s32.totalorder %s27, 0
      %p236 = por %p234, %p235
      %s237 = ssub.s32 %s28, %s40
      %s238 = ssub.s32 %s29, %s36
      %s239 = sor.u32 %s237, %s238
      %p240 = scmp.eq.s32.totalorder %s239, 0
      %s242 = sadd.s32 %s241, 1
      %s243 = scalar_select %p240, %s241, %s242
      %p246 = pneg %p240
      %p247 = scmp.eq.s32.totalorder %s21, 1
      %p248 = por %p246, %p247
      %p249 = scmp.ne.s32.totalorder %s241, %s244
      %p250 = scmp.eq.s32.totalorder %s21, 0
      %p251 = por %p249, %p250
      %p252 = scmp.ne.s32.totalorder %s241, %s244
      %p253 = scmp.eq.s32.totalorder %s26, 1
      %p254 = por %p252, %p253
      %p255 = scmp.ne.s32.totalorder %s244, %s245
      %p256 = scmp.eq.s32.totalorder %s26, 0
      %p257 = por %p255, %p256
      %p258 = scmp.ne.s32.totalorder %s244, %s245
      %p259 = scmp.eq.s32.totalorder %s27, 1
      %p260 = por %p258, %p259
      %p262 = scmp.ne.s32.totalorder %s245, %s261
      %p263 = scmp.eq.s32.totalorder %s27, 0
      %p264 = por %p262, %p263
      %p265 = scmp.le.s32.totalorder 1, %s21
      %p266 = scmp.lt.s32.totalorder %s21, 3
      %p267 = pnand %p265, %p266
      %p268 = pneg %p267
      // Predicated region
      $region9: #{tpu_custom_call.1} parent=5 // pred_check
        _
      $region10: #{tpu_custom_call.1} parent=5 // pred_check_branch
        %270 = sbr.rel (%p267) target = $region12
      $region11: #{tpu_custom_call.1} parent=5 // pred_region
        %s271 = ssub.s32 %s21, 1
        // Predicated region
        $region13: #{tpu_custom_call.1} parent=11 // pred_check
          %p272 = pneg %p82
        $region14: #{tpu_custom_call.1} parent=11 // pred_check_branch
          %274 = sbr.rel (%p272) target = $region16
        $region15: #{tpu_custom_call.1} parent=11 // pred_region
          _
        $region16: #{tpu_custom_call.1} parent=11 // pred_fallthru
          _
        // Predicated region
        $region17: #{tpu_custom_call.1} parent=11 // pred_check
          %p275 = pneg %p103
        $region18: #{tpu_custom_call.1} parent=11 // pred_check_branch
          %277 = sbr.rel (%p275) target = $region20
        $region19: #{tpu_custom_call.1} parent=11 // pred_region
          _
        $region20: #{tpu_custom_call.1} parent=11 // pred_fallthru
          _
        // Predicated region
        $region21: #{tpu_custom_call.1} parent=11 // pred_check
          %p278 = pneg %p124
        $region22: #{tpu_custom_call.1} parent=11 // pred_check_branch
          %280 = sbr.rel (%p278) target = $region24
        $region23: #{tpu_custom_call.1} parent=11 // pred_region
          _
        $region24: #{tpu_custom_call.1} parent=11 // pred_fallthru
          _
        // Predicated region
        $region25: #{tpu_custom_call.1} parent=11 // pred_check
          %p281 = pneg %p145
        $region26: #{tpu_custom_call.1} parent=11 // pred_check_branch
          %283 = sbr.rel (%p281) target = $region28
        $region27: #{tpu_custom_call.1} parent=11 // pred_region
          _
        $region28: #{tpu_custom_call.1} parent=11 // pred_fallthru
          _
        // Predicated region
        $region29: #{tpu_custom_call.1} parent=11 // pred_check
          %p284 = pneg %p166
        $region30: #{tpu_custom_call.1} parent=11 // pred_check_branch
          %286 = sbr.rel (%p284) target = $region32
        $region31: #{tpu_custom_call.1} parent=11 // pred_region
          _
        $region32: #{tpu_custom_call.1} parent=11 // pred_fallthru
          _
        // Predicated region
        $region33: #{tpu_custom_call.1} parent=11 // pred_check
          %p287 = pneg %p187
        $region34: #{tpu_custom_call.1} parent=11 // pred_check_branch
          %289 = sbr.rel (%p287) target = $region36
        $region35: #{tpu_custom_call.1} parent=11 // pred_region
          _
        $region36: #{tpu_custom_call.1} parent=11 // pred_fallthru
          _
        // Predicated region
        $region37: #{tpu_custom_call.1} parent=11 // pred_check
          %p290 = pneg %p208
        $region38: #{tpu_custom_call.1} parent=11 // pred_check_branch
          %292 = sbr.rel (%p290) target = $region40
        $region39: #{tpu_custom_call.1} parent=11 // pred_region
          _
        $region40: #{tpu_custom_call.1} parent=11 // pred_fallthru
          _
        // Predicated region
        $region41: #{tpu_custom_call.1} parent=11 // pred_check
          %p293 = pneg %p229
        $region42: #{tpu_custom_call.1} parent=11 // pred_check_branch
          %295 = sbr.rel (%p293) target = $region44
        $region43: #{tpu_custom_call.1} parent=11 // pred_region
          _
        $region44: #{tpu_custom_call.1} parent=11 // pred_fallthru
          _
      $region12: #{tpu_custom_call.1} parent=5 // pred_fallthru
        _
      %p296 = scmp.lt.s32.totalorder %s21, 2
      // Predicated region
      $region45: #{tpu_custom_call.1} parent=5 // pred_check
        %p297 = pneg %p296
      $region46: #{tpu_custom_call.1} parent=5 // pred_check_branch
        %299 = sbr.rel (%p297) target = $region48
      $region47: #{tpu_custom_call.1} parent=5 // pred_region
        // Predicated region
        $region49: #{tpu_custom_call.1} parent=47 // pred_check
          %p300 = pneg %p55
        $region50: #{tpu_custom_call.1} parent=47 // pred_check_branch
          %302 = sbr.rel (%p300) target = $region52
        $region51: #{tpu_custom_call.1} parent=47 // pred_region
          %s303 = sand.u32 %s45, 1
          %s304 = scalar_lea.sflag [#allocation3], %s303
          %s305 = sand.u32 %s45, 1
          %s306 = smul.addr %s305, 256
          %s307 = scalar_lea.vmem [#allocation2], %s306
          %s309 = ssub.s32 4096, 4096
          %310 = vsyncadd %s304, %s309
          %s311 = smul.addr %s29, 32
          %s312 = smul.addr %s28, 32
          %s313 = sadd.s32 %s311, %s312
          %s314 = smul.addr %s313, 128
          %s315 = scalar_lea.hbm %s0, %s314
          %s316 = sshll.u32 %s307, 4
          %s317 = int_to_ptr.vmem [resolvable:$true] %s316
          %322 = dma.hbm_to_vmem [thread:$0]  %s315, 4096, %s317, %s304, 512, 512, 32
        $region52: #{tpu_custom_call.1} parent=47 // pred_fallthru
          _
      $region48: #{tpu_custom_call.1} parent=5 // pred_fallthru
        _
      %p323 = scmp.le.s32.totalorder 1, %s21
      %p324 = scmp.lt.s32.totalorder %s21, 3
      %p325 = pnand %p323, %p324
      %p326 = pneg %p325
      // Predicated region
      $region53: #{tpu_custom_call.1} parent=5 // pred_check
        _
      $region54: #{tpu_custom_call.1} parent=5 // pred_check_branch
        %328 = sbr.rel (%p325) target = $region56
      $region55: #{tpu_custom_call.1} parent=5 // pred_region
        %s329 = ssub.s32 %s21, 1
        %s330 = sand.u32 %s48, 1
        %s331 = scalar_lea.sflag [#allocation3], %s330
        %s332 = sand.u32 %s48, 1
        %s333 = smul.addr %s332, 256
        %s334 = scalar_lea.vmem [#allocation2], %s333
        // Predicated region
        $region57: #{tpu_custom_call.1} parent=55 // pred_check
          %p335 = pneg %p61
        $region58: #{tpu_custom_call.1} parent=55 // pred_check_branch
          %337 = sbr.rel (%p335) target = $region60
        $region59: #{tpu_custom_call.1} parent=55 // pred_region
          %338 = dma.done %s331, 4096
        $region60: #{tpu_custom_call.1} parent=55 // pred_fallthru
          _
        %s339 = sand.u32 %s48, 1
        %s340 = scalar_lea.sflag [#allocation3], %s339
        %s341 = sand.u32 %s48, 1
        %s342 = smul.addr %s341, 256
        %s343 = scalar_lea.vmem [#allocation2], %s342
        %p344 = pneg %p61
        %p345 = pneg %p58
        %p346 = pneg %p82
        %p347 = pneg %p79
        %p348 = pneg %p103
        %p349 = pneg %p100
        %p350 = pneg %p124
        %p351 = pneg %p121
        %p352 = pneg %p145
        %p353 = pneg %p142
        %p354 = pneg %p166
        %p355 = pneg %p163
        %p356 = pneg %p187
        %p357 = pneg %p184
        %p358 = pneg %p208
        %p359 = pneg %p205
        %p360 = pneg %p229
        %p361 = pneg %p226
        %p362 = pneg %p257
        %p363 = pneg %p254
        %s364 = sand.u32 %s244, 1
        %s365 = scalar_lea.sflag [#allocation4], %s364
        %s366 = sand.u32 %s244, 1
        %s367 = smul.addr %s366, 24
        %s368 = scalar_lea.vmem [#allocation5], %s367
        %s369 = smul.u32 3, %s31
        %v370 = vld [vmem:[%s1] sm:$0xff]
        %v371 = vld [vmem:[%s1 + $0x8] sm:$0xff]
        %v372 = vld [vmem:[%s1 + $0x10] sm:$0xff]
        %v373 = vld [vmem:[%s1 + $0x18] sm:$0xff]
        %v374 = vld [vmem:[%s1 + $0x20] sm:$0xff]
        %v375 = vld [vmem:[%s1 + $0x28] sm:$0xff]
        %v376 = vld [vmem:[%s1 + $0x30] sm:$0xff]
        %v377 = vld [vmem:[%s1 + $0x38] sm:$0xff]
        %v378 = vld [vmem:[%s5] sm:$0xff]
        %v379 = vld [vmem:[%s5 + $0x8] sm:$0xff]
        %v380 = vld [vmem:[%s5 + $0x10] sm:$0xff]
        %v381 = vld [vmem:[%s5 + $0x18] sm:$0xff]
        %v382 = vld [vmem:[%s5 + $0x20] sm:$0xff]
        %v383 = vld [vmem:[%s5 + $0x28] sm:$0xff]
        %v384 = vld [vmem:[%s5 + $0x30] sm:$0xff]
        %v385 = vld [vmem:[%s5 + $0x38] sm:$0xff]
        %v386 = vld [vmem:[%s7] sm:$0xff]
        %388 = vset.pattern.permute.xlu0 0
        %389 = vperm.xlu0 %388, %v370
        %v390 = vpop.permute.xlu0 %389
        %393 = vset.pattern.permute.xlu0 0
        %394 = vperm.xlu0 %393, %v371
        %v395 = vpop.permute.xlu0 %394
        %398 = vset.pattern.permute.xlu0 0
        %399 = vperm.xlu0 %398, %v372
        %v400 = vpop.permute.xlu0 %399
        %403 = vset.pattern.permute.xlu0 0
        %404 = vperm.xlu0 %403, %v373
        %v405 = vpop.permute.xlu0 %404
        %408 = vset.pattern.permute.xlu0 0
        %409 = vperm.xlu0 %408, %v374
        %v410 = vpop.permute.xlu0 %409
        %413 = vset.pattern.permute.xlu0 0
        %414 = vperm.xlu0 %413, %v375
        %v415 = vpop.permute.xlu0 %414
        %418 = vset.pattern.permute.xlu0 0
        %419 = vperm.xlu0 %418, %v376
        %v420 = vpop.permute.xlu0 %419
        %423 = vset.pattern.permute.xlu0 0
        %424 = vperm.xlu0 %423, %v377
        %v425 = vpop.permute.xlu0 %424
        %427 = vset.pattern.permute.xlu0 1
        %428 = vperm.xlu0 %427, %v370
        %v429 = vpop.permute.xlu0 %428
        %431 = vset.pattern.permute.xlu0 1
        %432 = vperm.xlu0 %431, %v371
        %v433 = vpop.permute.xlu0 %432
        %435 = vset.pattern.permute.xlu0 1
        %436 = vperm.xlu0 %435, %v372
        %v437 = vpop.permute.xlu0 %436
        %439 = vset.pattern.permute.xlu0 1
        %440 = vperm.xlu0 %439, %v373
        %v441 = vpop.permute.xlu0 %440
        %443 = vset.pattern.permute.xlu0 1
        %444 = vperm.xlu0 %443, %v374
        %v445 = vpop.permute.xlu0 %444
        %447 = vset.pattern.permute.xlu0 1
        %448 = vperm.xlu0 %447, %v375
        %v449 = vpop.permute.xlu0 %448
        %451 = vset.pattern.permute.xlu0 1
        %452 = vperm.xlu0 %451, %v376
        %v453 = vpop.permute.xlu0 %452
        %455 = vset.pattern.permute.xlu0 1
        %456 = vperm.xlu0 %455, %v377
        %v457 = vpop.permute.xlu0 %456
        %459 = vset.pattern.permute.xlu0 2
        %460 = vperm.xlu0 %459, %v370
        %v461 = vpop.permute.xlu0 %460
        %463 = vset.pattern.permute.xlu0 2
        %464 = vperm.xlu0 %463, %v371
        %v465 = vpop.permute.xlu0 %464
        %467 = vset.pattern.permute.xlu0 2
        %468 = vperm.xlu0 %467, %v372
        %v469 = vpop.permute.xlu0 %468
        %471 = vset.pattern.permute.xlu0 2
        %472 = vperm.xlu0 %471, %v373
        %v473 = vpop.permute.xlu0 %472
        %475 = vset.pattern.permute.xlu0 2
        %476 = vperm.xlu0 %475, %v374
        %v477 = vpop.permute.xlu0 %476
        %479 = vset.pattern.permute.xlu0 2
        %480 = vperm.xlu0 %479, %v375
        %v481 = vpop.permute.xlu0 %480
        %483 = vset.pattern.permute.xlu0 2
        %484 = vperm.xlu0 %483, %v376
        %v485 = vpop.permute.xlu0 %484
        %487 = vset.pattern.permute.xlu0 2
        %488 = vperm.xlu0 %487, %v377
        %v489 = vpop.permute.xlu0 %488
        %491 = vset.pattern.permute.xlu0 3
        %492 = vperm.xlu0 %491, %v370
        %v493 = vpop.permute.xlu0 %492
        %495 = vset.pattern.permute.xlu0 3
        %496 = vperm.xlu0 %495, %v371
        %v497 = vpop.permute.xlu0 %496
        %499 = vset.pattern.permute.xlu0 3
        %500 = vperm.xlu0 %499, %v372
        %v501 = vpop.permute.xlu0 %500
        %503 = vset.pattern.permute.xlu0 3
        %504 = vperm.xlu0 %503, %v373
        %v505 = vpop.permute.xlu0 %504
        %507 = vset.pattern.permute.xlu0 3
        %508 = vperm.xlu0 %507, %v374
        %v509 = vpop.permute.xlu0 %508
        %511 = vset.pattern.permute.xlu0 3
        %512 = vperm.xlu0 %511, %v375
        %v513 = vpop.permute.xlu0 %512
        %515 = vset.pattern.permute.xlu0 3
        %516 = vperm.xlu0 %515, %v376
        %v517 = vpop.permute.xlu0 %516
        %519 = vset.pattern.permute.xlu0 3
        %520 = vperm.xlu0 %519, %v377
        %v521 = vpop.permute.xlu0 %520
        %523 = vset.pattern.permute.xlu0 4
        %524 = vperm.xlu0 %523, %v370
        %v525 = vpop.permute.xlu0 %524
        %527 = vset.pattern.permute.xlu0 4
        %528 = vperm.xlu0 %527, %v371
        %v529 = vpop.permute.xlu0 %528
        %531 = vset.pattern.permute.xlu0 4
        %532 = vperm.xlu0 %531, %v372
        %v533 = vpop.permute.xlu0 %532
        %535 = vset.pattern.permute.xlu0 4
        %536 = vperm.xlu0 %535, %v373
        %v537 = vpop.permute.xlu0 %536
        %539 = vset.pattern.permute.xlu0 4
        %540 = vperm.xlu0 %539, %v374
        %v541 = vpop.permute.xlu0 %540
        %543 = vset.pattern.permute.xlu0 4
        %544 = vperm.xlu0 %543, %v375
        %v545 = vpop.permute.xlu0 %544
        %547 = vset.pattern.permute.xlu0 4
        %548 = vperm.xlu0 %547, %v376
        %v549 = vpop.permute.xlu0 %548
        %551 = vset.pattern.permute.xlu0 4
        %552 = vperm.xlu0 %551, %v377
        %v553 = vpop.permute.xlu0 %552
        %555 = vset.pattern.permute.xlu0 5
        %556 = vperm.xlu0 %555, %v370
        %v557 = vpop.permute.xlu0 %556
        %559 = vset.pattern.permute.xlu0 5
        %560 = vperm.xlu0 %559, %v371
        %v561 = vpop.permute.xlu0 %560
        %563 = vset.pattern.permute.xlu0 5
        %564 = vperm.xlu0 %563, %v372
        %v565 = vpop.permute.xlu0 %564
        %567 = vset.pattern.permute.xlu0 5
        %568 = vperm.xlu0 %567, %v373
        %v569 = vpop.permute.xlu0 %568
        %571 = vset.pattern.permute.xlu0 5
        %572 = vperm.xlu0 %571, %v374
        %v573 = vpop.permute.xlu0 %572
        %575 = vset.pattern.permute.xlu0 5
        %576 = vperm.xlu0 %575, %v375
        %v577 = vpop.permute.xlu0 %576
        %579 = vset.pattern.permute.xlu0 5
        %580 = vperm.xlu0 %579, %v376
        %v581 = vpop.permute.xlu0 %580
        %583 = vset.pattern.permute.xlu0 5
        %584 = vperm.xlu0 %583, %v377
        %v585 = vpop.permute.xlu0 %584
        %587 = vset.pattern.permute.xlu0 6
        %588 = vperm.xlu0 %587, %v370
        %v589 = vpop.permute.xlu0 %588
        %591 = vset.pattern.permute.xlu0 6
        %592 = vperm.xlu0 %591, %v371
        %v593 = vpop.permute.xlu0 %592
        %595 = vset.pattern.permute.xlu0 6
        %596 = vperm.xlu0 %595, %v372
        %v597 = vpop.permute.xlu0 %596
        %599 = vset.pattern.permute.xlu0 6
        %600 = vperm.xlu0 %599, %v373
        %v601 = vpop.permute.xlu0 %600
        %603 = vset.pattern.permute.xlu0 6
        %604 = vperm.xlu0 %603, %v374
        %v605 = vpop.permute.xlu0 %604
        %607 = vset.pattern.permute.xlu0 6
        %608 = vperm.xlu0 %607, %v375
        %v609 = vpop.permute.xlu0 %608
        %611 = vset.pattern.permute.xlu0 6
        %612 = vperm.xlu0 %611, %v376
        %v613 = vpop.permute.xlu0 %612
        %615 = vset.pattern.permute.xlu0 6
        %616 = vperm.xlu0 %615, %v377
        %v617 = vpop.permute.xlu0 %616
        %619 = vset.pattern.permute.xlu0 7
        %620 = vperm.xlu0 %619, %v370
        %v621 = vpop.permute.xlu0 %620
        %623 = vset.pattern.permute.xlu0 7
        %624 = vperm.xlu0 %623, %v371
        %v625 = vpop.permute.xlu0 %624
        %627 = vset.pattern.permute.xlu0 7
        %628 = vperm.xlu0 %627, %v372
        %v629 = vpop.permute.xlu0 %628
        %631 = vset.pattern.permute.xlu0 7
        %632 = vperm.xlu0 %631, %v373
        %v633 = vpop.permute.xlu0 %632
        %635 = vset.pattern.permute.xlu0 7
        %636 = vperm.xlu0 %635, %v374
        %v637 = vpop.permute.xlu0 %636
        %639 = vset.pattern.permute.xlu0 7
        %640 = vperm.xlu0 %639, %v375
        %v641 = vpop.permute.xlu0 %640
        %643 = vset.pattern.permute.xlu0 7
        %644 = vperm.xlu0 %643, %v376
        %v645 = vpop.permute.xlu0 %644
        %647 = vset.pattern.permute.xlu0 7
        %648 = vperm.xlu0 %647, %v377
        %v649 = vpop.permute.xlu0 %648
        %651 = vset.pattern.permute.xlu0 8
        %652 = vperm.xlu0 %651, %v370
        %v653 = vpop.permute.xlu0 %652
        %655 = vset.pattern.permute.xlu0 8
        %656 = vperm.xlu0 %655, %v371
        %v657 = vpop.permute.xlu0 %656
        %659 = vset.pattern.permute.xlu0 8
        %660 = vperm.xlu0 %659, %v372
        %v661 = vpop.permute.xlu0 %660
        %663 = vset.pattern.permute.xlu0 8
        %664 = vperm.xlu0 %663, %v373
        %v665 = vpop.permute.xlu0 %664
        %667 = vset.pattern.permute.xlu0 8
        %668 = vperm.xlu0 %667, %v374
        %v669 = vpop.permute.xlu0 %668
        %671 = vset.pattern.permute.xlu0 8
        %672 = vperm.xlu0 %671, %v375
        %v673 = vpop.permute.xlu0 %672
        %675 = vset.pattern.permute.xlu0 8
        %676 = vperm.xlu0 %675, %v376
        %v677 = vpop.permute.xlu0 %676
        %679 = vset.pattern.permute.xlu0 8
        %680 = vperm.xlu0 %679, %v377
        %v681 = vpop.permute.xlu0 %680
        %v683 = vld [vmem:[%s2] sm:$0xff]
        %v684 = vld [vmem:[%s2 + $0x8] sm:$0xff]
        %v685 = vld [vmem:[%s2 + $0x10] sm:$0xff]
        %v686 = vld [vmem:[%s2 + $0x18] sm:$0xff]
        %v687 = vld [vmem:[%s2 + $0x20] sm:$0xff]
        %v688 = vld [vmem:[%s2 + $0x28] sm:$0xff]
        %v689 = vld [vmem:[%s2 + $0x30] sm:$0xff]
        %v690 = vld [vmem:[%s2 + $0x38] sm:$0xff]
        %692 = vset.pattern.permute.xlu0 0
        %693 = vperm.xlu0 %692, %v683
        %v694 = vpop.permute.xlu0 %693
        %697 = vset.pattern.permute.xlu0 0
        %698 = vperm.xlu0 %697, %v684
        %v699 = vpop.permute.xlu0 %698
        %702 = vset.pattern.permute.xlu0 0
        %703 = vperm.xlu0 %702, %v685
        %v704 = vpop.permute.xlu0 %703
        %707 = vset.pattern.permute.xlu0 0
        %708 = vperm.xlu0 %707, %v686
        %v709 = vpop.permute.xlu0 %708
        %712 = vset.pattern.permute.xlu0 0
        %713 = vperm.xlu0 %712, %v687
        %v714 = vpop.permute.xlu0 %713
        %717 = vset.pattern.permute.xlu0 0
        %718 = vperm.xlu0 %717, %v688
        %v719 = vpop.permute.xlu0 %718
        %722 = vset.pattern.permute.xlu0 0
        %723 = vperm.xlu0 %722, %v689
        %v724 = vpop.permute.xlu0 %723
        %727 = vset.pattern.permute.xlu0 0
        %728 = vperm.xlu0 %727, %v690
        %v729 = vpop.permute.xlu0 %728
        %v731 = vld [vmem:[%s3] sm:$0xff]
        %v732 = vld [vmem:[%s3 + $0x8] sm:$0xff]
        %v733 = vld [vmem:[%s3 + $0x10] sm:$0xff]
        %v734 = vld [vmem:[%s3 + $0x18] sm:$0xff]
        %v735 = vld [vmem:[%s3 + $0x20] sm:$0xff]
        %v736 = vld [vmem:[%s3 + $0x28] sm:$0xff]
        %v737 = vld [vmem:[%s3 + $0x30] sm:$0xff]
        %v738 = vld [vmem:[%s3 + $0x38] sm:$0xff]
        %740 = vset.pattern.permute.xlu0 0
        %741 = vperm.xlu0 %740, %v731
        %v742 = vpop.permute.xlu0 %741
        %745 = vset.pattern.permute.xlu0 0
        %746 = vperm.xlu0 %745, %v732
        %v747 = vpop.permute.xlu0 %746
        %750 = vset.pattern.permute.xlu0 0
        %751 = vperm.xlu0 %750, %v733
        %v752 = vpop.permute.xlu0 %751
        %755 = vset.pattern.permute.xlu0 0
        %756 = vperm.xlu0 %755, %v734
        %v757 = vpop.permute.xlu0 %756
        %760 = vset.pattern.permute.xlu0 0
        %761 = vperm.xlu0 %760, %v735
        %v762 = vpop.permute.xlu0 %761
        %765 = vset.pattern.permute.xlu0 0
        %766 = vperm.xlu0 %765, %v736
        %v767 = vpop.permute.xlu0 %766
        %770 = vset.pattern.permute.xlu0 0
        %771 = vperm.xlu0 %770, %v737
        %v772 = vpop.permute.xlu0 %771
        %775 = vset.pattern.permute.xlu0 0
        %776 = vperm.xlu0 %775, %v738
        %v777 = vpop.permute.xlu0 %776
        %v779 = vld [vmem:[%s4] sm:$0xff]
        %v780 = vld [vmem:[%s4 + $0x8] sm:$0xff]
        %v781 = vld [vmem:[%s4 + $0x10] sm:$0xff]
        %v782 = vld [vmem:[%s4 + $0x18] sm:$0xff]
        %v783 = vld [vmem:[%s4 + $0x20] sm:$0xff]
        %v784 = vld [vmem:[%s4 + $0x28] sm:$0xff]
        %v785 = vld [vmem:[%s4 + $0x30] sm:$0xff]
        %v786 = vld [vmem:[%s4 + $0x38] sm:$0xff]
        %788 = vset.pattern.permute.xlu0 0
        %789 = vperm.xlu0 %788, %v779
        %v790 = vpop.permute.xlu0 %789
        %793 = vset.pattern.permute.xlu0 0
        %794 = vperm.xlu0 %793, %v780
        %v795 = vpop.permute.xlu0 %794
        %798 = vset.pattern.permute.xlu0 0
        %799 = vperm.xlu0 %798, %v781
        %v800 = vpop.permute.xlu0 %799
        %803 = vset.pattern.permute.xlu0 0
        %804 = vperm.xlu0 %803, %v782
        %v805 = vpop.permute.xlu0 %804
        %808 = vset.pattern.permute.xlu0 0
        %809 = vperm.xlu0 %808, %v783
        %v810 = vpop.permute.xlu0 %809
        %813 = vset.pattern.permute.xlu0 0
        %814 = vperm.xlu0 %813, %v784
        %v815 = vpop.permute.xlu0 %814
        %818 = vset.pattern.permute.xlu0 0
        %819 = vperm.xlu0 %818, %v785
        %v820 = vpop.permute.xlu0 %819
        %823 = vset.pattern.permute.xlu0 0
        %824 = vperm.xlu0 %823, %v786
        %v825 = vpop.permute.xlu0 %824
        %v827 = vld [vmem:[%s6] sm:$0xff]
        %v828 = vld [vmem:[%s6 + $0x8] sm:$0xff]
        %v829 = vld [vmem:[%s6 + $0x10] sm:$0xff]
        %v830 = vld [vmem:[%s6 + $0x18] sm:$0xff]
        %v831 = vld [vmem:[%s6 + $0x20] sm:$0xff]
        %v832 = vld [vmem:[%s6 + $0x28] sm:$0xff]
        %v833 = vld [vmem:[%s6 + $0x30] sm:$0xff]
        %v834 = vld [vmem:[%s6 + $0x38] sm:$0xff]
        %836 = vset.pattern.permute.xlu0 0
        %837 = vperm.xlu0 %836, %v827
        %v838 = vpop.permute.xlu0 %837
        %841 = vset.pattern.permute.xlu0 0
        %842 = vperm.xlu0 %841, %v828
        %v843 = vpop.permute.xlu0 %842
        %846 = vset.pattern.permute.xlu0 0
        %847 = vperm.xlu0 %846, %v829
        %v848 = vpop.permute.xlu0 %847
        %851 = vset.pattern.permute.xlu0 0
        %852 = vperm.xlu0 %851, %v830
        %v853 = vpop.permute.xlu0 %852
        %856 = vset.pattern.permute.xlu0 0
        %857 = vperm.xlu0 %856, %v831
        %v858 = vpop.permute.xlu0 %857
        %861 = vset.pattern.permute.xlu0 0
        %862 = vperm.xlu0 %861, %v832
        %v863 = vpop.permute.xlu0 %862
        %866 = vset.pattern.permute.xlu0 0
        %867 = vperm.xlu0 %866, %v833
        %v868 = vpop.permute.xlu0 %867
        %871 = vset.pattern.permute.xlu0 0
        %872 = vperm.xlu0 %871, %v834
        %v873 = vpop.permute.xlu0 %872
        %v875 = vld [vmem:[%s8] sm:$0xff]
        %877 = vset.pattern.permute.xlu0 0
        %878 = vperm.xlu0 %877, %v875
        %v879 = vpop.permute.xlu0 %878
        %v881 = vld [vmem:[%s334] sm:$0xff]
        %v882 = vld [vmem:[%s334 + $0x8] sm:$0xff]
        %v883 = vld [vmem:[%s334 + $0x10] sm:$0xff]
        %v884 = vld [vmem:[%s334 + $0x20] sm:$0xff]
        %v885 = vld [vmem:[%s334 + $0x28] sm:$0xff]
        %v886 = vld [vmem:[%s334 + $0x30] sm:$0xff]
        %v887 = vld [vmem:[%s334 + $0x40] sm:$0xff]
        %v888 = vld [vmem:[%s334 + $0x48] sm:$0xff]
        %v889 = vld [vmem:[%s334 + $0x50] sm:$0xff]
        %v890 = vld [vmem:[%s334 + $0x60] sm:$0xff]
        %v891 = vld [vmem:[%s334 + $0x68] sm:$0xff]
        %v892 = vld [vmem:[%s334 + $0x70] sm:$0xff]
        %v893 = vld [vmem:[%s334 + $0x80] sm:$0xff]
        %v894 = vld [vmem:[%s334 + $0x88] sm:$0xff]
        %v895 = vld [vmem:[%s334 + $0x90] sm:$0xff]
        %v896 = vld [vmem:[%s334 + $0xa0] sm:$0xff]
        %v897 = vld [vmem:[%s334 + $0xa8] sm:$0xff]
        %v898 = vld [vmem:[%s334 + $0xb0] sm:$0xff]
        %v899 = vld [vmem:[%s334 + $0xc0] sm:$0xff]
        %v900 = vld [vmem:[%s334 + $0xc8] sm:$0xff]
        %v901 = vld [vmem:[%s334 + $0xd0] sm:$0xff]
        %v902 = vld [vmem:[%s334 + $0xe0] sm:$0xff]
        %v903 = vld [vmem:[%s334 + $0xe8] sm:$0xff]
        %v904 = vld [vmem:[%s334 + $0xf0] sm:$0xff]
        %v905 = vmul.f32 %v881, %v390
        %v906 = vmul.f32 %v882, %v390
        %v907 = vmul.f32 %v883, %v390
        %v908 = vmul.f32 %v884, %v395
        %v909 = vmul.f32 %v885, %v395
        %v910 = vmul.f32 %v886, %v395
        %v911 = vmul.f32 %v887, %v400
        %v912 = vmul.f32 %v888, %v400
        %v913 = vmul.f32 %v889, %v400
        %v914 = vmul.f32 %v890, %v405
        %v915 = vmul.f32 %v891, %v405
        %v916 = vmul.f32 %v892, %v405
        %v917 = vmul.f32 %v893, %v410
        %v918 = vmul.f32 %v894, %v410
        %v919 = vmul.f32 %v895, %v410
        %v920 = vmul.f32 %v896, %v415
        %v921 = vmul.f32 %v897, %v415
        %v922 = vmul.f32 %v898, %v415
        %v923 = vmul.f32 %v899, %v420
        %v924 = vmul.f32 %v900, %v420
        %v925 = vmul.f32 %v901, %v420
        %v926 = vmul.f32 %v902, %v425
        %v927 = vmul.f32 %v903, %v425
        %v928 = vmul.f32 %v904, %v425
        %v929 = vadd.f32 %v905, %v694
        %v930 = vadd.f32 %v906, %v694
        %v931 = vadd.f32 %v907, %v694
        %v932 = vadd.f32 %v908, %v699
        %v933 = vadd.f32 %v909, %v699
        %v934 = vadd.f32 %v910, %v699
        %v935 = vadd.f32 %v911, %v704
        %v936 = vadd.f32 %v912, %v704
        %v937 = vadd.f32 %v913, %v704
        %v938 = vadd.f32 %v914, %v709
        %v939 = vadd.f32 %v915, %v709
        %v940 = vadd.f32 %v916, %v709
        %v941 = vadd.f32 %v917, %v714
        %v942 = vadd.f32 %v918, %v714
        %v943 = vadd.f32 %v919, %v714
        %v944 = vadd.f32 %v920, %v719
        %v945 = vadd.f32 %v921, %v719
        %v946 = vadd.f32 %v922, %v719
        %v947 = vadd.f32 %v923, %v724
        %v948 = vadd.f32 %v924, %v724
        %v949 = vadd.f32 %v925, %v724
        %v950 = vadd.f32 %v926, %v729
        %v951 = vadd.f32 %v927, %v729
        %v952 = vadd.f32 %v928, %v729
        %v953 = vld [vmem:[%s334 + $0x18] sm:$0xff]
        %v954 = vld [vmem:[%s334 + $0x38] sm:$0xff]
        %v955 = vld [vmem:[%s334 + $0x58] sm:$0xff]
        %v956 = vld [vmem:[%s334 + $0x78] sm:$0xff]
        %v957 = vld [vmem:[%s334 + $0x98] sm:$0xff]
        %v958 = vld [vmem:[%s334 + $0xb8] sm:$0xff]
        %v959 = vld [vmem:[%s334 + $0xd8] sm:$0xff]
        %v960 = vld [vmem:[%s334 + $0xf8] sm:$0xff]
        %v961 = vmul.f32 %v881, %v429
        %v962 = vmul.f32 %v882, %v429
        %v963 = vmul.f32 %v883, %v429
        %v964 = vmul.f32 %v953, %v429
        %v965 = vmul.f32 %v884, %v433
        %v966 = vmul.f32 %v885, %v433
        %v967 = vmul.f32 %v886, %v433
        %v968 = vmul.f32 %v954, %v433
        %v969 = vmul.f32 %v887, %v437
        %v970 = vmul.f32 %v888, %v437
        %v971 = vmul.f32 %v889, %v437
        %v972 = vmul.f32 %v955, %v437
        %v973 = vmul.f32 %v890, %v441
        %v974 = vmul.f32 %v891, %v441
        %v975 = vmul.f32 %v892, %v441
        %v976 = vmul.f32 %v956, %v441
        %v977 = vmul.f32 %v893, %v445
        %v978 = vmul.f32 %v894, %v445
        %v979 = vmul.f32 %v895, %v445
        %v980 = vmul.f32 %v957, %v445
        %v981 = vmul.f32 %v896, %v449
        %v982 = vmul.f32 %v897, %v449
        %v983 = vmul.f32 %v898, %v449
        %v984 = vmul.f32 %v958, %v449
        %v985 = vmul.f32 %v899, %v453
        %v986 = vmul.f32 %v900, %v453
        %v987 = vmul.f32 %v901, %v453
        %v988 = vmul.f32 %v959, %v453
        %v989 = vmul.f32 %v902, %v457
        %v990 = vmul.f32 %v903, %v457
        %v991 = vmul.f32 %v904, %v457
        %v992 = vmul.f32 %v960, %v457
        %1025 = vrot.lane.b32.xlu0 %v961, 127
        %v1026 = vpop.permute.xlu0 %1025
        %1027 = vrot.lane.b32.xlu0 %v962, 127
        %v1028 = vpop.permute.xlu0 %1027
        %1029 = vrot.lane.b32.xlu0 %v963, 127
        %v1030 = vpop.permute.xlu0 %1029
        %1031 = vrot.lane.b32.xlu0 %v964, 127
        %v1032 = vpop.permute.xlu0 %1031
        %1033 = vrot.lane.b32.xlu0 %v965, 127
        %v1034 = vpop.permute.xlu0 %1033
        %1035 = vrot.lane.b32.xlu0 %v966, 127
        %v1036 = vpop.permute.xlu0 %1035
        %1037 = vrot.lane.b32.xlu0 %v967, 127
        %v1038 = vpop.permute.xlu0 %1037
        %1039 = vrot.lane.b32.xlu0 %v968, 127
        %v1040 = vpop.permute.xlu0 %1039
        %1041 = vrot.lane.b32.xlu0 %v969, 127
        %v1042 = vpop.permute.xlu0 %1041
        %1043 = vrot.lane.b32.xlu0 %v970, 127
        %v1044 = vpop.permute.xlu0 %1043
        %1045 = vrot.lane.b32.xlu0 %v971, 127
        %v1046 = vpop.permute.xlu0 %1045
        %1047 = vrot.lane.b32.xlu0 %v972, 127
        %v1048 = vpop.permute.xlu0 %1047
        %1049 = vrot.lane.b32.xlu0 %v973, 127
        %v1050 = vpop.permute.xlu0 %1049
        %1051 = vrot.lane.b32.xlu0 %v974, 127
        %v1052 = vpop.permute.xlu0 %1051
        %1053 = vrot.lane.b32.xlu0 %v975, 127
        %v1054 = vpop.permute.xlu0 %1053
        %1055 = vrot.lane.b32.xlu0 %v976, 127
        %v1056 = vpop.permute.xlu0 %1055
        %1057 = vrot.lane.b32.xlu0 %v977, 127
        %v1058 = vpop.permute.xlu0 %1057
        %1059 = vrot.lane.b32.xlu0 %v978, 127
        %v1060 = vpop.permute.xlu0 %1059
        %1061 = vrot.lane.b32.xlu0 %v979, 127
        %v1062 = vpop.permute.xlu0 %1061
        %1063 = vrot.lane.b32.xlu0 %v980, 127
        %v1064 = vpop.permute.xlu0 %1063
        %1065 = vrot.lane.b32.xlu0 %v981, 127
        %v1066 = vpop.permute.xlu0 %1065
        %1067 = vrot.lane.b32.xlu0 %v982, 127
        %v1068 = vpop.permute.xlu0 %1067
        %1069 = vrot.lane.b32.xlu0 %v983, 127
        %v1070 = vpop.permute.xlu0 %1069
        %1071 = vrot.lane.b32.xlu0 %v984, 127
        %v1072 = vpop.permute.xlu0 %1071
        %1073 = vrot.lane.b32.xlu0 %v985, 127
        %v1074 = vpop.permute.xlu0 %1073
        %1075 = vrot.lane.b32.xlu0 %v986, 127
        %v1076 = vpop.permute.xlu0 %1075
        %1077 = vrot.lane.b32.xlu0 %v987, 127
        %v1078 = vpop.permute.xlu0 %1077
        %1079 = vrot.lane.b32.xlu0 %v988, 127
        %v1080 = vpop.permute.xlu0 %1079
        %1081 = vrot.lane.b32.xlu0 %v989, 127
        %v1082 = vpop.permute.xlu0 %1081
        %1083 = vrot.lane.b32.xlu0 %v990, 127
        %v1084 = vpop.permute.xlu0 %1083
        %1085 = vrot.lane.b32.xlu0 %v991, 127
        %v1086 = vpop.permute.xlu0 %1085
        %1087 = vrot.lane.b32.xlu0 %v992, 127
        %v1088 = vpop.permute.xlu0 %1087
        %vm1089 = vcmask 1039360
        %v1090 = vsel %vm1089, %v1026, %v1028
        %v1091 = vsel %vm1089, %v1028, %v1030
        %v1092 = vsel %vm1089, %v1030, %v1032
        %v1093 = vsel %vm1089, %v1034, %v1036
        %v1094 = vsel %vm1089, %v1036, %v1038
        %v1095 = vsel %vm1089, %v1038, %v1040
        %v1096 = vsel %vm1089, %v1042, %v1044
        %v1097 = vsel %vm1089, %v1044, %v1046
        %v1098 = vsel %vm1089, %v1046, %v1048
        %v1099 = vsel %vm1089, %v1050, %v1052
        %v1100 = vsel %vm1089, %v1052, %v1054
        %v1101 = vsel %vm1089, %v1054, %v1056
        %v1102 = vsel %vm1089, %v1058, %v1060
        %v1103 = vsel %vm1089, %v1060, %v1062
        %v1104 = vsel %vm1089, %v1062, %v1064
        %v1105 = vsel %vm1089, %v1066, %v1068
        %v1106 = vsel %vm1089, %v1068, %v1070
        %v1107 = vsel %vm1089, %v1070, %v1072
        %v1108 = vsel %vm1089, %v1074, %v1076
        %v1109 = vsel %vm1089, %v1076, %v1078
        %v1110 = vsel %vm1089, %v1078, %v1080
        %v1111 = vsel %vm1089, %v1082, %v1084
        %v1112 = vsel %vm1089, %v1084, %v1086
        %v1113 = vsel %vm1089, %v1086, %v1088
        %v1138 = vadd.f32 %v929, %v1090
        %v1139 = vadd.f32 %v930, %v1091
        %v1140 = vadd.f32 %v931, %v1092
        %v1141 = vadd.f32 %v932, %v1093
        %v1142 = vadd.f32 %v933, %v1094
        %v1143 = vadd.f32 %v934, %v1095
        %v1144 = vadd.f32 %v935, %v1096
        %v1145 = vadd.f32 %v936, %v1097
        %v1146 = vadd.f32 %v937, %v1098
        %v1147 = vadd.f32 %v938, %v1099
        %v1148 = vadd.f32 %v939, %v1100
        %v1149 = vadd.f32 %v940, %v1101
        %v1150 = vadd.f32 %v941, %v1102
        %v1151 = vadd.f32 %v942, %v1103
        %v1152 = vadd.f32 %v943, %v1104
        %v1153 = vadd.f32 %v944, %v1105
        %v1154 = vadd.f32 %v945, %v1106
        %v1155 = vadd.f32 %v946, %v1107
        %v1156 = vadd.f32 %v947, %v1108
        %v1157 = vadd.f32 %v948, %v1109
        %v1158 = vadd.f32 %v949, %v1110
        %v1159 = vadd.f32 %v950, %v1111
        %v1160 = vadd.f32 %v951, %v1112
        %v1161 = vadd.f32 %v952, %v1113
        %v1162 = vmul.f32 %v881, %v461
        %v1163 = vmul.f32 %v882, %v461
        %v1164 = vmul.f32 %v883, %v461
        %v1165 = vmul.f32 %v953, %v461
        %v1166 = vmul.f32 %v884, %v465
        %v1167 = vmul.f32 %v885, %v465
        %v1168 = vmul.f32 %v886, %v465
        %v1169 = vmul.f32 %v954, %v465
        %v1170 = vmul.f32 %v887, %v469
        %v1171 = vmul.f32 %v888, %v469
        %v1172 = vmul.f32 %v889, %v469
        %v1173 = vmul.f32 %v955, %v469
        %v1174 = vmul.f32 %v890, %v473
        %v1175 = vmul.f32 %v891, %v473
        %v1176 = vmul.f32 %v892, %v473
        %v1177 = vmul.f32 %v956, %v473
        %v1178 = vmul.f32 %v893, %v477
        %v1179 = vmul.f32 %v894, %v477
        %v1180 = vmul.f32 %v895, %v477
        %v1181 = vmul.f32 %v957, %v477
        %v1182 = vmul.f32 %v896, %v481
        %v1183 = vmul.f32 %v897, %v481
        %v1184 = vmul.f32 %v898, %v481
        %v1185 = vmul.f32 %v958, %v481
        %v1186 = vmul.f32 %v899, %v485
        %v1187 = vmul.f32 %v900, %v485
        %v1188 = vmul.f32 %v901, %v485
        %v1189 = vmul.f32 %v959, %v485
        %v1190 = vmul.f32 %v902, %v489
        %v1191 = vmul.f32 %v903, %v489
        %v1192 = vmul.f32 %v904, %v489
        %v1193 = vmul.f32 %v960, %v489
        %1226 = vrot.lane.b32.xlu0 %v1162, 126
        %v1227 = vpop.permute.xlu0 %1226
        %1228 = vrot.lane.b32.xlu0 %v1163, 126
        %v1229 = vpop.permute.xlu0 %1228
        %1230 = vrot.lane.b32.xlu0 %v1164, 126
        %v1231 = vpop.permute.xlu0 %1230
        %1232 = vrot.lane.b32.xlu0 %v1165, 126
        %v1233 = vpop.permute.xlu0 %1232
        %1234 = vrot.lane.b32.xlu0 %v1166, 126
        %v1235 = vpop.permute.xlu0 %1234
        %1236 = vrot.lane.b32.xlu0 %v1167, 126
        %v1237 = vpop.permute.xlu0 %1236
        %1238 = vrot.lane.b32.xlu0 %v1168, 126
        %v1239 = vpop.permute.xlu0 %1238
        %1240 = vrot.lane.b32.xlu0 %v1169, 126
        %v1241 = vpop.permute.xlu0 %1240
        %1242 = vrot.lane.b32.xlu0 %v1170, 126
        %v1243 = vpop.permute.xlu0 %1242
        %1244 = vrot.lane.b32.xlu0 %v1171, 126
        %v1245 = vpop.permute.xlu0 %1244
        %1246 = vrot.lane.b32.xlu0 %v1172, 126
        %v1247 = vpop.permute.xlu0 %1246
        %1248 = vrot.lane.b32.xlu0 %v1173, 126
        %v1249 = vpop.permute.xlu0 %1248
        %1250 = vrot.lane.b32.xlu0 %v1174, 126
        %v1251 = vpop.permute.xlu0 %1250
        %1252 = vrot.lane.b32.xlu0 %v1175, 126
        %v1253 = vpop.permute.xlu0 %1252
        %1254 = vrot.lane.b32.xlu0 %v1176, 126
        %v1255 = vpop.permute.xlu0 %1254
        %1256 = vrot.lane.b32.xlu0 %v1177, 126
        %v1257 = vpop.permute.xlu0 %1256
        %1258 = vrot.lane.b32.xlu0 %v1178, 126
        %v1259 = vpop.permute.xlu0 %1258
        %1260 = vrot.lane.b32.xlu0 %v1179, 126
        %v1261 = vpop.permute.xlu0 %1260
        %1262 = vrot.lane.b32.xlu0 %v1180, 126
        %v1263 = vpop.permute.xlu0 %1262
        %1264 = vrot.lane.b32.xlu0 %v1181, 126
        %v1265 = vpop.permute.xlu0 %1264
        %1266 = vrot.lane.b32.xlu0 %v1182, 126
        %v1267 = vpop.permute.xlu0 %1266
        %1268 = vrot.lane.b32.xlu0 %v1183, 126
        %v1269 = vpop.permute.xlu0 %1268
        %1270 = vrot.lane.b32.xlu0 %v1184, 126
        %v1271 = vpop.permute.xlu0 %1270
        %1272 = vrot.lane.b32.xlu0 %v1185, 126
        %v1273 = vpop.permute.xlu0 %1272
        %1274 = vrot.lane.b32.xlu0 %v1186, 126
        %v1275 = vpop.permute.xlu0 %1274
        %1276 = vrot.lane.b32.xlu0 %v1187, 126
        %v1277 = vpop.permute.xlu0 %1276
        %1278 = vrot.lane.b32.xlu0 %v1188, 126
        %v1279 = vpop.permute.xlu0 %1278
        %1280 = vrot.lane.b32.xlu0 %v1189, 126
        %v1281 = vpop.permute.xlu0 %1280
        %1282 = vrot.lane.b32.xlu0 %v1190, 126
        %v1283 = vpop.permute.xlu0 %1282
        %1284 = vrot.lane.b32.xlu0 %v1191, 126
        %v1285 = vpop.permute.xlu0 %1284
        %1286 = vrot.lane.b32.xlu0 %v1192, 126
        %v1287 = vpop.permute.xlu0 %1286
        %1288 = vrot.lane.b32.xlu0 %v1193, 126
        %v1289 = vpop.permute.xlu0 %1288
        %vm1290 = vcmask 1031168
        %v1291 = vsel %vm1290, %v1227, %v1229
        %v1292 = vsel %vm1290, %v1229, %v1231
        %v1293 = vsel %vm1290, %v1231, %v1233
        %v1294 = vsel %vm1290, %v1235, %v1237
        %v1295 = vsel %vm1290, %v1237, %v1239
        %v1296 = vsel %vm1290, %v1239, %v1241
        %v1297 = vsel %vm1290, %v1243, %v1245
        %v1298 = vsel %vm1290, %v1245, %v1247
        %v1299 = vsel %vm1290, %v1247, %v1249
        %v1300 = vsel %vm1290, %v1251, %v1253
        %v1301 = vsel %vm1290, %v1253, %v1255
        %v1302 = vsel %vm1290, %v1255, %v1257
        %v1303 = vsel %vm1290, %v1259, %v1261
        %v1304 = vsel %vm1290, %v1261, %v1263
        %v1305 = vsel %vm1290, %v1263, %v1265
        %v1306 = vsel %vm1290, %v1267, %v1269
        %v1307 = vsel %vm1290, %v1269, %v1271
        %v1308 = vsel %vm1290, %v1271, %v1273
        %v1309 = vsel %vm1290, %v1275, %v1277
        %v1310 = vsel %vm1290, %v1277, %v1279
        %v1311 = vsel %vm1290, %v1279, %v1281
        %v1312 = vsel %vm1290, %v1283, %v1285
        %v1313 = vsel %vm1290, %v1285, %v1287
        %v1314 = vsel %vm1290, %v1287, %v1289
        %v1339 = vadd.f32 %v1138, %v1291
        %v1340 = vadd.f32 %v1139, %v1292
        %v1341 = vadd.f32 %v1140, %v1293
        %v1342 = vadd.f32 %v1141, %v1294
        %v1343 = vadd.f32 %v1142, %v1295
        %v1344 = vadd.f32 %v1143, %v1296
        %v1345 = vadd.f32 %v1144, %v1297
        %v1346 = vadd.f32 %v1145, %v1298
        %v1347 = vadd.f32 %v1146, %v1299
        %v1348 = vadd.f32 %v1147, %v1300
        %v1349 = vadd.f32 %v1148, %v1301
        %v1350 = vadd.f32 %v1149, %v1302
        %v1351 = vadd.f32 %v1150, %v1303
        %v1352 = vadd.f32 %v1151, %v1304
        %v1353 = vadd.f32 %v1152, %v1305
        %v1354 = vadd.f32 %v1153, %v1306
        %v1355 = vadd.f32 %v1154, %v1307
        %v1356 = vadd.f32 %v1155, %v1308
        %v1357 = vadd.f32 %v1156, %v1309
        %v1358 = vadd.f32 %v1157, %v1310
        %v1359 = vadd.f32 %v1158, %v1311
        %v1360 = vadd.f32 %v1159, %v1312
        %v1361 = vadd.f32 %v1160, %v1313
        %v1362 = vadd.f32 %v1161, %v1314
        %v1363 = vmul.f32 %v881, %v493
        %v1364 = vmul.f32 %v882, %v493
        %v1365 = vmul.f32 %v883, %v493
        %v1366 = vmul.f32 %v953, %v493
        %v1367 = vmul.f32 %v884, %v497
        %v1368 = vmul.f32 %v885, %v497
        %v1369 = vmul.f32 %v886, %v497
        %v1370 = vmul.f32 %v954, %v497
        %v1371 = vmul.f32 %v887, %v501
        %v1372 = vmul.f32 %v888, %v501
        %v1373 = vmul.f32 %v889, %v501
        %v1374 = vmul.f32 %v955, %v501
        %v1375 = vmul.f32 %v890, %v505
        %v1376 = vmul.f32 %v891, %v505
        %v1377 = vmul.f32 %v892, %v505
        %v1378 = vmul.f32 %v956, %v505
        %v1379 = vmul.f32 %v893, %v509
        %v1380 = vmul.f32 %v894, %v509
        %v1381 = vmul.f32 %v895, %v509
        %v1382 = vmul.f32 %v957, %v509
        %v1383 = vmul.f32 %v896, %v513
        %v1384 = vmul.f32 %v897, %v513
        %v1385 = vmul.f32 %v898, %v513
        %v1386 = vmul.f32 %v958, %v513
        %v1387 = vmul.f32 %v899, %v517
        %v1388 = vmul.f32 %v900, %v517
        %v1389 = vmul.f32 %v901, %v517
        %v1390 = vmul.f32 %v959, %v517
        %v1391 = vmul.f32 %v902, %v521
        %v1392 = vmul.f32 %v903, %v521
        %v1393 = vmul.f32 %v904, %v521
        %v1394 = vmul.f32 %v960, %v521
        %1427 = vrot.lane.b32.xlu0 %v1363, 110
        %v1428 = vpop.permute.xlu0 %1427
        %1429 = vrot.lane.b32.xlu0 %v1364, 110
        %v1430 = vpop.permute.xlu0 %1429
        %1431 = vrot.lane.b32.xlu0 %v1365, 110
        %v1432 = vpop.permute.xlu0 %1431
        %1433 = vrot.lane.b32.xlu0 %v1366, 110
        %v1434 = vpop.permute.xlu0 %1433
        %1435 = vrot.lane.b32.xlu0 %v1367, 110
        %v1436 = vpop.permute.xlu0 %1435
        %1437 = vrot.lane.b32.xlu0 %v1368, 110
        %v1438 = vpop.permute.xlu0 %1437
        %1439 = vrot.lane.b32.xlu0 %v1369, 110
        %v1440 = vpop.permute.xlu0 %1439
        %1441 = vrot.lane.b32.xlu0 %v1370, 110
        %v1442 = vpop.permute.xlu0 %1441
        %1443 = vrot.lane.b32.xlu0 %v1371, 110
        %v1444 = vpop.permute.xlu0 %1443
        %1445 = vrot.lane.b32.xlu0 %v1372, 110
        %v1446 = vpop.permute.xlu0 %1445
        %1447 = vrot.lane.b32.xlu0 %v1373, 110
        %v1448 = vpop.permute.xlu0 %1447
        %1449 = vrot.lane.b32.xlu0 %v1374, 110
        %v1450 = vpop.permute.xlu0 %1449
        %1451 = vrot.lane.b32.xlu0 %v1375, 110
        %v1452 = vpop.permute.xlu0 %1451
        %1453 = vrot.lane.b32.xlu0 %v1376, 110
        %v1454 = vpop.permute.xlu0 %1453
        %1455 = vrot.lane.b32.xlu0 %v1377, 110
        %v1456 = vpop.permute.xlu0 %1455
        %1457 = vrot.lane.b32.xlu0 %v1378, 110
        %v1458 = vpop.permute.xlu0 %1457
        %1459 = vrot.lane.b32.xlu0 %v1379, 110
        %v1460 = vpop.permute.xlu0 %1459
        %1461 = vrot.lane.b32.xlu0 %v1380, 110
        %v1462 = vpop.permute.xlu0 %1461
        %1463 = vrot.lane.b32.xlu0 %v1381, 110
        %v1464 = vpop.permute.xlu0 %1463
        %1465 = vrot.lane.b32.xlu0 %v1382, 110
        %v1466 = vpop.permute.xlu0 %1465
        %1467 = vrot.lane.b32.xlu0 %v1383, 110
        %v1468 = vpop.permute.xlu0 %1467
        %1469 = vrot.lane.b32.xlu0 %v1384, 110
        %v1470 = vpop.permute.xlu0 %1469
        %1471 = vrot.lane.b32.xlu0 %v1385, 110
        %v1472 = vpop.permute.xlu0 %1471
        %1473 = vrot.lane.b32.xlu0 %v1386, 110
        %v1474 = vpop.permute.xlu0 %1473
        %1475 = vrot.lane.b32.xlu0 %v1387, 110
        %v1476 = vpop.permute.xlu0 %1475
        %1477 = vrot.lane.b32.xlu0 %v1388, 110
        %v1478 = vpop.permute.xlu0 %1477
        %1479 = vrot.lane.b32.xlu0 %v1389, 110
        %v1480 = vpop.permute.xlu0 %1479
        %1481 = vrot.lane.b32.xlu0 %v1390, 110
        %v1482 = vpop.permute.xlu0 %1481
        %1483 = vrot.lane.b32.xlu0 %v1391, 110
        %v1484 = vpop.permute.xlu0 %1483
        %1485 = vrot.lane.b32.xlu0 %v1392, 110
        %v1486 = vpop.permute.xlu0 %1485
        %1487 = vrot.lane.b32.xlu0 %v1393, 110
        %v1488 = vpop.permute.xlu0 %1487
        %1489 = vrot.lane.b32.xlu0 %v1394, 110
        %v1490 = vpop.permute.xlu0 %1489
        %vm1491 = vcmask 900096
        %v1492 = vsel %vm1491, %v1428, %v1430
        %v1493 = vsel %vm1491, %v1430, %v1432
        %v1494 = vsel %vm1491, %v1432, %v1434
        %v1495 = vsel %vm1491, %v1436, %v1438
        %v1496 = vsel %vm1491, %v1438, %v1440
        %v1497 = vsel %vm1491, %v1440, %v1442
        %v1498 = vsel %vm1491, %v1444, %v1446
        %v1499 = vsel %vm1491, %v1446, %v1448
        %v1500 = vsel %vm1491, %v1448, %v1450
        %v1501 = vsel %vm1491, %v1452, %v1454
        %v1502 = vsel %vm1491, %v1454, %v1456
        %v1503 = vsel %vm1491, %v1456, %v1458
        %v1504 = vsel %vm1491, %v1460, %v1462
        %v1505 = vsel %vm1491, %v1462, %v1464
        %v1506 = vsel %vm1491, %v1464, %v1466
        %v1507 = vsel %vm1491, %v1468, %v1470
        %v1508 = vsel %vm1491, %v1470, %v1472
        %v1509 = vsel %vm1491, %v1472, %v1474
        %v1510 = vsel %vm1491, %v1476, %v1478
        %v1511 = vsel %vm1491, %v1478, %v1480
        %v1512 = vsel %vm1491, %v1480, %v1482
        %v1513 = vsel %vm1491, %v1484, %v1486
        %v1514 = vsel %vm1491, %v1486, %v1488
        %v1515 = vsel %vm1491, %v1488, %v1490
        %v1540 = vadd.f32 %v1339, %v1492
        %v1541 = vadd.f32 %v1340, %v1493
        %v1542 = vadd.f32 %v1341, %v1494
        %v1543 = vadd.f32 %v1342, %v1495
        %v1544 = vadd.f32 %v1343, %v1496
        %v1545 = vadd.f32 %v1344, %v1497
        %v1546 = vadd.f32 %v1345, %v1498
        %v1547 = vadd.f32 %v1346, %v1499
        %v1548 = vadd.f32 %v1347, %v1500
        %v1549 = vadd.f32 %v1348, %v1501
        %v1550 = vadd.f32 %v1349, %v1502
        %v1551 = vadd.f32 %v1350, %v1503
        %v1552 = vadd.f32 %v1351, %v1504
        %v1553 = vadd.f32 %v1352, %v1505
        %v1554 = vadd.f32 %v1353, %v1506
        %v1555 = vadd.f32 %v1354, %v1507
        %v1556 = vadd.f32 %v1355, %v1508
        %v1557 = vadd.f32 %v1356, %v1509
        %v1558 = vadd.f32 %v1357, %v1510
        %v1559 = vadd.f32 %v1358, %v1511
        %v1560 = vadd.f32 %v1359, %v1512
        %v1561 = vadd.f32 %v1360, %v1513
        %v1562 = vadd.f32 %v1361, %v1514
        %v1563 = vadd.f32 %v1362, %v1515
        %v1564 = vmul.f32 %v881, %v525
        %v1565 = vmul.f32 %v882, %v525
        %v1566 = vmul.f32 %v883, %v525
        %v1567 = vmul.f32 %v953, %v525
        %v1568 = vmul.f32 %v884, %v529
        %v1569 = vmul.f32 %v885, %v529
        %v1570 = vmul.f32 %v886, %v529
        %v1571 = vmul.f32 %v954, %v529
        %v1572 = vmul.f32 %v887, %v533
        %v1573 = vmul.f32 %v888, %v533
        %v1574 = vmul.f32 %v889, %v533
        %v1575 = vmul.f32 %v955, %v533
        %v1576 = vmul.f32 %v890, %v537
        %v1577 = vmul.f32 %v891, %v537
        %v1578 = vmul.f32 %v892, %v537
        %v1579 = vmul.f32 %v956, %v537
        %v1580 = vmul.f32 %v893, %v541
        %v1581 = vmul.f32 %v894, %v541
        %v1582 = vmul.f32 %v895, %v541
        %v1583 = vmul.f32 %v957, %v541
        %v1584 = vmul.f32 %v896, %v545
        %v1585 = vmul.f32 %v897, %v545
        %v1586 = vmul.f32 %v898, %v545
        %v1587 = vmul.f32 %v958, %v545
        %v1588 = vmul.f32 %v899, %v549
        %v1589 = vmul.f32 %v900, %v549
        %v1590 = vmul.f32 %v901, %v549
        %v1591 = vmul.f32 %v959, %v549
        %v1592 = vmul.f32 %v902, %v553
        %v1593 = vmul.f32 %v903, %v553
        %v1594 = vmul.f32 %v904, %v553
        %v1595 = vmul.f32 %v960, %v553
        %1628 = vrot.lane.b32.xlu0 %v1564, 109
        %v1629 = vpop.permute.xlu0 %1628
        %1630 = vrot.lane.b32.xlu0 %v1565, 109
        %v1631 = vpop.permute.xlu0 %1630
        %1632 = vrot.lane.b32.xlu0 %v1566, 109
        %v1633 = vpop.permute.xlu0 %1632
        %1634 = vrot.lane.b32.xlu0 %v1567, 109
        %v1635 = vpop.permute.xlu0 %1634
        %1636 = vrot.lane.b32.xlu0 %v1568, 109
        %v1637 = vpop.permute.xlu0 %1636
        %1638 = vrot.lane.b32.xlu0 %v1569, 109
        %v1639 = vpop.permute.xlu0 %1638
        %1640 = vrot.lane.b32.xlu0 %v1570, 109
        %v1641 = vpop.permute.xlu0 %1640
        %1642 = vrot.lane.b32.xlu0 %v1571, 109
        %v1643 = vpop.permute.xlu0 %1642
        %1644 = vrot.lane.b32.xlu0 %v1572, 109
        %v1645 = vpop.permute.xlu0 %1644
        %1646 = vrot.lane.b32.xlu0 %v1573, 109
        %v1647 = vpop.permute.xlu0 %1646
        %1648 = vrot.lane.b32.xlu0 %v1574, 109
        %v1649 = vpop.permute.xlu0 %1648
        %1650 = vrot.lane.b32.xlu0 %v1575, 109
        %v1651 = vpop.permute.xlu0 %1650
        %1652 = vrot.lane.b32.xlu0 %v1576, 109
        %v1653 = vpop.permute.xlu0 %1652
        %1654 = vrot.lane.b32.xlu0 %v1577, 109
        %v1655 = vpop.permute.xlu0 %1654
        %1656 = vrot.lane.b32.xlu0 %v1578, 109
        %v1657 = vpop.permute.xlu0 %1656
        %1658 = vrot.lane.b32.xlu0 %v1579, 109
        %v1659 = vpop.permute.xlu0 %1658
        %1660 = vrot.lane.b32.xlu0 %v1580, 109
        %v1661 = vpop.permute.xlu0 %1660
        %1662 = vrot.lane.b32.xlu0 %v1581, 109
        %v1663 = vpop.permute.xlu0 %1662
        %1664 = vrot.lane.b32.xlu0 %v1582, 109
        %v1665 = vpop.permute.xlu0 %1664
        %1666 = vrot.lane.b32.xlu0 %v1583, 109
        %v1667 = vpop.permute.xlu0 %1666
        %1668 = vrot.lane.b32.xlu0 %v1584, 109
        %v1669 = vpop.permute.xlu0 %1668
        %1670 = vrot.lane.b32.xlu0 %v1585, 109
        %v1671 = vpop.permute.xlu0 %1670
        %1672 = vrot.lane.b32.xlu0 %v1586, 109
        %v1673 = vpop.permute.xlu0 %1672
        %1674 = vrot.lane.b32.xlu0 %v1587, 109
        %v1675 = vpop.permute.xlu0 %1674
        %1676 = vrot.lane.b32.xlu0 %v1588, 109
        %v1677 = vpop.permute.xlu0 %1676
        %1678 = vrot.lane.b32.xlu0 %v1589, 109
        %v1679 = vpop.permute.xlu0 %1678
        %1680 = vrot.lane.b32.xlu0 %v1590, 109
        %v1681 = vpop.permute.xlu0 %1680
        %1682 = vrot.lane.b32.xlu0 %v1591, 109
        %v1683 = vpop.permute.xlu0 %1682
        %1684 = vrot.lane.b32.xlu0 %v1592, 109
        %v1685 = vpop.permute.xlu0 %1684
        %1686 = vrot.lane.b32.xlu0 %v1593, 109
        %v1687 = vpop.permute.xlu0 %1686
        %1688 = vrot.lane.b32.xlu0 %v1594, 109
        %v1689 = vpop.permute.xlu0 %1688
        %1690 = vrot.lane.b32.xlu0 %v1595, 109
        %v1691 = vpop.permute.xlu0 %1690
        %vm1692 = vcmask 891904
        %v1693 = vsel %vm1692, %v1629, %v1631
        %v1694 = vsel %vm1692, %v1631, %v1633
        %v1695 = vsel %vm1692, %v1633, %v1635
        %v1696 = vsel %vm1692, %v1637, %v1639
        %v1697 = vsel %vm1692, %v1639, %v1641
        %v1698 = vsel %vm1692, %v1641, %v1643
        %v1699 = vsel %vm1692, %v1645, %v1647
        %v1700 = vsel %vm1692, %v1647, %v1649
        %v1701 = vsel %vm1692, %v1649, %v1651
        %v1702 = vsel %vm1692, %v1653, %v1655
        %v1703 = vsel %vm1692, %v1655, %v1657
        %v1704 = vsel %vm1692, %v1657, %v1659
        %v1705 = vsel %vm1692, %v1661, %v1663
        %v1706 = vsel %vm1692, %v1663, %v1665
        %v1707 = vsel %vm1692, %v1665, %v1667
        %v1708 = vsel %vm1692, %v1669, %v1671
        %v1709 = vsel %vm1692, %v1671, %v1673
        %v1710 = vsel %vm1692, %v1673, %v1675
        %v1711 = vsel %vm1692, %v1677, %v1679
        %v1712 = vsel %vm1692, %v1679, %v1681
        %v1713 = vsel %vm1692, %v1681, %v1683
        %v1714 = vsel %vm1692, %v1685, %v1687
        %v1715 = vsel %vm1692, %v1687, %v1689
        %v1716 = vsel %vm1692, %v1689, %v1691
        %v1741 = vadd.f32 %v1540, %v1693
        %v1742 = vadd.f32 %v1541, %v1694
        %v1743 = vadd.f32 %v1542, %v1695
        %v1744 = vadd.f32 %v1543, %v1696
        %v1745 = vadd.f32 %v1544, %v1697
        %v1746 = vadd.f32 %v1545, %v1698
        %v1747 = vadd.f32 %v1546, %v1699
        %v1748 = vadd.f32 %v1547, %v1700
        %v1749 = vadd.f32 %v1548, %v1701
        %v1750 = vadd.f32 %v1549, %v1702
        %v1751 = vadd.f32 %v1550, %v1703
        %v1752 = vadd.f32 %v1551, %v1704
        %v1753 = vadd.f32 %v1552, %v1705
        %v1754 = vadd.f32 %v1553, %v1706
        %v1755 = vadd.f32 %v1554, %v1707
        %v1756 = vadd.f32 %v1555, %v1708
        %v1757 = vadd.f32 %v1556, %v1709
        %v1758 = vadd.f32 %v1557, %v1710
        %v1759 = vadd.f32 %v1558, %v1711
        %v1760 = vadd.f32 %v1559, %v1712
        %v1761 = vadd.f32 %v1560, %v1713
        %v1762 = vadd.f32 %v1561, %v1714
        %v1763 = vadd.f32 %v1562, %v1715
        %v1764 = vadd.f32 %v1563, %v1716
        %v1765 = vmul.f32 %v881, %v557
        %v1766 = vmul.f32 %v882, %v557
        %v1767 = vmul.f32 %v883, %v557
        %v1768 = vmul.f32 %v953, %v557
        %v1769 = vmul.f32 %v884, %v561
        %v1770 = vmul.f32 %v885, %v561
        %v1771 = vmul.f32 %v886, %v561
        %v1772 = vmul.f32 %v954, %v561
        %v1773 = vmul.f32 %v887, %v565
        %v1774 = vmul.f32 %v888, %v565
        %v1775 = vmul.f32 %v889, %v565
        %v1776 = vmul.f32 %v955, %v565
        %v1777 = vmul.f32 %v890, %v569
        %v1778 = vmul.f32 %v891, %v569
        %v1779 = vmul.f32 %v892, %v569
        %v1780 = vmul.f32 %v956, %v569
        %v1781 = vmul.f32 %v893, %v573
        %v1782 = vmul.f32 %v894, %v573
        %v1783 = vmul.f32 %v895, %v573
        %v1784 = vmul.f32 %v957, %v573
        %v1785 = vmul.f32 %v896, %v577
        %v1786 = vmul.f32 %v897, %v577
        %v1787 = vmul.f32 %v898, %v577
        %v1788 = vmul.f32 %v958, %v577
        %v1789 = vmul.f32 %v899, %v581
        %v1790 = vmul.f32 %v900, %v581
        %v1791 = vmul.f32 %v901, %v581
        %v1792 = vmul.f32 %v959, %v581
        %v1793 = vmul.f32 %v902, %v585
        %v1794 = vmul.f32 %v903, %v585
        %v1795 = vmul.f32 %v904, %v585
        %v1796 = vmul.f32 %v960, %v585
        %1829 = vrot.lane.b32.xlu0 %v1765, 108
        %v1830 = vpop.permute.xlu0 %1829
        %1831 = vrot.lane.b32.xlu0 %v1766, 108
        %v1832 = vpop.permute.xlu0 %1831
        %1833 = vrot.lane.b32.xlu0 %v1767, 108
        %v1834 = vpop.permute.xlu0 %1833
        %1835 = vrot.lane.b32.xlu0 %v1768, 108
        %v1836 = vpop.permute.xlu0 %1835
        %1837 = vrot.lane.b32.xlu0 %v1769, 108
        %v1838 = vpop.permute.xlu0 %1837
        %1839 = vrot.lane.b32.xlu0 %v1770, 108
        %v1840 = vpop.permute.xlu0 %1839
        %1841 = vrot.lane.b32.xlu0 %v1771, 108
        %v1842 = vpop.permute.xlu0 %1841
        %1843 = vrot.lane.b32.xlu0 %v1772, 108
        %v1844 = vpop.permute.xlu0 %1843
        %1845 = vrot.lane.b32.xlu0 %v1773, 108
        %v1846 = vpop.permute.xlu0 %1845
        %1847 = vrot.lane.b32.xlu0 %v1774, 108
        %v1848 = vpop.permute.xlu0 %1847
        %1849 = vrot.lane.b32.xlu0 %v1775, 108
        %v1850 = vpop.permute.xlu0 %1849
        %1851 = vrot.lane.b32.xlu0 %v1776, 108
        %v1852 = vpop.permute.xlu0 %1851
        %1853 = vrot.lane.b32.xlu0 %v1777, 108
        %v1854 = vpop.permute.xlu0 %1853
        %1855 = vrot.lane.b32.xlu0 %v1778, 108
        %v1856 = vpop.permute.xlu0 %1855
        %1857 = vrot.lane.b32.xlu0 %v1779, 108
        %v1858 = vpop.permute.xlu0 %1857
        %1859 = vrot.lane.b32.xlu0 %v1780, 108
        %v1860 = vpop.permute.xlu0 %1859
        %1861 = vrot.lane.b32.xlu0 %v1781, 108
        %v1862 = vpop.permute.xlu0 %1861
        %1863 = vrot.lane.b32.xlu0 %v1782, 108
        %v1864 = vpop.permute.xlu0 %1863
        %1865 = vrot.lane.b32.xlu0 %v1783, 108
        %v1866 = vpop.permute.xlu0 %1865
        %1867 = vrot.lane.b32.xlu0 %v1784, 108
        %v1868 = vpop.permute.xlu0 %1867
        %1869 = vrot.lane.b32.xlu0 %v1785, 108
        %v1870 = vpop.permute.xlu0 %1869
        %1871 = vrot.lane.b32.xlu0 %v1786, 108
        %v1872 = vpop.permute.xlu0 %1871
        %1873 = vrot.lane.b32.xlu0 %v1787, 108
        %v1874 = vpop.permute.xlu0 %1873
        %1875 = vrot.lane.b32.xlu0 %v1788, 108
        %v1876 = vpop.permute.xlu0 %1875
        %1877 = vrot.lane.b32.xlu0 %v1789, 108
        %v1878 = vpop.permute.xlu0 %1877
        %1879 = vrot.lane.b32.xlu0 %v1790, 108
        %v1880 = vpop.permute.xlu0 %1879
        %1881 = vrot.lane.b32.xlu0 %v1791, 108
        %v1882 = vpop.permute.xlu0 %1881
        %1883 = vrot.lane.b32.xlu0 %v1792, 108
        %v1884 = vpop.permute.xlu0 %1883
        %1885 = vrot.lane.b32.xlu0 %v1793, 108
        %v1886 = vpop.permute.xlu0 %1885
        %1887 = vrot.lane.b32.xlu0 %v1794, 108
        %v1888 = vpop.permute.xlu0 %1887
        %1889 = vrot.lane.b32.xlu0 %v1795, 108
        %v1890 = vpop.permute.xlu0 %1889
        %1891 = vrot.lane.b32.xlu0 %v1796, 108
        %v1892 = vpop.permute.xlu0 %1891
        %vm1893 = vcmask 883712
        %v1894 = vsel %vm1893, %v1830, %v1832
        %v1895 = vsel %vm1893, %v1832, %v1834
        %v1896 = vsel %vm1893, %v1834, %v1836
        %v1897 = vsel %vm1893, %v1838, %v1840
        %v1898 = vsel %vm1893, %v1840, %v1842
        %v1899 = vsel %vm1893, %v1842, %v1844
        %v1900 = vsel %vm1893, %v1846, %v1848
        %v1901 = vsel %vm1893, %v1848, %v1850
        %v1902 = vsel %vm1893, %v1850, %v1852
        %v1903 = vsel %vm1893, %v1854, %v1856
        %v1904 = vsel %vm1893, %v1856, %v1858
        %v1905 = vsel %vm1893, %v1858, %v1860
        %v1906 = vsel %vm1893, %v1862, %v1864
        %v1907 = vsel %vm1893, %v1864, %v1866
        %v1908 = vsel %vm1893, %v1866, %v1868
        %v1909 = vsel %vm1893, %v1870, %v1872
        %v1910 = vsel %vm1893, %v1872, %v1874
        %v1911 = vsel %vm1893, %v1874, %v1876
        %v1912 = vsel %vm1893, %v1878, %v1880
        %v1913 = vsel %vm1893, %v1880, %v1882
        %v1914 = vsel %vm1893, %v1882, %v1884
        %v1915 = vsel %vm1893, %v1886, %v1888
        %v1916 = vsel %vm1893, %v1888, %v1890
        %v1917 = vsel %vm1893, %v1890, %v1892
        %v1942 = vadd.f32 %v1741, %v1894
        %v1943 = vadd.f32 %v1742, %v1895
        %v1944 = vadd.f32 %v1743, %v1896
        %v1945 = vadd.f32 %v1744, %v1897
        %v1946 = vadd.f32 %v1745, %v1898
        %v1947 = vadd.f32 %v1746, %v1899
        %v1948 = vadd.f32 %v1747, %v1900
        %v1949 = vadd.f32 %v1748, %v1901
        %v1950 = vadd.f32 %v1749, %v1902
        %v1951 = vadd.f32 %v1750, %v1903
        %v1952 = vadd.f32 %v1751, %v1904
        %v1953 = vadd.f32 %v1752, %v1905
        %v1954 = vadd.f32 %v1753, %v1906
        %v1955 = vadd.f32 %v1754, %v1907
        %v1956 = vadd.f32 %v1755, %v1908
        %v1957 = vadd.f32 %v1756, %v1909
        %v1958 = vadd.f32 %v1757, %v1910
        %v1959 = vadd.f32 %v1758, %v1911
        %v1960 = vadd.f32 %v1759, %v1912
        %v1961 = vadd.f32 %v1760, %v1913
        %v1962 = vadd.f32 %v1761, %v1914
        %v1963 = vadd.f32 %v1762, %v1915
        %v1964 = vadd.f32 %v1763, %v1916
        %v1965 = vadd.f32 %v1764, %v1917
        %v1966 = vmul.f32 %v881, %v589
        %v1967 = vmul.f32 %v882, %v589
        %v1968 = vmul.f32 %v883, %v589
        %v1969 = vmul.f32 %v953, %v589
        %v1970 = vmul.f32 %v884, %v593
        %v1971 = vmul.f32 %v885, %v593
        %v1972 = vmul.f32 %v886, %v593
        %v1973 = vmul.f32 %v954, %v593
        %v1974 = vmul.f32 %v887, %v597
        %v1975 = vmul.f32 %v888, %v597
        %v1976 = vmul.f32 %v889, %v597
        %v1977 = vmul.f32 %v955, %v597
        %v1978 = vmul.f32 %v890, %v601
        %v1979 = vmul.f32 %v891, %v601
        %v1980 = vmul.f32 %v892, %v601
        %v1981 = vmul.f32 %v956, %v601
        %v1982 = vmul.f32 %v893, %v605
        %v1983 = vmul.f32 %v894, %v605
        %v1984 = vmul.f32 %v895, %v605
        %v1985 = vmul.f32 %v957, %v605
        %v1986 = vmul.f32 %v896, %v609
        %v1987 = vmul.f32 %v897, %v609
        %v1988 = vmul.f32 %v898, %v609
        %v1989 = vmul.f32 %v958, %v609
        %v1990 = vmul.f32 %v899, %v613
        %v1991 = vmul.f32 %v900, %v613
        %v1992 = vmul.f32 %v901, %v613
        %v1993 = vmul.f32 %v959, %v613
        %v1994 = vmul.f32 %v902, %v617
        %v1995 = vmul.f32 %v903, %v617
        %v1996 = vmul.f32 %v904, %v617
        %v1997 = vmul.f32 %v960, %v617
        %2030 = vrot.lane.b32.xlu0 %v1966, 92
        %v2031 = vpop.permute.xlu0 %2030
        %2032 = vrot.lane.b32.xlu0 %v1967, 92
        %v2033 = vpop.permute.xlu0 %2032
        %2034 = vrot.lane.b32.xlu0 %v1968, 92
        %v2035 = vpop.permute.xlu0 %2034
        %2036 = vrot.lane.b32.xlu0 %v1969, 92
        %v2037 = vpop.permute.xlu0 %2036
        %2038 = vrot.lane.b32.xlu0 %v1970, 92
        %v2039 = vpop.permute.xlu0 %2038
        %2040 = vrot.lane.b32.xlu0 %v1971, 92
        %v2041 = vpop.permute.xlu0 %2040
        %2042 = vrot.lane.b32.xlu0 %v1972, 92
        %v2043 = vpop.permute.xlu0 %2042
        %2044 = vrot.lane.b32.xlu0 %v1973, 92
        %v2045 = vpop.permute.xlu0 %2044
        %2046 = vrot.lane.b32.xlu0 %v1974, 92
        %v2047 = vpop.permute.xlu0 %2046
        %2048 = vrot.lane.b32.xlu0 %v1975, 92
        %v2049 = vpop.permute.xlu0 %2048
        %2050 = vrot.lane.b32.xlu0 %v1976, 92
        %v2051 = vpop.permute.xlu0 %2050
        %2052 = vrot.lane.b32.xlu0 %v1977, 92
        %v2053 = vpop.permute.xlu0 %2052
        %2054 = vrot.lane.b32.xlu0 %v1978, 92
        %v2055 = vpop.permute.xlu0 %2054
        %2056 = vrot.lane.b32.xlu0 %v1979, 92
        %v2057 = vpop.permute.xlu0 %2056
        %2058 = vrot.lane.b32.xlu0 %v1980, 92
        %v2059 = vpop.permute.xlu0 %2058
        %2060 = vrot.lane.b32.xlu0 %v1981, 92
        %v2061 = vpop.permute.xlu0 %2060
        %2062 = vrot.lane.b32.xlu0 %v1982, 92
        %v2063 = vpop.permute.xlu0 %2062
        %2064 = vrot.lane.b32.xlu0 %v1983, 92
        %v2065 = vpop.permute.xlu0 %2064
        %2066 = vrot.lane.b32.xlu0 %v1984, 92
        %v2067 = vpop.permute.xlu0 %2066
        %2068 = vrot.lane.b32.xlu0 %v1985, 92
        %v2069 = vpop.permute.xlu0 %2068
        %2070 = vrot.lane.b32.xlu0 %v1986, 92
        %v2071 = vpop.permute.xlu0 %2070
        %2072 = vrot.lane.b32.xlu0 %v1987, 92
        %v2073 = vpop.permute.xlu0 %2072
        %2074 = vrot.lane.b32.xlu0 %v1988, 92
        %v2075 = vpop.permute.xlu0 %2074
        %2076 = vrot.lane.b32.xlu0 %v1989, 92
        %v2077 = vpop.permute.xlu0 %2076
        %2078 = vrot.lane.b32.xlu0 %v1990, 92
        %v2079 = vpop.permute.xlu0 %2078
        %2080 = vrot.lane.b32.xlu0 %v1991, 92
        %v2081 = vpop.permute.xlu0 %2080
        %2082 = vrot.lane.b32.xlu0 %v1992, 92
        %v2083 = vpop.permute.xlu0 %2082
        %2084 = vrot.lane.b32.xlu0 %v1993, 92
        %v2085 = vpop.permute.xlu0 %2084
        %2086 = vrot.lane.b32.xlu0 %v1994, 92
        %v2087 = vpop.permute.xlu0 %2086
        %2088 = vrot.lane.b32.xlu0 %v1995, 92
        %v2089 = vpop.permute.xlu0 %2088
        %2090 = vrot.lane.b32.xlu0 %v1996, 92
        %v2091 = vpop.permute.xlu0 %2090
        %2092 = vrot.lane.b32.xlu0 %v1997, 92
        %v2093 = vpop.permute.xlu0 %2092
        %vm2094 = vcmask 752640
        %v2095 = vsel %vm2094, %v2031, %v2033
        %v2096 = vsel %vm2094, %v2033, %v2035
        %v2097 = vsel %vm2094, %v2035, %v2037
        %v2098 = vsel %vm2094, %v2039, %v2041
        %v2099 = vsel %vm2094, %v2041, %v2043
        %v2100 = vsel %vm2094, %v2043, %v2045
        %v2101 = vsel %vm2094, %v2047, %v2049
        %v2102 = vsel %vm2094, %v2049, %v2051
        %v2103 = vsel %vm2094, %v2051, %v2053
        %v2104 = vsel %vm2094, %v2055, %v2057
        %v2105 = vsel %vm2094, %v2057, %v2059
        %v2106 = vsel %vm2094, %v2059, %v2061
        %v2107 = vsel %vm2094, %v2063, %v2065
        %v2108 = vsel %vm2094, %v2065, %v2067
        %v2109 = vsel %vm2094, %v2067, %v2069
        %v2110 = vsel %vm2094, %v2071, %v2073
        %v2111 = vsel %vm2094, %v2073, %v2075
        %v2112 = vsel %vm2094, %v2075, %v2077
        %v2113 = vsel %vm2094, %v2079, %v2081
        %v2114 = vsel %vm2094, %v2081, %v2083
        %v2115 = vsel %vm2094, %v2083, %v2085
        %v2116 = vsel %vm2094, %v2087, %v2089
        %v2117 = vsel %vm2094, %v2089, %v2091
        %v2118 = vsel %vm2094, %v2091, %v2093
        %v2143 = vadd.f32 %v1942, %v2095
        %v2144 = vadd.f32 %v1943, %v2096
        %v2145 = vadd.f32 %v1944, %v2097
        %v2146 = vadd.f32 %v1945, %v2098
        %v2147 = vadd.f32 %v1946, %v2099
        %v2148 = vadd.f32 %v1947, %v2100
        %v2149 = vadd.f32 %v1948, %v2101
        %v2150 = vadd.f32 %v1949, %v2102
        %v2151 = vadd.f32 %v1950, %v2103
        %v2152 = vadd.f32 %v1951, %v2104
        %v2153 = vadd.f32 %v1952, %v2105
        %v2154 = vadd.f32 %v1953, %v2106
        %v2155 = vadd.f32 %v1954, %v2107
        %v2156 = vadd.f32 %v1955, %v2108
        %v2157 = vadd.f32 %v1956, %v2109
        %v2158 = vadd.f32 %v1957, %v2110
        %v2159 = vadd.f32 %v1958, %v2111
        %v2160 = vadd.f32 %v1959, %v2112
        %v2161 = vadd.f32 %v1960, %v2113
        %v2162 = vadd.f32 %v1961, %v2114
        %v2163 = vadd.f32 %v1962, %v2115
        %v2164 = vadd.f32 %v1963, %v2116
        %v2165 = vadd.f32 %v1964, %v2117
        %v2166 = vadd.f32 %v1965, %v2118
        %v2167 = vmul.f32 %v881, %v621
        %v2168 = vmul.f32 %v882, %v621
        %v2169 = vmul.f32 %v883, %v621
        %v2170 = vmul.f32 %v953, %v621
        %v2171 = vmul.f32 %v884, %v625
        %v2172 = vmul.f32 %v885, %v625
        %v2173 = vmul.f32 %v886, %v625
        %v2174 = vmul.f32 %v954, %v625
        %v2175 = vmul.f32 %v887, %v629
        %v2176 = vmul.f32 %v888, %v629
        %v2177 = vmul.f32 %v889, %v629
        %v2178 = vmul.f32 %v955, %v629
        %v2179 = vmul.f32 %v890, %v633
        %v2180 = vmul.f32 %v891, %v633
        %v2181 = vmul.f32 %v892, %v633
        %v2182 = vmul.f32 %v956, %v633
        %v2183 = vmul.f32 %v893, %v637
        %v2184 = vmul.f32 %v894, %v637
        %v2185 = vmul.f32 %v895, %v637
        %v2186 = vmul.f32 %v957, %v637
        %v2187 = vmul.f32 %v896, %v641
        %v2188 = vmul.f32 %v897, %v641
        %v2189 = vmul.f32 %v898, %v641
        %v2190 = vmul.f32 %v958, %v641
        %v2191 = vmul.f32 %v899, %v645
        %v2192 = vmul.f32 %v900, %v645
        %v2193 = vmul.f32 %v901, %v645
        %v2194 = vmul.f32 %v959, %v645
        %v2195 = vmul.f32 %v902, %v649
        %v2196 = vmul.f32 %v903, %v649
        %v2197 = vmul.f32 %v904, %v649
        %v2198 = vmul.f32 %v960, %v649
        %2231 = vrot.lane.b32.xlu0 %v2167, 91
        %v2232 = vpop.permute.xlu0 %2231
        %2233 = vrot.lane.b32.xlu0 %v2168, 91
        %v2234 = vpop.permute.xlu0 %2233
        %2235 = vrot.lane.b32.xlu0 %v2169, 91
        %v2236 = vpop.permute.xlu0 %2235
        %2237 = vrot.lane.b32.xlu0 %v2170, 91
        %v2238 = vpop.permute.xlu0 %2237
        %2239 = vrot.lane.b32.xlu0 %v2171, 91
        %v2240 = vpop.permute.xlu0 %2239
        %2241 = vrot.lane.b32.xlu0 %v2172, 91
        %v2242 = vpop.permute.xlu0 %2241
        %2243 = vrot.lane.b32.xlu0 %v2173, 91
        %v2244 = vpop.permute.xlu0 %2243
        %2245 = vrot.lane.b32.xlu0 %v2174, 91
        %v2246 = vpop.permute.xlu0 %2245
        %2247 = vrot.lane.b32.xlu0 %v2175, 91
        %v2248 = vpop.permute.xlu0 %2247
        %2249 = vrot.lane.b32.xlu0 %v2176, 91
        %v2250 = vpop.permute.xlu0 %2249
        %2251 = vrot.lane.b32.xlu0 %v2177, 91
        %v2252 = vpop.permute.xlu0 %2251
        %2253 = vrot.lane.b32.xlu0 %v2178, 91
        %v2254 = vpop.permute.xlu0 %2253
        %2255 = vrot.lane.b32.xlu0 %v2179, 91
        %v2256 = vpop.permute.xlu0 %2255
        %2257 = vrot.lane.b32.xlu0 %v2180, 91
        %v2258 = vpop.permute.xlu0 %2257
        %2259 = vrot.lane.b32.xlu0 %v2181, 91
        %v2260 = vpop.permute.xlu0 %2259
        %2261 = vrot.lane.b32.xlu0 %v2182, 91
        %v2262 = vpop.permute.xlu0 %2261
        %2263 = vrot.lane.b32.xlu0 %v2183, 91
        %v2264 = vpop.permute.xlu0 %2263
        %2265 = vrot.lane.b32.xlu0 %v2184, 91
        %v2266 = vpop.permute.xlu0 %2265
        %2267 = vrot.lane.b32.xlu0 %v2185, 91
        %v2268 = vpop.permute.xlu0 %2267
        %2269 = vrot.lane.b32.xlu0 %v2186, 91
        %v2270 = vpop.permute.xlu0 %2269
        %2271 = vrot.lane.b32.xlu0 %v2187, 91
        %v2272 = vpop.permute.xlu0 %2271
        %2273 = vrot.lane.b32.xlu0 %v2188, 91
        %v2274 = vpop.permute.xlu0 %2273
        %2275 = vrot.lane.b32.xlu0 %v2189, 91
        %v2276 = vpop.permute.xlu0 %2275
        %2277 = vrot.lane.b32.xlu0 %v2190, 91
        %v2278 = vpop.permute.xlu0 %2277
        %2279 = vrot.lane.b32.xlu0 %v2191, 91
        %v2280 = vpop.permute.xlu0 %2279
        %2281 = vrot.lane.b32.xlu0 %v2192, 91
        %v2282 = vpop.permute.xlu0 %2281
        %2283 = vrot.lane.b32.xlu0 %v2193, 91
        %v2284 = vpop.permute.xlu0 %2283
        %2285 = vrot.lane.b32.xlu0 %v2194, 91
        %v2286 = vpop.permute.xlu0 %2285
        %2287 = vrot.lane.b32.xlu0 %v2195, 91
        %v2288 = vpop.permute.xlu0 %2287
        %2289 = vrot.lane.b32.xlu0 %v2196, 91
        %v2290 = vpop.permute.xlu0 %2289
        %2291 = vrot.lane.b32.xlu0 %v2197, 91
        %v2292 = vpop.permute.xlu0 %2291
        %2293 = vrot.lane.b32.xlu0 %v2198, 91
        %v2294 = vpop.permute.xlu0 %2293
        %vm2295 = vcmask 744448
        %v2296 = vsel %vm2295, %v2232, %v2234
        %v2297 = vsel %vm2295, %v2234, %v2236
        %v2298 = vsel %vm2295, %v2236, %v2238
        %v2299 = vsel %vm2295, %v2240, %v2242
        %v2300 = vsel %vm2295, %v2242, %v2244
        %v2301 = vsel %vm2295, %v2244, %v2246
        %v2302 = vsel %vm2295, %v2248, %v2250
        %v2303 = vsel %vm2295, %v2250, %v2252
        %v2304 = vsel %vm2295, %v2252, %v2254
        %v2305 = vsel %vm2295, %v2256, %v2258
        %v2306 = vsel %vm2295, %v2258, %v2260
        %v2307 = vsel %vm2295, %v2260, %v2262
        %v2308 = vsel %vm2295, %v2264, %v2266
        %v2309 = vsel %vm2295, %v2266, %v2268
        %v2310 = vsel %vm2295, %v2268, %v2270
        %v2311 = vsel %vm2295, %v2272, %v2274
        %v2312 = vsel %vm2295, %v2274, %v2276
        %v2313 = vsel %vm2295, %v2276, %v2278
        %v2314 = vsel %vm2295, %v2280, %v2282
        %v2315 = vsel %vm2295, %v2282, %v2284
        %v2316 = vsel %vm2295, %v2284, %v2286
        %v2317 = vsel %vm2295, %v2288, %v2290
        %v2318 = vsel %vm2295, %v2290, %v2292
        %v2319 = vsel %vm2295, %v2292, %v2294
        %v2344 = vadd.f32 %v2143, %v2296
        %v2345 = vadd.f32 %v2144, %v2297
        %v2346 = vadd.f32 %v2145, %v2298
        %v2347 = vadd.f32 %v2146, %v2299
        %v2348 = vadd.f32 %v2147, %v2300
        %v2349 = vadd.f32 %v2148, %v2301
        %v2350 = vadd.f32 %v2149, %v2302
        %v2351 = vadd.f32 %v2150, %v2303
        %v2352 = vadd.f32 %v2151, %v2304
        %v2353 = vadd.f32 %v2152, %v2305
        %v2354 = vadd.f32 %v2153, %v2306
        %v2355 = vadd.f32 %v2154, %v2307
        %v2356 = vadd.f32 %v2155, %v2308
        %v2357 = vadd.f32 %v2156, %v2309
        %v2358 = vadd.f32 %v2157, %v2310
        %v2359 = vadd.f32 %v2158, %v2311
        %v2360 = vadd.f32 %v2159, %v2312
        %v2361 = vadd.f32 %v2160, %v2313
        %v2362 = vadd.f32 %v2161, %v2314
        %v2363 = vadd.f32 %v2162, %v2315
        %v2364 = vadd.f32 %v2163, %v2316
        %v2365 = vadd.f32 %v2164, %v2317
        %v2366 = vadd.f32 %v2165, %v2318
        %v2367 = vadd.f32 %v2166, %v2319
        %v2368 = vmul.f32 %v881, %v653
        %v2369 = vmul.f32 %v882, %v653
        %v2370 = vmul.f32 %v883, %v653
        %v2371 = vmul.f32 %v953, %v653
        %v2372 = vmul.f32 %v884, %v657
        %v2373 = vmul.f32 %v885, %v657
        %v2374 = vmul.f32 %v886, %v657
        %v2375 = vmul.f32 %v954, %v657
        %v2376 = vmul.f32 %v887, %v661
        %v2377 = vmul.f32 %v888, %v661
        %v2378 = vmul.f32 %v889, %v661
        %v2379 = vmul.f32 %v955, %v661
        %v2380 = vmul.f32 %v890, %v665
        %v2381 = vmul.f32 %v891, %v665
        %v2382 = vmul.f32 %v892, %v665
        %v2383 = vmul.f32 %v956, %v665
        %v2384 = vmul.f32 %v893, %v669
        %v2385 = vmul.f32 %v894, %v669
        %v2386 = vmul.f32 %v895, %v669
        %v2387 = vmul.f32 %v957, %v669
        %v2388 = vmul.f32 %v896, %v673
        %v2389 = vmul.f32 %v897, %v673
        %v2390 = vmul.f32 %v898, %v673
        %v2391 = vmul.f32 %v958, %v673
        %v2392 = vmul.f32 %v899, %v677
        %v2393 = vmul.f32 %v900, %v677
        %v2394 = vmul.f32 %v901, %v677
        %v2395 = vmul.f32 %v959, %v677
        %v2396 = vmul.f32 %v902, %v681
        %v2397 = vmul.f32 %v903, %v681
        %v2398 = vmul.f32 %v904, %v681
        %v2399 = vmul.f32 %v960, %v681
        %2432 = vrot.lane.b32.xlu0 %v2368, 90
        %v2433 = vpop.permute.xlu0 %2432
        %2434 = vrot.lane.b32.xlu0 %v2369, 90
        %v2435 = vpop.permute.xlu0 %2434
        %2436 = vrot.lane.b32.xlu0 %v2370, 90
        %v2437 = vpop.permute.xlu0 %2436
        %2438 = vrot.lane.b32.xlu0 %v2371, 90
        %v2439 = vpop.permute.xlu0 %2438
        %2440 = vrot.lane.b32.xlu0 %v2372, 90
        %v2441 = vpop.permute.xlu0 %2440
        %2442 = vrot.lane.b32.xlu0 %v2373, 90
        %v2443 = vpop.permute.xlu0 %2442
        %2444 = vrot.lane.b32.xlu0 %v2374, 90
        %v2445 = vpop.permute.xlu0 %2444
        %2446 = vrot.lane.b32.xlu0 %v2375, 90
        %v2447 = vpop.permute.xlu0 %2446
        %2448 = vrot.lane.b32.xlu0 %v2376, 90
        %v2449 = vpop.permute.xlu0 %2448
        %2450 = vrot.lane.b32.xlu0 %v2377, 90
        %v2451 = vpop.permute.xlu0 %2450
        %2452 = vrot.lane.b32.xlu0 %v2378, 90
        %v2453 = vpop.permute.xlu0 %2452
        %2454 = vrot.lane.b32.xlu0 %v2379, 90
        %v2455 = vpop.permute.xlu0 %2454
        %2456 = vrot.lane.b32.xlu0 %v2380, 90
        %v2457 = vpop.permute.xlu0 %2456
        %2458 = vrot.lane.b32.xlu0 %v2381, 90
        %v2459 = vpop.permute.xlu0 %2458
        %2460 = vrot.lane.b32.xlu0 %v2382, 90
        %v2461 = vpop.permute.xlu0 %2460
        %2462 = vrot.lane.b32.xlu0 %v2383, 90
        %v2463 = vpop.permute.xlu0 %2462
        %2464 = vrot.lane.b32.xlu0 %v2384, 90
        %v2465 = vpop.permute.xlu0 %2464
        %2466 = vrot.lane.b32.xlu0 %v2385, 90
        %v2467 = vpop.permute.xlu0 %2466
        %2468 = vrot.lane.b32.xlu0 %v2386, 90
        %v2469 = vpop.permute.xlu0 %2468
        %2470 = vrot.lane.b32.xlu0 %v2387, 90
        %v2471 = vpop.permute.xlu0 %2470
        %2472 = vrot.lane.b32.xlu0 %v2388, 90
        %v2473 = vpop.permute.xlu0 %2472
        %2474 = vrot.lane.b32.xlu0 %v2389, 90
        %v2475 = vpop.permute.xlu0 %2474
        %2476 = vrot.lane.b32.xlu0 %v2390, 90
        %v2477 = vpop.permute.xlu0 %2476
        %2478 = vrot.lane.b32.xlu0 %v2391, 90
        %v2479 = vpop.permute.xlu0 %2478
        %2480 = vrot.lane.b32.xlu0 %v2392, 90
        %v2481 = vpop.permute.xlu0 %2480
        %2482 = vrot.lane.b32.xlu0 %v2393, 90
        %v2483 = vpop.permute.xlu0 %2482
        %2484 = vrot.lane.b32.xlu0 %v2394, 90
        %v2485 = vpop.permute.xlu0 %2484
        %2486 = vrot.lane.b32.xlu0 %v2395, 90
        %v2487 = vpop.permute.xlu0 %2486
        %2488 = vrot.lane.b32.xlu0 %v2396, 90
        %v2489 = vpop.permute.xlu0 %2488
        %2490 = vrot.lane.b32.xlu0 %v2397, 90
        %v2491 = vpop.permute.xlu0 %2490
        %2492 = vrot.lane.b32.xlu0 %v2398, 90
        %v2493 = vpop.permute.xlu0 %2492
        %2494 = vrot.lane.b32.xlu0 %v2399, 90
        %v2495 = vpop.permute.xlu0 %2494
        %vm2496 = vcmask 736256
        %v2497 = vsel %vm2496, %v2433, %v2435
        %v2498 = vsel %vm2496, %v2435, %v2437
        %v2499 = vsel %vm2496, %v2437, %v2439
        %v2500 = vsel %vm2496, %v2441, %v2443
        %v2501 = vsel %vm2496, %v2443, %v2445
        %v2502 = vsel %vm2496, %v2445, %v2447
        %v2503 = vsel %vm2496, %v2449, %v2451
        %v2504 = vsel %vm2496, %v2451, %v2453
        %v2505 = vsel %vm2496, %v2453, %v2455
        %v2506 = vsel %vm2496, %v2457, %v2459
        %v2507 = vsel %vm2496, %v2459, %v2461
        %v2508 = vsel %vm2496, %v2461, %v2463
        %v2509 = vsel %vm2496, %v2465, %v2467
        %v2510 = vsel %vm2496, %v2467, %v2469
        %v2511 = vsel %vm2496, %v2469, %v2471
        %v2512 = vsel %vm2496, %v2473, %v2475
        %v2513 = vsel %vm2496, %v2475, %v2477
        %v2514 = vsel %vm2496, %v2477, %v2479
        %v2515 = vsel %vm2496, %v2481, %v2483
        %v2516 = vsel %vm2496, %v2483, %v2485
        %v2517 = vsel %vm2496, %v2485, %v2487
        %v2518 = vsel %vm2496, %v2489, %v2491
        %v2519 = vsel %vm2496, %v2491, %v2493
        %v2520 = vsel %vm2496, %v2493, %v2495
        %v2545 = vadd.f32 %v2344, %v2497
        %v2546 = vadd.f32 %v2345, %v2498
        %v2547 = vadd.f32 %v2346, %v2499
        %v2548 = vadd.f32 %v2347, %v2500
        %v2549 = vadd.f32 %v2348, %v2501
        %v2550 = vadd.f32 %v2349, %v2502
        %v2551 = vadd.f32 %v2350, %v2503
        %v2552 = vadd.f32 %v2351, %v2504
        %v2553 = vadd.f32 %v2352, %v2505
        %v2554 = vadd.f32 %v2353, %v2506
        %v2555 = vadd.f32 %v2354, %v2507
        %v2556 = vadd.f32 %v2355, %v2508
        %v2557 = vadd.f32 %v2356, %v2509
        %v2558 = vadd.f32 %v2357, %v2510
        %v2559 = vadd.f32 %v2358, %v2511
        %v2560 = vadd.f32 %v2359, %v2512
        %v2561 = vadd.f32 %v2360, %v2513
        %v2562 = vadd.f32 %v2361, %v2514
        %v2563 = vadd.f32 %v2362, %v2515
        %v2564 = vadd.f32 %v2363, %v2516
        %v2565 = vadd.f32 %v2364, %v2517
        %v2566 = vadd.f32 %v2365, %v2518
        %v2567 = vadd.f32 %v2366, %v2519
        %v2568 = vadd.f32 %v2367, %v2520
        %vm2569 = vcmask 523264
        %v2571 = vsel %vm2569, 0.015625, 0
        %2573 = vmatprep.subr.mxu0 0.0
        %2574 = vmatpush1.msra.mxu0 0.0
        %2575 = vmatprep.subr.mxu0 0.0
        %2576 = vmatpush1.msra.mxu0 0.0
        %2577 = vmatprep.subr.mxu0 0.0
        %2578 = vmatpush1.msra.mxu0 0.0
        %2579 = vmatprep.subr.mxu0 0.0
        %2580 = vmatpush1.msra.mxu0 0.0
        %2581 = vmatprep.subr.mxu0 0.0
        %2582 = vmatpush1.msra.mxu0 0.0
        %2583 = vmatprep.subr.mxu0 0.0
        %2584 = vmatpush1.msra.mxu0 0.0
        %2585 = vmatprep.subr.mxu0 0.0
        %2586 = vmatpush1.msra.mxu0 0.0
        %2587 = vmatprep.subr.mxu0 0.0
        %2588 = vmatpush1.msra.mxu0 0.0
        %2589 = vmatprep.subr.mxu0 %v2567
        %2590 = vmatpush1.msra.mxu0 %v2566
        %2591 = vmatprep.subr.mxu0 %v2564
        %2592 = vmatpush1.msra.mxu0 %v2563
        %2593 = vmatprep.subr.mxu0 %v2561
        %2594 = vmatpush1.msra.mxu0 %v2560
        %2595 = vmatprep.subr.mxu0 %v2558
        %2596 = vmatpush1.msra.mxu0 %v2557
        %2597 = vmatprep.subr.mxu0 %v2555
        %2598 = vmatpush1.msra.mxu0 %v2554
        %2599 = vmatprep.subr.mxu0 %v2552
        %2600 = vmatpush1.msra.mxu0 %v2551
        %2601 = vmatprep.subr.mxu0 %v2549
        %2602 = vmatpush1.msra.mxu0 %v2548
        %2603 = vmatprep.subr.mxu0 %v2546
        %2604 = vmatpush1.msra.mxu0 %v2545
        %2605 = vmatprep.subr.mxu0 0.0
        %2606 = vmatpush2.msra.mxu0 0.0
        %2607 = vmatprep.subr.mxu0 0.0
        %2608 = vmatpush2.msra.mxu0 0.0
        %2609 = vmatprep.subr.mxu0 0.0
        %2610 = vmatpush2.msra.mxu0 0.0
        %2611 = vmatprep.subr.mxu0 0.0
        %2612 = vmatpush2.msra.mxu0 0.0
        %2613 = vmatprep.subr.mxu0 0.0
        %2614 = vmatpush2.msra.mxu0 0.0
        %2615 = vmatprep.subr.mxu0 0.0
        %2616 = vmatpush2.msra.mxu0 0.0
        %2617 = vmatprep.subr.mxu0 0.0
        %2618 = vmatpush2.msra.mxu0 0.0
        %2619 = vmatprep.subr.mxu0 0.0
        %2620 = vmatpush2.msra.mxu0 0.0
        %2621 = vmatprep.subr.mxu0 0.0
        %2622 = vmatpush2.msra.mxu0 0.0
        %2623 = vmatprep.subr.mxu0 0.0
        %2624 = vmatpush2.msra.mxu0 0.0
        %2625 = vmatprep.subr.mxu0 0.0
        %2626 = vmatpush2.msra.mxu0 0.0
        %2627 = vmatprep.subr.mxu0 0.0
        %2628 = vmatpush2.msra.mxu0 0.0
        %2629 = vmatprep.subr.mxu0 0.0
        %2630 = vmatpush2.msra.mxu0 0.0
        %2631 = vmatprep.subr.mxu0 0.0
        %2632 = vmatpush2.msra.mxu0 0.0
        %2633 = vmatprep.subr.mxu0 0.0
        %2634 = vmatpush2.msra.mxu0 0.0
        %2635 = vmatprep.subr.mxu0 0.0
        %2636 = vmatpush2.msra.mxu0 0.0
        %2637 = vmatprep.mubr.f32.mxu0 0.0
        %2638 = vmatmul.mubr.f32.gmra.mxu0 %v2571
        %v2639 = vpop.f32.mrf.mxu0
        %v2640 = vadd.f32 0.0, %v2639
        %v2641 = vpop.f32.mrf.mxu0
        %v2642 = vadd.f32 0.0, %v2641
        %2643 = vdwg.mxu0
        %2644 = vmatprep.subr.mxu0 0.0
        %2645 = vmatpush1.msra.mxu0 0.0
        %2646 = vmatprep.subr.mxu0 0.0
        %2647 = vmatpush1.msra.mxu0 0.0
        %2648 = vmatprep.subr.mxu0 0.0
        %2649 = vmatpush1.msra.mxu0 0.0
        %2650 = vmatprep.subr.mxu0 0.0
        %2651 = vmatpush1.msra.mxu0 0.0
        %2652 = vmatprep.subr.mxu0 0.0
        %2653 = vmatpush1.msra.mxu0 0.0
        %2654 = vmatprep.subr.mxu0 0.0
        %2655 = vmatpush1.msra.mxu0 0.0
        %2656 = vmatprep.subr.mxu0 0.0
        %2657 = vmatpush1.msra.mxu0 0.0
        %2658 = vmatprep.subr.mxu0 0.0
        %2659 = vmatpush1.msra.mxu0 0.0
        %2660 = vmatprep.subr.mxu0 0.0
        %2661 = vmatpush1.msra.mxu0 %v2568
        %2662 = vmatprep.subr.mxu0 0.0
        %2663 = vmatpush1.msra.mxu0 %v2565
        %2664 = vmatprep.subr.mxu0 0.0
        %2665 = vmatpush1.msra.mxu0 %v2562
        %2666 = vmatprep.subr.mxu0 0.0
        %2667 = vmatpush1.msra.mxu0 %v2559
        %2668 = vmatprep.subr.mxu0 0.0
        %2669 = vmatpush1.msra.mxu0 %v2556
        %2670 = vmatprep.subr.mxu0 0.0
        %2671 = vmatpush1.msra.mxu0 %v2553
        %2672 = vmatprep.subr.mxu0 0.0
        %2673 = vmatpush1.msra.mxu0 %v2550
        %2674 = vmatprep.subr.mxu0 0.0
        %2675 = vmatpush1.msra.mxu0 %v2547
        %2676 = vmatprep.subr.mxu0 0.0
        %2677 = vmatpush2.msra.mxu0 0.0
        %2678 = vmatprep.subr.mxu0 0.0
        %2679 = vmatpush2.msra.mxu0 0.0
        %2680 = vmatprep.subr.mxu0 0.0
        %2681 = vmatpush2.msra.mxu0 0.0
        %2682 = vmatprep.subr.mxu0 0.0
        %2683 = vmatpush2.msra.mxu0 0.0
        %2684 = vmatprep.subr.mxu0 0.0
        %2685 = vmatpush2.msra.mxu0 0.0
        %2686 = vmatprep.subr.mxu0 0.0
        %2687 = vmatpush2.msra.mxu0 0.0
        %2688 = vmatprep.subr.mxu0 0.0
        %2689 = vmatpush2.msra.mxu0 0.0
        %2690 = vmatprep.subr.mxu0 0.0
        %2691 = vmatpush2.msra.mxu0 0.0
        %2692 = vmatprep.subr.mxu0 0.0
        %2693 = vmatpush2.msra.mxu0 0.0
        %2694 = vmatprep.subr.mxu0 0.0
        %2695 = vmatpush2.msra.mxu0 0.0
        %2696 = vmatprep.subr.mxu0 0.0
        %2697 = vmatpush2.msra.mxu0 0.0
        %2698 = vmatprep.subr.mxu0 0.0
        %2699 = vmatpush2.msra.mxu0 0.0
        %2700 = vmatprep.subr.mxu0 0.0
        %2701 = vmatpush2.msra.mxu0 0.0
        %2702 = vmatprep.subr.mxu0 0.0
        %2703 = vmatpush2.msra.mxu0 0.0
        %2704 = vmatprep.subr.mxu0 0.0
        %2705 = vmatpush2.msra.mxu0 0.0
        %2706 = vmatprep.subr.mxu0 0.0
        %2707 = vmatpush2.msra.mxu0 0.0
        %2708 = vmatprep.mubr.f32.mxu0 0.0
        %2709 = vmatmul.mubr.f32.gmra.mxu0 %v2571
        %v2710 = vpop.f32.mrf.mxu0
        %v2711 = vadd.f32 0.0, %v2710
        %v2712 = vpop.f32.mrf.mxu0
        %2713 = vdwg.mxu0
        %v2714 = vmul.f32 %v2545, %v2545
        %v2715 = vmul.f32 %v2546, %v2546
        %v2716 = vmul.f32 %v2547, %v2547
        %v2717 = vmul.f32 %v2548, %v2548
        %v2718 = vmul.f32 %v2549, %v2549
        %v2719 = vmul.f32 %v2550, %v2550
        %v2720 = vmul.f32 %v2551, %v2551
        %v2721 = vmul.f32 %v2552, %v2552
        %v2722 = vmul.f32 %v2553, %v2553
        %v2723 = vmul.f32 %v2554, %v2554
        %v2724 = vmul.f32 %v2555, %v2555
        %v2725 = vmul.f32 %v2556, %v2556
        %v2726 = vmul.f32 %v2557, %v2557
        %v2727 = vmul.f32 %v2558, %v2558
        %v2728 = vmul.f32 %v2559, %v2559
        %v2729 = vmul.f32 %v2560, %v2560
        %v2730 = vmul.f32 %v2561, %v2561
        %v2731 = vmul.f32 %v2562, %v2562
        %v2732 = vmul.f32 %v2563, %v2563
        %v2733 = vmul.f32 %v2564, %v2564
        %v2734 = vmul.f32 %v2565, %v2565
        %v2735 = vmul.f32 %v2566, %v2566
        %v2736 = vmul.f32 %v2567, %v2567
        %v2737 = vmul.f32 %v2568, %v2568
        %2738 = vmatprep.subr.mxu0 0.0
        %2739 = vmatpush1.msra.mxu0 0.0
        %2740 = vmatprep.subr.mxu0 0.0
        %2741 = vmatpush1.msra.mxu0 0.0
        %2742 = vmatprep.subr.mxu0 0.0
        %2743 = vmatpush1.msra.mxu0 0.0
        %2744 = vmatprep.subr.mxu0 0.0
        %2745 = vmatpush1.msra.mxu0 0.0
        %2746 = vmatprep.subr.mxu0 0.0
        %2747 = vmatpush1.msra.mxu0 0.0
        %2748 = vmatprep.subr.mxu0 0.0
        %2749 = vmatpush1.msra.mxu0 0.0
        %2750 = vmatprep.subr.mxu0 0.0
        %2751 = vmatpush1.msra.mxu0 0.0
        %2752 = vmatprep.subr.mxu0 0.0
        %2753 = vmatpush1.msra.mxu0 0.0
        %2754 = vmatprep.subr.mxu0 %v2736
        %2755 = vmatpush1.msra.mxu0 %v2735
        %2756 = vmatprep.subr.mxu0 %v2733
        %2757 = vmatpush1.msra.mxu0 %v2732
        %2758 = vmatprep.subr.mxu0 %v2730
        %2759 = vmatpush1.msra.mxu0 %v2729
        %2760 = vmatprep.subr.mxu0 %v2727
        %2761 = vmatpush1.msra.mxu0 %v2726
        %2762 = vmatprep.subr.mxu0 %v2724
        %2763 = vmatpush1.msra.mxu0 %v2723
        %2764 = vmatprep.subr.mxu0 %v2721
        %2765 = vmatpush1.msra.mxu0 %v2720
        %2766 = vmatprep.subr.mxu0 %v2718
        %2767 = vmatpush1.msra.mxu0 %v2717
        %2768 = vmatprep.subr.mxu0 %v2715
        %2769 = vmatpush1.msra.mxu0 %v2714
        %2770 = vmatprep.subr.mxu0 0.0
        %2771 = vmatpush2.msra.mxu0 0.0
        %2772 = vmatprep.subr.mxu0 0.0
        %2773 = vmatpush2.msra.mxu0 0.0
        %2774 = vmatprep.subr.mxu0 0.0
        %2775 = vmatpush2.msra.mxu0 0.0
        %2776 = vmatprep.subr.mxu0 0.0
        %2777 = vmatpush2.msra.mxu0 0.0
        %2778 = vmatprep.subr.mxu0 0.0
        %2779 = vmatpush2.msra.mxu0 0.0
        %2780 = vmatprep.subr.mxu0 0.0
        %2781 = vmatpush2.msra.mxu0 0.0
        %2782 = vmatprep.subr.mxu0 0.0
        %2783 = vmatpush2.msra.mxu0 0.0
        %2784 = vmatprep.subr.mxu0 0.0
        %2785 = vmatpush2.msra.mxu0 0.0
        %2786 = vmatprep.subr.mxu0 0.0
        %2787 = vmatpush2.msra.mxu0 0.0
        %2788 = vmatprep.subr.mxu0 0.0
        %2789 = vmatpush2.msra.mxu0 0.0
        %2790 = vmatprep.subr.mxu0 0.0
        %2791 = vmatpush2.msra.mxu0 0.0
        %2792 = vmatprep.subr.mxu0 0.0
        %2793 = vmatpush2.msra.mxu0 0.0
        %2794 = vmatprep.subr.mxu0 0.0
        %2795 = vmatpush2.msra.mxu0 0.0
        %2796 = vmatprep.subr.mxu0 0.0
        %2797 = vmatpush2.msra.mxu0 0.0
        %2798 = vmatprep.subr.mxu0 0.0
        %2799 = vmatpush2.msra.mxu0 0.0
        %2800 = vmatprep.subr.mxu0 0.0
        %2801 = vmatpush2.msra.mxu0 0.0
        %2802 = vmatprep.mubr.f32.mxu0 0.0
        %2803 = vmatmul.mubr.f32.gmra.mxu0 %v2571
        %v2804 = vpop.f32.mrf.mxu0
        %v2805 = vadd.f32 0.0, %v2804
        %v2806 = vpop.f32.mrf.mxu0
        %v2807 = vadd.f32 0.0, %v2806
        %2808 = vdwg.mxu0
        %2809 = vmatprep.subr.mxu0 0.0
        %2810 = vmatpush1.msra.mxu0 0.0
        %2811 = vmatprep.subr.mxu0 0.0
        %2812 = vmatpush1.msra.mxu0 0.0
        %2813 = vmatprep.subr.mxu0 0.0
        %2814 = vmatpush1.msra.mxu0 0.0
        %2815 = vmatprep.subr.mxu0 0.0
        %2816 = vmatpush1.msra.mxu0 0.0
        %2817 = vmatprep.subr.mxu0 0.0
        %2818 = vmatpush1.msra.mxu0 0.0
        %2819 = vmatprep.subr.mxu0 0.0
        %2820 = vmatpush1.msra.mxu0 0.0
        %2821 = vmatprep.subr.mxu0 0.0
        %2822 = vmatpush1.msra.mxu0 0.0
        %2823 = vmatprep.subr.mxu0 0.0
        %2824 = vmatpush1.msra.mxu0 0.0
        %2825 = vmatprep.subr.mxu0 0.0
        %2826 = vmatpush1.msra.mxu0 %v2737
        %2827 = vmatprep.subr.mxu0 0.0
        %2828 = vmatpush1.msra.mxu0 %v2734
        %2829 = vmatprep.subr.mxu0 0.0
        %2830 = vmatpush1.msra.mxu0 %v2731
        %2831 = vmatprep.subr.mxu0 0.0
        %2832 = vmatpush1.msra.mxu0 %v2728
        %2833 = vmatprep.subr.mxu0 0.0
        %2834 = vmatpush1.msra.mxu0 %v2725
        %2835 = vmatprep.subr.mxu0 0.0
        %2836 = vmatpush1.msra.mxu0 %v2722
        %2837 = vmatprep.subr.mxu0 0.0
        %2838 = vmatpush1.msra.mxu0 %v2719
        %2839 = vmatprep.subr.mxu0 0.0
        %2840 = vmatpush1.msra.mxu0 %v2716
        %2841 = vmatprep.subr.mxu0 0.0
        %2842 = vmatpush2.msra.mxu0 0.0
        %2843 = vmatprep.subr.mxu0 0.0
        %2844 = vmatpush2.msra.mxu0 0.0
        %2845 = vmatprep.subr.mxu0 0.0
        %2846 = vmatpush2.msra.mxu0 0.0
        %2847 = vmatprep.subr.mxu0 0.0
        %2848 = vmatpush2.msra.mxu0 0.0
        %2849 = vmatprep.subr.mxu0 0.0
        %2850 = vmatpush2.msra.mxu0 0.0
        %2851 = vmatprep.subr.mxu0 0.0
        %2852 = vmatpush2.msra.mxu0 0.0
        %2853 = vmatprep.subr.mxu0 0.0
        %2854 = vmatpush2.msra.mxu0 0.0
        %2855 = vmatprep.subr.mxu0 0.0
        %2856 = vmatpush2.msra.mxu0 0.0
        %2857 = vmatprep.subr.mxu0 0.0
        %2858 = vmatpush2.msra.mxu0 0.0
        %2859 = vmatprep.subr.mxu0 0.0
        %2860 = vmatpush2.msra.mxu0 0.0
        %2861 = vmatprep.subr.mxu0 0.0
        %2862 = vmatpush2.msra.mxu0 0.0
        %2863 = vmatprep.subr.mxu0 0.0
        %2864 = vmatpush2.msra.mxu0 0.0
        %2865 = vmatprep.subr.mxu0 0.0
        %2866 = vmatpush2.msra.mxu0 0.0
        %2867 = vmatprep.subr.mxu0 0.0
        %2868 = vmatpush2.msra.mxu0 0.0
        %2869 = vmatprep.subr.mxu0 0.0
        %2870 = vmatpush2.msra.mxu0 0.0
        %2871 = vmatprep.subr.mxu0 0.0
        %2872 = vmatpush2.msra.mxu0 0.0
        %2873 = vmatprep.mubr.f32.mxu0 0.0
        %2874 = vmatmul.mubr.f32.gmra.mxu0 %v2571
        %v2875 = vpop.f32.mrf.mxu0
        %v2876 = vadd.f32 0.0, %v2875
        %v2877 = vpop.f32.mrf.mxu0
        %2878 = vdwg.mxu0
        %v2879 = vmul.f32 %v2640, %v2640
        %v2880 = vmul.f32 %v2642, %v2642
        %v2881 = vmul.f32 %v2711, %v2711
        %v2882 = vsub.f32 %v2805, %v2879
        %v2883 = vsub.f32 %v2807, %v2880
        %v2884 = vsub.f32 %v2876, %v2881
        %v2885 = vadd.f32 %v2882, 1e-05
        %v2886 = vadd.f32 %v2883, 1e-05
        %v2887 = vadd.f32 %v2884, 1e-05
        %v2888 = vrsqrt.pop %v2885
        %v2889 = vrsqrt.pop %v2886
        %v2890 = vrsqrt.pop %v2887
        %v2891 = vlaneseq
        %v2892 = vshrl.u32 %v2891, 7
        %v2893 = vsub.s32 0, %v2892
        %v2894 = vrot.slane %v2640, %v2893
        %v2895 = vlaneseq
        %v2896 = vshrl.u32 %v2895, 7
        %v2897 = vsub.s32 0, %v2896
        %v2898 = vrot.slane %v2642, %v2897
        %v2899 = vlaneseq
        %v2900 = vshrl.u32 %v2899, 7
        %v2901 = vsub.s32 0, %v2900
        %v2902 = vrot.slane %v2711, %v2901
        %v2903 = vsub.f32 %v2545, %v2894
        %v2904 = vsub.f32 %v2546, %v2898
        %v2905 = vsub.f32 %v2547, %v2902
        %v2906 = vsub.f32 %v2548, %v2894
        %v2907 = vsub.f32 %v2549, %v2898
        %v2908 = vsub.f32 %v2550, %v2902
        %v2909 = vsub.f32 %v2551, %v2894
        %v2910 = vsub.f32 %v2552, %v2898
        %v2911 = vsub.f32 %v2553, %v2902
        %v2912 = vsub.f32 %v2554, %v2894
        %v2913 = vsub.f32 %v2555, %v2898
        %v2914 = vsub.f32 %v2556, %v2902
        %v2915 = vsub.f32 %v2557, %v2894
        %v2916 = vsub.f32 %v2558, %v2898
        %v2917 = vsub.f32 %v2559, %v2902
        %v2918 = vsub.f32 %v2560, %v2894
        %v2919 = vsub.f32 %v2561, %v2898
        %v2920 = vsub.f32 %v2562, %v2902
        %v2921 = vsub.f32 %v2563, %v2894
        %v2922 = vsub.f32 %v2564, %v2898
        %v2923 = vsub.f32 %v2565, %v2902
        %v2924 = vsub.f32 %v2566, %v2894
        %v2925 = vsub.f32 %v2567, %v2898
        %v2926 = vsub.f32 %v2568, %v2902
        %v2927 = vlaneseq
        %v2928 = vshrl.u32 %v2927, 7
        %v2929 = vsub.s32 0, %v2928
        %v2930 = vrot.slane %v2888, %v2929
        %v2931 = vlaneseq
        %v2932 = vshrl.u32 %v2931, 7
        %v2933 = vsub.s32 0, %v2932
        %v2934 = vrot.slane %v2889, %v2933
        %v2935 = vlaneseq
        %v2936 = vshrl.u32 %v2935, 7
        %v2937 = vsub.s32 0, %v2936
        %v2938 = vrot.slane %v2890, %v2937
        %v2939 = vmul.f32 %v2903, %v2930
        %v2940 = vmul.f32 %v2904, %v2934
        %v2941 = vmul.f32 %v2905, %v2938
        %v2942 = vmul.f32 %v2906, %v2930
        %v2943 = vmul.f32 %v2907, %v2934
        %v2944 = vmul.f32 %v2908, %v2938
        %v2945 = vmul.f32 %v2909, %v2930
        %v2946 = vmul.f32 %v2910, %v2934
        %v2947 = vmul.f32 %v2911, %v2938
        %v2948 = vmul.f32 %v2912, %v2930
        %v2949 = vmul.f32 %v2913, %v2934
        %v2950 = vmul.f32 %v2914, %v2938
        %v2951 = vmul.f32 %v2915, %v2930
        %v2952 = vmul.f32 %v2916, %v2934
        %v2953 = vmul.f32 %v2917, %v2938
        %v2954 = vmul.f32 %v2918, %v2930
        %v2955 = vmul.f32 %v2919, %v2934
        %v2956 = vmul.f32 %v2920, %v2938
        %v2957 = vmul.f32 %v2921, %v2930
        %v2958 = vmul.f32 %v2922, %v2934
        %v2959 = vmul.f32 %v2923, %v2938
        %v2960 = vmul.f32 %v2924, %v2930
        %v2961 = vmul.f32 %v2925, %v2934
        %v2962 = vmul.f32 %v2926, %v2938
        %v2963 = vmul.f32 %v2939, %v742
        %v2964 = vmul.f32 %v2940, %v742
        %v2965 = vmul.f32 %v2941, %v742
        %v2966 = vmul.f32 %v2942, %v747
        %v2967 = vmul.f32 %v2943, %v747
        %v2968 = vmul.f32 %v2944, %v747
        %v2969 = vmul.f32 %v2945, %v752
        %v2970 = vmul.f32 %v2946, %v752
        %v2971 = vmul.f32 %v2947, %v752
        %v2972 = vmul.f32 %v2948, %v757
        %v2973 = vmul.f32 %v2949, %v757
        %v2974 = vmul.f32 %v2950, %v757
        %v2975 = vmul.f32 %v2951, %v762
        %v2976 = vmul.f32 %v2952, %v762
        %v2977 = vmul.f32 %v2953, %v762
        %v2978 = vmul.f32 %v2954, %v767
        %v2979 = vmul.f32 %v2955, %v767
        %v2980 = vmul.f32 %v2956, %v767
        %v2981 = vmul.f32 %v2957, %v772
        %v2982 = vmul.f32 %v2958, %v772
        %v2983 = vmul.f32 %v2959, %v772
        %v2984 = vmul.f32 %v2960, %v777
        %v2985 = vmul.f32 %v2961, %v777
        %v2986 = vmul.f32 %v2962, %v777
        %v2987 = vadd.f32 %v2963, %v790
        %v2988 = vadd.f32 %v2964, %v790
        %v2989 = vadd.f32 %v2965, %v790
        %v2990 = vadd.f32 %v2966, %v795
        %v2991 = vadd.f32 %v2967, %v795
        %v2992 = vadd.f32 %v2968, %v795
        %v2993 = vadd.f32 %v2969, %v800
        %v2994 = vadd.f32 %v2970, %v800
        %v2995 = vadd.f32 %v2971, %v800
        %v2996 = vadd.f32 %v2972, %v805
        %v2997 = vadd.f32 %v2973, %v805
        %v2998 = vadd.f32 %v2974, %v805
        %v2999 = vadd.f32 %v2975, %v810
        %v3000 = vadd.f32 %v2976, %v810
        %v3001 = vadd.f32 %v2977, %v810
        %v3002 = vadd.f32 %v2978, %v815
        %v3003 = vadd.f32 %v2979, %v815
        %v3004 = vadd.f32 %v2980, %v815
        %v3005 = vadd.f32 %v2981, %v820
        %v3006 = vadd.f32 %v2982, %v820
        %v3007 = vadd.f32 %v2983, %v820
        %v3008 = vadd.f32 %v2984, %v825
        %v3009 = vadd.f32 %v2985, %v825
        %v3010 = vadd.f32 %v2986, %v825
        %v3011 = vmul.f32 %v2987, 0.5
        %v3012 = vmul.f32 %v2988, 0.5
        %v3013 = vmul.f32 %v2989, 0.5
        %v3014 = vmul.f32 %v2990, 0.5
        %v3015 = vmul.f32 %v2991, 0.5
        %v3016 = vmul.f32 %v2992, 0.5
        %v3017 = vmul.f32 %v2993, 0.5
        %v3018 = vmul.f32 %v2994, 0.5
        %v3019 = vmul.f32 %v2995, 0.5
        %v3020 = vmul.f32 %v2996, 0.5
        %v3021 = vmul.f32 %v2997, 0.5
        %v3022 = vmul.f32 %v2998, 0.5
        %v3023 = vmul.f32 %v2999, 0.5
        %v3024 = vmul.f32 %v3000, 0.5
        %v3025 = vmul.f32 %v3001, 0.5
        %v3026 = vmul.f32 %v3002, 0.5
        %v3027 = vmul.f32 %v3003, 0.5
        %v3028 = vmul.f32 %v3004, 0.5
        %v3029 = vmul.f32 %v3005, 0.5
        %v3030 = vmul.f32 %v3006, 0.5
        %v3031 = vmul.f32 %v3007, 0.5
        %v3032 = vmul.f32 %v3008, 0.5
        %v3033 = vmul.f32 %v3009, 0.5
        %v3034 = vmul.f32 %v3010, 0.5
        %v3035 = vmul.f32 %v2987, 0.70710677
        %v3036 = vmul.f32 %v2988, 0.70710677
        %v3037 = vmul.f32 %v2989, 0.70710677
        %v3038 = vmul.f32 %v2990, 0.70710677
        %v3039 = vmul.f32 %v2991, 0.70710677
        %v3040 = vmul.f32 %v2992, 0.70710677
        %v3041 = vmul.f32 %v2993, 0.70710677
        %v3042 = vmul.f32 %v2994, 0.70710677
        %v3043 = vmul.f32 %v2995, 0.70710677
        %v3044 = vmul.f32 %v2996, 0.70710677
        %v3045 = vmul.f32 %v2997, 0.70710677
        %v3046 = vmul.f32 %v2998, 0.70710677
        %v3047 = vmul.f32 %v2999, 0.70710677
        %v3048 = vmul.f32 %v3000, 0.70710677
        %v3049 = vmul.f32 %v3001, 0.70710677
        %v3050 = vmul.f32 %v3002, 0.70710677
        %v3051 = vmul.f32 %v3003, 0.70710677
        %v3052 = vmul.f32 %v3004, 0.70710677
        %v3053 = vmul.f32 %v3005, 0.70710677
        %v3054 = vmul.f32 %v3006, 0.70710677
        %v3055 = vmul.f32 %v3007, 0.70710677
        %v3056 = vmul.f32 %v3008, 0.70710677
        %v3057 = vmul.f32 %v3009, 0.70710677
        %v3058 = vmul.f32 %v3010, 0.70710677
        %v3059 = vand.u32 2147483647, %v3035
        %v3060 = vand.u32 2147483647, %v3036
        %v3061 = vand.u32 2147483647, %v3037
        %v3062 = vand.u32 2147483647, %v3038
        %v3063 = vand.u32 2147483647, %v3039
        %v3064 = vand.u32 2147483647, %v3040
        %v3065 = vand.u32 2147483647, %v3041
        %v3066 = vand.u32 2147483647, %v3042
        %v3067 = vand.u32 2147483647, %v3043
        %v3068 = vand.u32 2147483647, %v3044
        %v3069 = vand.u32 2147483647, %v3045
        %v3070 = vand.u32 2147483647, %v3046
        %v3071 = vand.u32 2147483647, %v3047
        %v3072 = vand.u32 2147483647, %v3048
        %v3073 = vand.u32 2147483647, %v3049
        %v3074 = vand.u32 2147483647, %v3050
        %v3075 = vand.u32 2147483647, %v3051
        %v3076 = vand.u32 2147483647, %v3052
        %v3077 = vand.u32 2147483647, %v3053
        %v3078 = vand.u32 2147483647, %v3054
        %v3079 = vand.u32 2147483647, %v3055
        %v3080 = vand.u32 2147483647, %v3056
        %v3081 = vand.u32 2147483647, %v3057
        %v3082 = vand.u32 2147483647, %v3058
        %v3083 = vmul.f32 %v3059, 0.3275911
        %v3084 = vmul.f32 %v3060, 0.3275911
        %v3085 = vmul.f32 %v3061, 0.3275911
        %v3086 = vmul.f32 %v3062, 0.3275911
        %v3087 = vmul.f32 %v3063, 0.3275911
        %v3088 = vmul.f32 %v3064, 0.3275911
        %v3089 = vmul.f32 %v3065, 0.3275911
        %v3090 = vmul.f32 %v3066, 0.3275911
        %v3091 = vmul.f32 %v3067, 0.3275911
        %v3092 = vmul.f32 %v3068, 0.3275911
        %v3093 = vmul.f32 %v3069, 0.3275911
        %v3094 = vmul.f32 %v3070, 0.3275911
        %v3095 = vmul.f32 %v3071, 0.3275911
        %v3096 = vmul.f32 %v3072, 0.3275911
        %v3097 = vmul.f32 %v3073, 0.3275911
        %v3098 = vmul.f32 %v3074, 0.3275911
        %v3099 = vmul.f32 %v3075, 0.3275911
        %v3100 = vmul.f32 %v3076, 0.3275911
        %v3101 = vmul.f32 %v3077, 0.3275911
        %v3102 = vmul.f32 %v3078, 0.3275911
        %v3103 = vmul.f32 %v3079, 0.3275911
        %v3104 = vmul.f32 %v3080, 0.3275911
        %v3105 = vmul.f32 %v3081, 0.3275911
        %v3106 = vmul.f32 %v3082, 0.3275911
        %v3107 = vadd.f32 %v3083, 1.0
        %v3108 = vadd.f32 %v3084, 1.0
        %v3109 = vadd.f32 %v3085, 1.0
        %v3110 = vadd.f32 %v3086, 1.0
        %v3111 = vadd.f32 %v3087, 1.0
        %v3112 = vadd.f32 %v3088, 1.0
        %v3113 = vadd.f32 %v3089, 1.0
        %v3114 = vadd.f32 %v3090, 1.0
        %v3115 = vadd.f32 %v3091, 1.0
        %v3116 = vadd.f32 %v3092, 1.0
        %v3117 = vadd.f32 %v3093, 1.0
        %v3118 = vadd.f32 %v3094, 1.0
        %v3119 = vadd.f32 %v3095, 1.0
        %v3120 = vadd.f32 %v3096, 1.0
        %v3121 = vadd.f32 %v3097, 1.0
        %v3122 = vadd.f32 %v3098, 1.0
        %v3123 = vadd.f32 %v3099, 1.0
        %v3124 = vadd.f32 %v3100, 1.0
        %v3125 = vadd.f32 %v3101, 1.0
        %v3126 = vadd.f32 %v3102, 1.0
        %v3127 = vadd.f32 %v3103, 1.0
        %v3128 = vadd.f32 %v3104, 1.0
        %v3129 = vadd.f32 %v3105, 1.0
        %v3130 = vadd.f32 %v3106, 1.0
        %v3131 = vrcp.pop %v3107
        %v3132 = vmul.f32 1.0, %v3131
        %v3133 = vrcp.pop %v3108
        %v3134 = vmul.f32 1.0, %v3133
        %v3135 = vrcp.pop %v3109
        %v3136 = vmul.f32 1.0, %v3135
        %v3137 = vrcp.pop %v3110
        %v3138 = vmul.f32 1.0, %v3137
        %v3139 = vrcp.pop %v3111
        %v3140 = vmul.f32 1.0, %v3139
        %v3141 = vrcp.pop %v3112
        %v3142 = vmul.f32 1.0, %v3141
        %v3143 = vrcp.pop %v3113
        %v3144 = vmul.f32 1.0, %v3143
        %v3145 = vrcp.pop %v3114
        %v3146 = vmul.f32 1.0, %v3145
        %v3147 = vrcp.pop %v3115
        %v3148 = vmul.f32 1.0, %v3147
        %v3149 = vrcp.pop %v3116
        %v3150 = vmul.f32 1.0, %v3149
        %v3151 = vrcp.pop %v3117
        %v3152 = vmul.f32 1.0, %v3151
        %v3153 = vrcp.pop %v3118
        %v3154 = vmul.f32 1.0, %v3153
        %v3155 = vrcp.pop %v3119
        %v3156 = vmul.f32 1.0, %v3155
        %v3157 = vrcp.pop %v3120
        %v3158 = vmul.f32 1.0, %v3157
        %v3159 = vrcp.pop %v3121
        %v3160 = vmul.f32 1.0, %v3159
        %v3161 = vrcp.pop %v3122
        %v3162 = vmul.f32 1.0, %v3161
        %v3163 = vrcp.pop %v3123
        %v3164 = vmul.f32 1.0, %v3163
        %v3165 = vrcp.pop %v3124
        %v3166 = vmul.f32 1.0, %v3165
        %v3167 = vrcp.pop %v3125
        %v3168 = vmul.f32 1.0, %v3167
        %v3169 = vrcp.pop %v3126
        %v3170 = vmul.f32 1.0, %v3169
        %v3171 = vrcp.pop %v3127
        %v3172 = vmul.f32 1.0, %v3171
        %v3173 = vrcp.pop %v3128
        %v3174 = vmul.f32 1.0, %v3173
        %v3175 = vrcp.pop %v3129
        %v3176 = vmul.f32 1.0, %v3175
        %v3177 = vrcp.pop %v3130
        %v3178 = vmul.f32 1.0, %v3177
        %v3179 = vmul.f32 %v3132, 1.0614054
        %v3180 = vmul.f32 %v3134, 1.0614054
        %v3181 = vmul.f32 %v3136, 1.0614054
        %v3182 = vmul.f32 %v3138, 1.0614054
        %v3183 = vmul.f32 %v3140, 1.0614054
        %v3184 = vmul.f32 %v3142, 1.0614054
        %v3185 = vmul.f32 %v3144, 1.0614054
        %v3186 = vmul.f32 %v3146, 1.0614054
        %v3187 = vmul.f32 %v3148, 1.0614054
        %v3188 = vmul.f32 %v3150, 1.0614054
        %v3189 = vmul.f32 %v3152, 1.0614054
        %v3190 = vmul.f32 %v3154, 1.0614054
        %v3191 = vmul.f32 %v3156, 1.0614054
        %v3192 = vmul.f32 %v3158, 1.0614054
        %v3193 = vmul.f32 %v3160, 1.0614054
        %v3194 = vmul.f32 %v3162, 1.0614054
        %v3195 = vmul.f32 %v3164, 1.0614054
        %v3196 = vmul.f32 %v3166, 1.0614054
        %v3197 = vmul.f32 %v3168, 1.0614054
        %v3198 = vmul.f32 %v3170, 1.0614054
        %v3199 = vmul.f32 %v3172, 1.0614054
        %v3200 = vmul.f32 %v3174, 1.0614054
        %v3201 = vmul.f32 %v3176, 1.0614054
        %v3202 = vmul.f32 %v3178, 1.0614054
        %v3203 = vadd.f32 %v3179, -1.4531521
        %v3204 = vadd.f32 %v3180, -1.4531521
        %v3205 = vadd.f32 %v3181, -1.4531521
        %v3206 = vadd.f32 %v3182, -1.4531521
        %v3207 = vadd.f32 %v3183, -1.4531521
        %v3208 = vadd.f32 %v3184, -1.4531521
        %v3209 = vadd.f32 %v3185, -1.4531521
        %v3210 = vadd.f32 %v3186, -1.4531521
        %v3211 = vadd.f32 %v3187, -1.4531521
        %v3212 = vadd.f32 %v3188, -1.4531521
        %v3213 = vadd.f32 %v3189, -1.4531521
        %v3214 = vadd.f32 %v3190, -1.4531521
        %v3215 = vadd.f32 %v3191, -1.4531521
        %v3216 = vadd.f32 %v3192, -1.4531521
        %v3217 = vadd.f32 %v3193, -1.4531521
        %v3218 = vadd.f32 %v3194, -1.4531521
        %v3219 = vadd.f32 %v3195, -1.4531521
        %v3220 = vadd.f32 %v3196, -1.4531521
        %v3221 = vadd.f32 %v3197, -1.4531521
        %v3222 = vadd.f32 %v3198, -1.4531521
        %v3223 = vadd.f32 %v3199, -1.4531521
        %v3224 = vadd.f32 %v3200, -1.4531521
        %v3225 = vadd.f32 %v3201, -1.4531521
        %v3226 = vadd.f32 %v3202, -1.4531521
        %v3227 = vmul.f32 %v3203, %v3132
        %v3228 = vmul.f32 %v3204, %v3134
        %v3229 = vmul.f32 %v3205, %v3136
        %v3230 = vmul.f32 %v3206, %v3138
        %v3231 = vmul.f32 %v3207, %v3140
        %v3232 = vmul.f32 %v3208, %v3142
        %v3233 = vmul.f32 %v3209, %v3144
        %v3234 = vmul.f32 %v3210, %v3146
        %v3235 = vmul.f32 %v3211, %v3148
        %v3236 = vmul.f32 %v3212, %v3150
        %v3237 = vmul.f32 %v3213, %v3152
        %v3238 = vmul.f32 %v3214, %v3154
        %v3239 = vmul.f32 %v3215, %v3156
        %v3240 = vmul.f32 %v3216, %v3158
        %v3241 = vmul.f32 %v3217, %v3160
        %v3242 = vmul.f32 %v3218, %v3162
        %v3243 = vmul.f32 %v3219, %v3164
        %v3244 = vmul.f32 %v3220, %v3166
        %v3245 = vmul.f32 %v3221, %v3168
        %v3246 = vmul.f32 %v3222, %v3170
        %v3247 = vmul.f32 %v3223, %v3172
        %v3248 = vmul.f32 %v3224, %v3174
        %v3249 = vmul.f32 %v3225, %v3176
        %v3250 = vmul.f32 %v3226, %v3178
        %v3251 = vadd.f32 %v3227, 1.4214138
        %v3252 = vadd.f32 %v3228, 1.4214138
        %v3253 = vadd.f32 %v3229, 1.4214138
        %v3254 = vadd.f32 %v3230, 1.4214138
        %v3255 = vadd.f32 %v3231, 1.4214138
        %v3256 = vadd.f32 %v3232, 1.4214138
        %v3257 = vadd.f32 %v3233, 1.4214138
        %v3258 = vadd.f32 %v3234, 1.4214138
        %v3259 = vadd.f32 %v3235, 1.4214138
        %v3260 = vadd.f32 %v3236, 1.4214138
        %v3261 = vadd.f32 %v3237, 1.4214138
        %v3262 = vadd.f32 %v3238, 1.4214138
        %v3263 = vadd.f32 %v3239, 1.4214138
        %v3264 = vadd.f32 %v3240, 1.4214138
        %v3265 = vadd.f32 %v3241, 1.4214138
        %v3266 = vadd.f32 %v3242, 1.4214138
        %v3267 = vadd.f32 %v3243, 1.4214138
        %v3268 = vadd.f32 %v3244, 1.4214138
        %v3269 = vadd.f32 %v3245, 1.4214138
        %v3270 = vadd.f32 %v3246, 1.4214138
        %v3271 = vadd.f32 %v3247, 1.4214138
        %v3272 = vadd.f32 %v3248, 1.4214138
        %v3273 = vadd.f32 %v3249, 1.4214138
        %v3274 = vadd.f32 %v3250, 1.4214138
        %v3275 = vmul.f32 %v3251, %v3132
        %v3276 = vmul.f32 %v3252, %v3134
        %v3277 = vmul.f32 %v3253, %v3136
        %v3278 = vmul.f32 %v3254, %v3138
        %v3279 = vmul.f32 %v3255, %v3140
        %v3280 = vmul.f32 %v3256, %v3142
        %v3281 = vmul.f32 %v3257, %v3144
        %v3282 = vmul.f32 %v3258, %v3146
        %v3283 = vmul.f32 %v3259, %v3148
        %v3284 = vmul.f32 %v3260, %v3150
        %v3285 = vmul.f32 %v3261, %v3152
        %v3286 = vmul.f32 %v3262, %v3154
        %v3287 = vmul.f32 %v3263, %v3156
        %v3288 = vmul.f32 %v3264, %v3158
        %v3289 = vmul.f32 %v3265, %v3160
        %v3290 = vmul.f32 %v3266, %v3162
        %v3291 = vmul.f32 %v3267, %v3164
        %v3292 = vmul.f32 %v3268, %v3166
        %v3293 = vmul.f32 %v3269, %v3168
        %v3294 = vmul.f32 %v3270, %v3170
        %v3295 = vmul.f32 %v3271, %v3172
        %v3296 = vmul.f32 %v3272, %v3174
        %v3297 = vmul.f32 %v3273, %v3176
        %v3298 = vmul.f32 %v3274, %v3178
        %v3299 = vadd.f32 %v3275, -0.28449672
        %v3300 = vadd.f32 %v3276, -0.28449672
        %v3301 = vadd.f32 %v3277, -0.28449672
        %v3302 = vadd.f32 %v3278, -0.28449672
        %v3303 = vadd.f32 %v3279, -0.28449672
        %v3304 = vadd.f32 %v3280, -0.28449672
        %v3305 = vadd.f32 %v3281, -0.28449672
        %v3306 = vadd.f32 %v3282, -0.28449672
        %v3307 = vadd.f32 %v3283, -0.28449672
        %v3308 = vadd.f32 %v3284, -0.28449672
        %v3309 = vadd.f32 %v3285, -0.28449672
        %v3310 = vadd.f32 %v3286, -0.28449672
        %v3311 = vadd.f32 %v3287, -0.28449672
        %v3312 = vadd.f32 %v3288, -0.28449672
        %v3313 = vadd.f32 %v3289, -0.28449672
        %v3314 = vadd.f32 %v3290, -0.28449672
        %v3315 = vadd.f32 %v3291, -0.28449672
        %v3316 = vadd.f32 %v3292, -0.28449672
        %v3317 = vadd.f32 %v3293, -0.28449672
        %v3318 = vadd.f32 %v3294, -0.28449672
        %v3319 = vadd.f32 %v3295, -0.28449672
        %v3320 = vadd.f32 %v3296, -0.28449672
        %v3321 = vadd.f32 %v3297, -0.28449672
        %v3322 = vadd.f32 %v3298, -0.28449672
        %v3323 = vmul.f32 %v3299, %v3132
        %v3324 = vmul.f32 %v3300, %v3134
        %v3325 = vmul.f32 %v3301, %v3136
        %v3326 = vmul.f32 %v3302, %v3138
        %v3327 = vmul.f32 %v3303, %v3140
        %v3328 = vmul.f32 %v3304, %v3142
        %v3329 = vmul.f32 %v3305, %v3144
        %v3330 = vmul.f32 %v3306, %v3146
        %v3331 = vmul.f32 %v3307, %v3148
        %v3332 = vmul.f32 %v3308, %v3150
        %v3333 = vmul.f32 %v3309, %v3152
        %v3334 = vmul.f32 %v3310, %v3154
        %v3335 = vmul.f32 %v3311, %v3156
        %v3336 = vmul.f32 %v3312, %v3158
        %v3337 = vmul.f32 %v3313, %v3160
        %v3338 = vmul.f32 %v3314, %v3162
        %v3339 = vmul.f32 %v3315, %v3164
        %v3340 = vmul.f32 %v3316, %v3166
        %v3341 = vmul.f32 %v3317, %v3168
        %v3342 = vmul.f32 %v3318, %v3170
        %v3343 = vmul.f32 %v3319, %v3172
        %v3344 = vmul.f32 %v3320, %v3174
        %v3345 = vmul.f32 %v3321, %v3176
        %v3346 = vmul.f32 %v3322, %v3178
        %v3347 = vadd.f32 %v3323, 0.2548296
        %v3348 = vadd.f32 %v3324, 0.2548296
        %v3349 = vadd.f32 %v3325, 0.2548296
        %v3350 = vadd.f32 %v3326, 0.2548296
        %v3351 = vadd.f32 %v3327, 0.2548296
        %v3352 = vadd.f32 %v3328, 0.2548296
        %v3353 = vadd.f32 %v3329, 0.2548296
        %v3354 = vadd.f32 %v3330, 0.2548296
        %v3355 = vadd.f32 %v3331, 0.2548296
        %v3356 = vadd.f32 %v3332, 0.2548296
        %v3357 = vadd.f32 %v3333, 0.2548296
        %v3358 = vadd.f32 %v3334, 0.2548296
        %v3359 = vadd.f32 %v3335, 0.2548296
        %v3360 = vadd.f32 %v3336, 0.2548296
        %v3361 = vadd.f32 %v3337, 0.2548296
        %v3362 = vadd.f32 %v3338, 0.2548296
        %v3363 = vadd.f32 %v3339, 0.2548296
        %v3364 = vadd.f32 %v3340, 0.2548296
        %v3365 = vadd.f32 %v3341, 0.2548296
        %v3366 = vadd.f32 %v3342, 0.2548296
        %v3367 = vadd.f32 %v3343, 0.2548296
        %v3368 = vadd.f32 %v3344, 0.2548296
        %v3369 = vadd.f32 %v3345, 0.2548296
        %v3370 = vadd.f32 %v3346, 0.2548296
        %v3371 = vmul.f32 %v3347, %v3132
        %v3372 = vmul.f32 %v3348, %v3134
        %v3373 = vmul.f32 %v3349, %v3136
        %v3374 = vmul.f32 %v3350, %v3138
        %v3375 = vmul.f32 %v3351, %v3140
        %v3376 = vmul.f32 %v3352, %v3142
        %v3377 = vmul.f32 %v3353, %v3144
        %v3378 = vmul.f32 %v3354, %v3146
        %v3379 = vmul.f32 %v3355, %v3148
        %v3380 = vmul.f32 %v3356, %v3150
        %v3381 = vmul.f32 %v3357, %v3152
        %v3382 = vmul.f32 %v3358, %v3154
        %v3383 = vmul.f32 %v3359, %v3156
        %v3384 = vmul.f32 %v3360, %v3158
        %v3385 = vmul.f32 %v3361, %v3160
        %v3386 = vmul.f32 %v3362, %v3162
        %v3387 = vmul.f32 %v3363, %v3164
        %v3388 = vmul.f32 %v3364, %v3166
        %v3389 = vmul.f32 %v3365, %v3168
        %v3390 = vmul.f32 %v3366, %v3170
        %v3391 = vmul.f32 %v3367, %v3172
        %v3392 = vmul.f32 %v3368, %v3174
        %v3393 = vmul.f32 %v3369, %v3176
        %v3394 = vmul.f32 %v3370, %v3178
        %v3395 = vsub.f32 0.0, %v3059
        %v3396 = vsub.f32 0.0, %v3060
        %v3397 = vsub.f32 0.0, %v3061
        %v3398 = vsub.f32 0.0, %v3062
        %v3399 = vsub.f32 0.0, %v3063
        %v3400 = vsub.f32 0.0, %v3064
        %v3401 = vsub.f32 0.0, %v3065
        %v3402 = vsub.f32 0.0, %v3066
        %v3403 = vsub.f32 0.0, %v3067
        %v3404 = vsub.f32 0.0, %v3068
        %v3405 = vsub.f32 0.0, %v3069
        %v3406 = vsub.f32 0.0, %v3070
        %v3407 = vsub.f32 0.0, %v3071
        %v3408 = vsub.f32 0.0, %v3072
        %v3409 = vsub.f32 0.0, %v3073
        %v3410 = vsub.f32 0.0, %v3074
        %v3411 = vsub.f32 0.0, %v3075
        %v3412 = vsub.f32 0.0, %v3076
        %v3413 = vsub.f32 0.0, %v3077
        %v3414 = vsub.f32 0.0, %v3078
        %v3415 = vsub.f32 0.0, %v3079
        %v3416 = vsub.f32 0.0, %v3080
        %v3417 = vsub.f32 0.0, %v3081
        %v3418 = vsub.f32 0.0, %v3082
        %v3419 = vmul.f32 %v3395, %v3059
        %v3420 = vmul.f32 %v3396, %v3060
        %v3421 = vmul.f32 %v3397, %v3061
        %v3422 = vmul.f32 %v3398, %v3062
        %v3423 = vmul.f32 %v3399, %v3063
        %v3424 = vmul.f32 %v3400, %v3064
        %v3425 = vmul.f32 %v3401, %v3065
        %v3426 = vmul.f32 %v3402, %v3066
        %v3427 = vmul.f32 %v3403, %v3067
        %v3428 = vmul.f32 %v3404, %v3068
        %v3429 = vmul.f32 %v3405, %v3069
        %v3430 = vmul.f32 %v3406, %v3070
        %v3431 = vmul.f32 %v3407, %v3071
        %v3432 = vmul.f32 %v3408, %v3072
        %v3433 = vmul.f32 %v3409, %v3073
        %v3434 = vmul.f32 %v3410, %v3074
        %v3435 = vmul.f32 %v3411, %v3075
        %v3436 = vmul.f32 %v3412, %v3076
        %v3437 = vmul.f32 %v3413, %v3077
        %v3438 = vmul.f32 %v3414, %v3078
        %v3439 = vmul.f32 %v3415, %v3079
        %v3440 = vmul.f32 %v3416, %v3080
        %v3441 = vmul.f32 %v3417, %v3081
        %v3442 = vmul.f32 %v3418, %v3082
        %v3443 = vmul.f32 %v3419, 1.442695
        %v3444 = vpow.pop %v3443
        %v3445 = vmul.f32 %v3420, 1.442695
        %v3446 = vpow.pop %v3445
        %v3447 = vmul.f32 %v3421, 1.442695
        %v3448 = vpow.pop %v3447
        %v3449 = vmul.f32 %v3422, 1.442695
        %v3450 = vpow.pop %v3449
        %v3451 = vmul.f32 %v3423, 1.442695
        %v3452 = vpow.pop %v3451
        %v3453 = vmul.f32 %v3424, 1.442695
        %v3454 = vpow.pop %v3453
        %v3455 = vmul.f32 %v3425, 1.442695
        %v3456 = vpow.pop %v3455
        %v3457 = vmul.f32 %v3426, 1.442695
        %v3458 = vpow.pop %v3457
        %v3459 = vmul.f32 %v3427, 1.442695
        %v3460 = vpow.pop %v3459
        %v3461 = vmul.f32 %v3428, 1.442695
        %v3462 = vpow.pop %v3461
        %v3463 = vmul.f32 %v3429, 1.442695
        %v3464 = vpow.pop %v3463
        %v3465 = vmul.f32 %v3430, 1.442695
        %v3466 = vpow.pop %v3465
        %v3467 = vmul.f32 %v3431, 1.442695
        %v3468 = vpow.pop %v3467
        %v3469 = vmul.f32 %v3432, 1.442695
        %v3470 = vpow.pop %v3469
        %v3471 = vmul.f32 %v3433, 1.442695
        %v3472 = vpow.pop %v3471
        %v3473 = vmul.f32 %v3434, 1.442695
        %v3474 = vpow.pop %v3473
        %v3475 = vmul.f32 %v3435, 1.442695
        %v3476 = vpow.pop %v3475
        %v3477 = vmul.f32 %v3436, 1.442695
        %v3478 = vpow.pop %v3477
        %v3479 = vmul.f32 %v3437, 1.442695
        %v3480 = vpow.pop %v3479
        %v3481 = vmul.f32 %v3438, 1.442695
        %v3482 = vpow.pop %v3481
        %v3483 = vmul.f32 %v3439, 1.442695
        %v3484 = vpow.pop %v3483
        %v3485 = vmul.f32 %v3440, 1.442695
        %v3486 = vpow.pop %v3485
        %v3487 = vmul.f32 %v3441, 1.442695
        %v3488 = vpow.pop %v3487
        %v3489 = vmul.f32 %v3442, 1.442695
        %v3490 = vpow.pop %v3489
        %v3491 = vmul.f32 %v3371, %v3444
        %v3492 = vmul.f32 %v3372, %v3446
        %v3493 = vmul.f32 %v3373, %v3448
        %v3494 = vmul.f32 %v3374, %v3450
        %v3495 = vmul.f32 %v3375, %v3452
        %v3496 = vmul.f32 %v3376, %v3454
        %v3497 = vmul.f32 %v3377, %v3456
        %v3498 = vmul.f32 %v3378, %v3458
        %v3499 = vmul.f32 %v3379, %v3460
        %v3500 = vmul.f32 %v3380, %v3462
        %v3501 = vmul.f32 %v3381, %v3464
        %v3502 = vmul.f32 %v3382, %v3466
        %v3503 = vmul.f32 %v3383, %v3468
        %v3504 = vmul.f32 %v3384, %v3470
        %v3505 = vmul.f32 %v3385, %v3472
        %v3506 = vmul.f32 %v3386, %v3474
        %v3507 = vmul.f32 %v3387, %v3476
        %v3508 = vmul.f32 %v3388, %v3478
        %v3509 = vmul.f32 %v3389, %v3480
        %v3510 = vmul.f32 %v3390, %v3482
        %v3511 = vmul.f32 %v3391, %v3484
        %v3512 = vmul.f32 %v3392, %v3486
        %v3513 = vmul.f32 %v3393, %v3488
        %v3514 = vmul.f32 %v3394, %v3490
        %v3515 = vsub.f32 1.0, %v3491
        %v3516 = vsub.f32 1.0, %v3492
        %v3517 = vsub.f32 1.0, %v3493
        %v3518 = vsub.f32 1.0, %v3494
        %v3519 = vsub.f32 1.0, %v3495
        %v3520 = vsub.f32 1.0, %v3496
        %v3521 = vsub.f32 1.0, %v3497
        %v3522 = vsub.f32 1.0, %v3498
        %v3523 = vsub.f32 1.0, %v3499
        %v3524 = vsub.f32 1.0, %v3500
        %v3525 = vsub.f32 1.0, %v3501
        %v3526 = vsub.f32 1.0, %v3502
        %v3527 = vsub.f32 1.0, %v3503
        %v3528 = vsub.f32 1.0, %v3504
        %v3529 = vsub.f32 1.0, %v3505
        %v3530 = vsub.f32 1.0, %v3506
        %v3531 = vsub.f32 1.0, %v3507
        %v3532 = vsub.f32 1.0, %v3508
        %v3533 = vsub.f32 1.0, %v3509
        %v3534 = vsub.f32 1.0, %v3510
        %v3535 = vsub.f32 1.0, %v3511
        %v3536 = vsub.f32 1.0, %v3512
        %v3537 = vsub.f32 1.0, %v3513
        %v3538 = vsub.f32 1.0, %v3514
        %vm3539 = vcmp.lt.f32.partialorder %v3035, 0.0
        %vm3540 = vcmp.lt.f32.partialorder %v3036, 0.0
        %vm3541 = vcmp.lt.f32.partialorder %v3037, 0.0
        %vm3542 = vcmp.lt.f32.partialorder %v3038, 0.0
        %vm3543 = vcmp.lt.f32.partialorder %v3039, 0.0
        %vm3544 = vcmp.lt.f32.partialorder %v3040, 0.0
        %vm3545 = vcmp.lt.f32.partialorder %v3041, 0.0
        %vm3546 = vcmp.lt.f32.partialorder %v3042, 0.0
        %vm3547 = vcmp.lt.f32.partialorder %v3043, 0.0
        %vm3548 = vcmp.lt.f32.partialorder %v3044, 0.0
        %vm3549 = vcmp.lt.f32.partialorder %v3045, 0.0
        %vm3550 = vcmp.lt.f32.partialorder %v3046, 0.0
        %vm3551 = vcmp.lt.f32.partialorder %v3047, 0.0
        %vm3552 = vcmp.lt.f32.partialorder %v3048, 0.0
        %vm3553 = vcmp.lt.f32.partialorder %v3049, 0.0
        %vm3554 = vcmp.lt.f32.partialorder %v3050, 0.0
        %vm3555 = vcmp.lt.f32.partialorder %v3051, 0.0
        %vm3556 = vcmp.lt.f32.partialorder %v3052, 0.0
        %vm3557 = vcmp.lt.f32.partialorder %v3053, 0.0
        %vm3558 = vcmp.lt.f32.partialorder %v3054, 0.0
        %vm3559 = vcmp.lt.f32.partialorder %v3055, 0.0
        %vm3560 = vcmp.lt.f32.partialorder %v3056, 0.0
        %vm3561 = vcmp.lt.f32.partialorder %v3057, 0.0
        %vm3562 = vcmp.lt.f32.partialorder %v3058, 0.0
        %v3563 = vsub.f32 0.0, %v3515
        %v3564 = vsub.f32 0.0, %v3516
        %v3565 = vsub.f32 0.0, %v3517
        %v3566 = vsub.f32 0.0, %v3518
        %v3567 = vsub.f32 0.0, %v3519
        %v3568 = vsub.f32 0.0, %v3520
        %v3569 = vsub.f32 0.0, %v3521
        %v3570 = vsub.f32 0.0, %v3522
        %v3571 = vsub.f32 0.0, %v3523
        %v3572 = vsub.f32 0.0, %v3524
        %v3573 = vsub.f32 0.0, %v3525
        %v3574 = vsub.f32 0.0, %v3526
        %v3575 = vsub.f32 0.0, %v3527
        %v3576 = vsub.f32 0.0, %v3528
        %v3577 = vsub.f32 0.0, %v3529
        %v3578 = vsub.f32 0.0, %v3530
        %v3579 = vsub.f32 0.0, %v3531
        %v3580 = vsub.f32 0.0, %v3532
        %v3581 = vsub.f32 0.0, %v3533
        %v3582 = vsub.f32 0.0, %v3534
        %v3583 = vsub.f32 0.0, %v3535
        %v3584 = vsub.f32 0.0, %v3536
        %v3585 = vsub.f32 0.0, %v3537
        %v3586 = vsub.f32 0.0, %v3538
        %v3587 = vsel %vm3539, %v3563, %v3515
        %v3588 = vsel %vm3540, %v3564, %v3516
        %v3589 = vsel %vm3541, %v3565, %v3517
        %v3590 = vsel %vm3542, %v3566, %v3518
        %v3591 = vsel %vm3543, %v3567, %v3519
        %v3592 = vsel %vm3544, %v3568, %v3520
        %v3593 = vsel %vm3545, %v3569, %v3521
        %v3594 = vsel %vm3546, %v3570, %v3522
        %v3595 = vsel %vm3547, %v3571, %v3523
        %v3596 = vsel %vm3548, %v3572, %v3524
        %v3597 = vsel %vm3549, %v3573, %v3525
        %v3598 = vsel %vm3550, %v3574, %v3526
        %v3599 = vsel %vm3551, %v3575, %v3527
        %v3600 = vsel %vm3552, %v3576, %v3528
        %v3601 = vsel %vm3553, %v3577, %v3529
        %v3602 = vsel %vm3554, %v3578, %v3530
        %v3603 = vsel %vm3555, %v3579, %v3531
        %v3604 = vsel %vm3556, %v3580, %v3532
        %v3605 = vsel %vm3557, %v3581, %v3533
        %v3606 = vsel %vm3558, %v3582, %v3534
        %v3607 = vsel %vm3559, %v3583, %v3535
        %v3608 = vsel %vm3560, %v3584, %v3536
        %v3609 = vsel %vm3561, %v3585, %v3537
        %v3610 = vsel %vm3562, %v3586, %v3538
        %v3611 = vadd.f32 %v3587, 1.0
        %v3612 = vadd.f32 %v3588, 1.0
        %v3613 = vadd.f32 %v3589, 1.0
        %v3614 = vadd.f32 %v3590, 1.0
        %v3615 = vadd.f32 %v3591, 1.0
        %v3616 = vadd.f32 %v3592, 1.0
        %v3617 = vadd.f32 %v3593, 1.0
        %v3618 = vadd.f32 %v3594, 1.0
        %v3619 = vadd.f32 %v3595, 1.0
        %v3620 = vadd.f32 %v3596, 1.0
        %v3621 = vadd.f32 %v3597, 1.0
        %v3622 = vadd.f32 %v3598, 1.0
        %v3623 = vadd.f32 %v3599, 1.0
        %v3624 = vadd.f32 %v3600, 1.0
        %v3625 = vadd.f32 %v3601, 1.0
        %v3626 = vadd.f32 %v3602, 1.0
        %v3627 = vadd.f32 %v3603, 1.0
        %v3628 = vadd.f32 %v3604, 1.0
        %v3629 = vadd.f32 %v3605, 1.0
        %v3630 = vadd.f32 %v3606, 1.0
        %v3631 = vadd.f32 %v3607, 1.0
        %v3632 = vadd.f32 %v3608, 1.0
        %v3633 = vadd.f32 %v3609, 1.0
        %v3634 = vadd.f32 %v3610, 1.0
        %v3635 = vmul.f32 %v3011, %v3611
        %v3636 = vmul.f32 %v3012, %v3612
        %v3637 = vmul.f32 %v3013, %v3613
        %v3638 = vmul.f32 %v3014, %v3614
        %v3639 = vmul.f32 %v3015, %v3615
        %v3640 = vmul.f32 %v3016, %v3616
        %v3641 = vmul.f32 %v3017, %v3617
        %v3642 = vmul.f32 %v3018, %v3618
        %v3643 = vmul.f32 %v3019, %v3619
        %v3644 = vmul.f32 %v3020, %v3620
        %v3645 = vmul.f32 %v3021, %v3621
        %v3646 = vmul.f32 %v3022, %v3622
        %v3647 = vmul.f32 %v3023, %v3623
        %v3648 = vmul.f32 %v3024, %v3624
        %v3649 = vmul.f32 %v3025, %v3625
        %v3650 = vmul.f32 %v3026, %v3626
        %v3651 = vmul.f32 %v3027, %v3627
        %v3652 = vmul.f32 %v3028, %v3628
        %v3653 = vmul.f32 %v3029, %v3629
        %v3654 = vmul.f32 %v3030, %v3630
        %v3655 = vmul.f32 %v3031, %v3631
        %v3656 = vmul.f32 %v3032, %v3632
        %v3657 = vmul.f32 %v3033, %v3633
        %v3658 = vmul.f32 %v3034, %v3634
        %v3660 = vsel %vm2569, %v378, 0
        %v3663 = vsel %vm2569, %v379, 0
        %v3666 = vsel %vm2569, %v380, 0
        %v3669 = vsel %vm2569, %v381, 0
        %v3672 = vsel %vm2569, %v382, 0
        %v3675 = vsel %vm2569, %v383, 0
        %v3678 = vsel %vm2569, %v384, 0
        %v3681 = vsel %vm2569, %v385, 0
        %3683 = vmatprep.subr.mxu0 0.0
        %3684 = vmatpush1.msra.mxu0 0.0
        %3685 = vmatprep.subr.mxu0 0.0
        %3686 = vmatpush1.msra.mxu0 0.0
        %3687 = vmatprep.subr.mxu0 0.0
        %3688 = vmatpush1.msra.mxu0 0.0
        %3689 = vmatprep.subr.mxu0 0.0
        %3690 = vmatpush1.msra.mxu0 0.0
        %3691 = vmatprep.subr.mxu0 0.0
        %3692 = vmatpush1.msra.mxu0 0.0
        %3693 = vmatprep.subr.mxu0 0.0
        %3694 = vmatpush1.msra.mxu0 0.0
        %3695 = vmatprep.subr.mxu0 0.0
        %3696 = vmatpush1.msra.mxu0 0.0
        %3697 = vmatprep.subr.mxu0 0.0
        %3698 = vmatpush1.msra.mxu0 0.0
        %3699 = vmatprep.subr.mxu0 %v3657
        %3700 = vmatpush1.msra.mxu0 %v3656
        %3701 = vmatprep.subr.mxu0 %v3654
        %3702 = vmatpush1.msra.mxu0 %v3653
        %3703 = vmatprep.subr.mxu0 %v3651
        %3704 = vmatpush1.msra.mxu0 %v3650
        %3705 = vmatprep.subr.mxu0 %v3648
        %3706 = vmatpush1.msra.mxu0 %v3647
        %3707 = vmatprep.subr.mxu0 %v3645
        %3708 = vmatpush1.msra.mxu0 %v3644
        %3709 = vmatprep.subr.mxu0 %v3642
        %3710 = vmatpush1.msra.mxu0 %v3641
        %3711 = vmatprep.subr.mxu0 %v3639
        %3712 = vmatpush1.msra.mxu0 %v3638
        %3713 = vmatprep.subr.mxu0 %v3636
        %3714 = vmatpush1.msra.mxu0 %v3635
        %3715 = vmatprep.subr.mxu0 0.0
        %3716 = vmatpush2.msra.mxu0 0.0
        %3717 = vmatprep.subr.mxu0 0.0
        %3718 = vmatpush2.msra.mxu0 0.0
        %3719 = vmatprep.subr.mxu0 0.0
        %3720 = vmatpush2.msra.mxu0 0.0
        %3721 = vmatprep.subr.mxu0 0.0
        %3722 = vmatpush2.msra.mxu0 0.0
        %3723 = vmatprep.subr.mxu0 0.0
        %3724 = vmatpush2.msra.mxu0 0.0
        %3725 = vmatprep.subr.mxu0 0.0
        %3726 = vmatpush2.msra.mxu0 0.0
        %3727 = vmatprep.subr.mxu0 0.0
        %3728 = vmatpush2.msra.mxu0 0.0
        %3729 = vmatprep.subr.mxu0 0.0
        %3730 = vmatpush2.msra.mxu0 0.0
        %3731 = vmatprep.subr.mxu0 0.0
        %3732 = vmatpush2.msra.mxu0 0.0
        %3733 = vmatprep.subr.mxu0 0.0
        %3734 = vmatpush2.msra.mxu0 0.0
        %3735 = vmatprep.subr.mxu0 0.0
        %3736 = vmatpush2.msra.mxu0 0.0
        %3737 = vmatprep.subr.mxu0 0.0
        %3738 = vmatpush2.msra.mxu0 0.0
        %3739 = vmatprep.subr.mxu0 0.0
        %3740 = vmatpush2.msra.mxu0 0.0
        %3741 = vmatprep.subr.mxu0 0.0
        %3742 = vmatpush2.msra.mxu0 0.0
        %3743 = vmatprep.subr.mxu0 0.0
        %3744 = vmatpush2.msra.mxu0 0.0
        %3745 = vmatprep.subr.mxu0 0.0
        %3746 = vmatpush2.msra.mxu0 0.0
        %3747 = vmatprep.mubr.f32.mxu0 0.0
        %3748 = vmatmul.mubr.f32.gmra.mxu0 %v3660
        %v3749 = vpop.f32.mrf.mxu0
        %v3750 = vadd.f32 %v838, %v3749
        %v3751 = vpop.f32.mrf.mxu0
        %v3752 = vadd.f32 %v838, %v3751
        %3753 = vmatprep.mubr.f32.mxu0 0.0
        %3754 = vmatmul.mubr.f32.gmra.mxu0 %v3663
        %v3755 = vpop.f32.mrf.mxu0
        %v3756 = vadd.f32 %v843, %v3755
        %v3757 = vpop.f32.mrf.mxu0
        %v3758 = vadd.f32 %v843, %v3757
        %3759 = vmatprep.mubr.f32.mxu0 0.0
        %3760 = vmatmul.mubr.f32.gmra.mxu0 %v3666
        %v3761 = vpop.f32.mrf.mxu0
        %v3762 = vadd.f32 %v848, %v3761
        %v3763 = vpop.f32.mrf.mxu0
        %v3764 = vadd.f32 %v848, %v3763
        %3765 = vmatprep.mubr.f32.mxu0 0.0
        %3766 = vmatmul.mubr.f32.gmra.mxu0 %v3669
        %v3767 = vpop.f32.mrf.mxu0
        %v3768 = vadd.f32 %v853, %v3767
        %v3769 = vpop.f32.mrf.mxu0
        %v3770 = vadd.f32 %v853, %v3769
        %3771 = vmatprep.mubr.f32.mxu0 0.0
        %3772 = vmatmul.mubr.f32.gmra.mxu0 %v3672
        %v3773 = vpop.f32.mrf.mxu0
        %v3774 = vadd.f32 %v858, %v3773
        %v3775 = vpop.f32.mrf.mxu0
        %v3776 = vadd.f32 %v858, %v3775
        %3777 = vmatprep.mubr.f32.mxu0 0.0
        %3778 = vmatmul.mubr.f32.gmra.mxu0 %v3675
        %v3779 = vpop.f32.mrf.mxu0
        %v3780 = vadd.f32 %v863, %v3779
        %v3781 = vpop.f32.mrf.mxu0
        %v3782 = vadd.f32 %v863, %v3781
        %3783 = vmatprep.mubr.f32.mxu0 0.0
        %3784 = vmatmul.mubr.f32.gmra.mxu0 %v3678
        %v3785 = vpop.f32.mrf.mxu0
        %v3786 = vadd.f32 %v868, %v3785
        %v3787 = vpop.f32.mrf.mxu0
        %v3788 = vadd.f32 %v868, %v3787
        %3789 = vmatprep.mubr.f32.mxu0 0.0
        %3790 = vmatmul.mubr.f32.gmra.mxu0 %v3681
        %v3791 = vpop.f32.mrf.mxu0
        %v3792 = vadd.f32 %v873, %v3791
        %v3793 = vpop.f32.mrf.mxu0
        %v3794 = vadd.f32 %v873, %v3793
        %3795 = vdwg.mxu0
        %3796 = vmatprep.subr.mxu0 0.0
        %3797 = vmatpush1.msra.mxu0 0.0
        %3798 = vmatprep.subr.mxu0 0.0
        %3799 = vmatpush1.msra.mxu0 0.0
        %3800 = vmatprep.subr.mxu0 0.0
        %3801 = vmatpush1.msra.mxu0 0.0
        %3802 = vmatprep.subr.mxu0 0.0
        %3803 = vmatpush1.msra.mxu0 0.0
        %3804 = vmatprep.subr.mxu0 0.0
        %3805 = vmatpush1.msra.mxu0 0.0
        %3806 = vmatprep.subr.mxu0 0.0
        %3807 = vmatpush1.msra.mxu0 0.0
        %3808 = vmatprep.subr.mxu0 0.0
        %3809 = vmatpush1.msra.mxu0 0.0
        %3810 = vmatprep.subr.mxu0 0.0
        %3811 = vmatpush1.msra.mxu0 0.0
        %3812 = vmatprep.subr.mxu0 0.0
        %3813 = vmatpush1.msra.mxu0 %v3658
        %3814 = vmatprep.subr.mxu0 0.0
        %3815 = vmatpush1.msra.mxu0 %v3655
        %3816 = vmatprep.subr.mxu0 0.0
        %3817 = vmatpush1.msra.mxu0 %v3652
        %3818 = vmatprep.subr.mxu0 0.0
        %3819 = vmatpush1.msra.mxu0 %v3649
        %3820 = vmatprep.subr.mxu0 0.0
        %3821 = vmatpush1.msra.mxu0 %v3646
        %3822 = vmatprep.subr.mxu0 0.0
        %3823 = vmatpush1.msra.mxu0 %v3643
        %3824 = vmatprep.subr.mxu0 0.0
        %3825 = vmatpush1.msra.mxu0 %v3640
        %3826 = vmatprep.subr.mxu0 0.0
        %3827 = vmatpush1.msra.mxu0 %v3637
        %3828 = vmatprep.subr.mxu0 0.0
        %3829 = vmatpush2.msra.mxu0 0.0
        %3830 = vmatprep.subr.mxu0 0.0
        %3831 = vmatpush2.msra.mxu0 0.0
        %3832 = vmatprep.subr.mxu0 0.0
        %3833 = vmatpush2.msra.mxu0 0.0
        %3834 = vmatprep.subr.mxu0 0.0
        %3835 = vmatpush2.msra.mxu0 0.0
        %3836 = vmatprep.subr.mxu0 0.0
        %3837 = vmatpush2.msra.mxu0 0.0
        %3838 = vmatprep.subr.mxu0 0.0
        %3839 = vmatpush2.msra.mxu0 0.0
        %3840 = vmatprep.subr.mxu0 0.0
        %3841 = vmatpush2.msra.mxu0 0.0
        %3842 = vmatprep.subr.mxu0 0.0
        %3843 = vmatpush2.msra.mxu0 0.0
        %3844 = vmatprep.subr.mxu0 0.0
        %3845 = vmatpush2.msra.mxu0 0.0
        %3846 = vmatprep.subr.mxu0 0.0
        %3847 = vmatpush2.msra.mxu0 0.0
        %3848 = vmatprep.subr.mxu0 0.0
        %3849 = vmatpush2.msra.mxu0 0.0
        %3850 = vmatprep.subr.mxu0 0.0
        %3851 = vmatpush2.msra.mxu0 0.0
        %3852 = vmatprep.subr.mxu0 0.0
        %3853 = vmatpush2.msra.mxu0 0.0
        %3854 = vmatprep.subr.mxu0 0.0
        %3855 = vmatpush2.msra.mxu0 0.0
        %3856 = vmatprep.subr.mxu0 0.0
        %3857 = vmatpush2.msra.mxu0 0.0
        %3858 = vmatprep.subr.mxu0 0.0
        %3859 = vmatpush2.msra.mxu0 0.0
        %3860 = vmatprep.mubr.f32.mxu0 0.0
        %3861 = vmatmul.mubr.f32.gmra.mxu0 %v3660
        %v3862 = vpop.f32.mrf.mxu0
        %v3863 = vadd.f32 %v838, %v3862
        %v3864 = vpop.f32.mrf.mxu0
        %3865 = vmatprep.mubr.f32.mxu0 0.0
        %3866 = vmatmul.mubr.f32.gmra.mxu0 %v3663
        %v3867 = vpop.f32.mrf.mxu0
        %v3868 = vadd.f32 %v843, %v3867
        %v3869 = vpop.f32.mrf.mxu0
        %3870 = vmatprep.mubr.f32.mxu0 0.0
        %3871 = vmatmul.mubr.f32.gmra.mxu0 %v3666
        %v3872 = vpop.f32.mrf.mxu0
        %v3873 = vadd.f32 %v848, %v3872
        %v3874 = vpop.f32.mrf.mxu0
        %3875 = vmatprep.mubr.f32.mxu0 0.0
        %3876 = vmatmul.mubr.f32.gmra.mxu0 %v3669
        %v3877 = vpop.f32.mrf.mxu0
        %v3878 = vadd.f32 %v853, %v3877
        %v3879 = vpop.f32.mrf.mxu0
        %3880 = vmatprep.mubr.f32.mxu0 0.0
        %3881 = vmatmul.mubr.f32.gmra.mxu0 %v3672
        %v3882 = vpop.f32.mrf.mxu0
        %v3883 = vadd.f32 %v858, %v3882
        %v3884 = vpop.f32.mrf.mxu0
        %3885 = vmatprep.mubr.f32.mxu0 0.0
        %3886 = vmatmul.mubr.f32.gmra.mxu0 %v3675
        %v3887 = vpop.f32.mrf.mxu0
        %v3888 = vadd.f32 %v863, %v3887
        %v3889 = vpop.f32.mrf.mxu0
        %3890 = vmatprep.mubr.f32.mxu0 0.0
        %3891 = vmatmul.mubr.f32.gmra.mxu0 %v3678
        %v3892 = vpop.f32.mrf.mxu0
        %v3893 = vadd.f32 %v868, %v3892
        %v3894 = vpop.f32.mrf.mxu0
        %3895 = vmatprep.mubr.f32.mxu0 0.0
        %3896 = vmatmul.mubr.f32.gmra.mxu0 %v3681
        %v3897 = vpop.f32.mrf.mxu0
        %v3898 = vadd.f32 %v873, %v3897
        %v3899 = vpop.f32.mrf.mxu0
        %3900 = vdwg.mxu0
        %3901 = vmatprep.subr.mxu0 0.0
        %3902 = vmatpush1.msra.mxu0 0.0
        %3903 = vmatprep.subr.mxu0 0.0
        %3904 = vmatpush1.msra.mxu0 0.0
        %3905 = vmatprep.subr.mxu0 0.0
        %3906 = vmatpush1.msra.mxu0 0.0
        %3907 = vmatprep.subr.mxu0 0.0
        %3908 = vmatpush1.msra.mxu0 0.0
        %3909 = vmatprep.subr.mxu0 0.0
        %3910 = vmatpush1.msra.mxu0 0.0
        %3911 = vmatprep.subr.mxu0 0.0
        %3912 = vmatpush1.msra.mxu0 0.0
        %3913 = vmatprep.subr.mxu0 0.0
        %3914 = vmatpush1.msra.mxu0 0.0
        %3915 = vmatprep.subr.mxu0 0.0
        %3916 = vmatpush1.msra.mxu0 0.0
        %3917 = vmatprep.subr.mxu0 %v3794
        %3918 = vmatpush1.msra.mxu0 %v3792
        %3919 = vmatprep.subr.mxu0 %v3788
        %3920 = vmatpush1.msra.mxu0 %v3786
        %3921 = vmatprep.subr.mxu0 %v3782
        %3922 = vmatpush1.msra.mxu0 %v3780
        %3923 = vmatprep.subr.mxu0 %v3776
        %3924 = vmatpush1.msra.mxu0 %v3774
        %3925 = vmatprep.subr.mxu0 %v3770
        %3926 = vmatpush1.msra.mxu0 %v3768
        %3927 = vmatprep.subr.mxu0 %v3764
        %3928 = vmatpush1.msra.mxu0 %v3762
        %3929 = vmatprep.subr.mxu0 %v3758
        %3930 = vmatpush1.msra.mxu0 %v3756
        %3931 = vmatprep.subr.mxu0 %v3752
        %3932 = vmatpush1.msra.mxu0 %v3750
        %3933 = vmatprep.subr.mxu0 0.0
        %3934 = vmatpush2.msra.mxu0 0.0
        %3935 = vmatprep.subr.mxu0 0.0
        %3936 = vmatpush2.msra.mxu0 0.0
        %3937 = vmatprep.subr.mxu0 0.0
        %3938 = vmatpush2.msra.mxu0 0.0
        %3939 = vmatprep.subr.mxu0 0.0
        %3940 = vmatpush2.msra.mxu0 0.0
        %3941 = vmatprep.subr.mxu0 0.0
        %3942 = vmatpush2.msra.mxu0 0.0
        %3943 = vmatprep.subr.mxu0 0.0
        %3944 = vmatpush2.msra.mxu0 0.0
        %3945 = vmatprep.subr.mxu0 0.0
        %3946 = vmatpush2.msra.mxu0 0.0
        %3947 = vmatprep.subr.mxu0 0.0
        %3948 = vmatpush2.msra.mxu0 0.0
        %3949 = vmatprep.subr.mxu0 0.0
        %3950 = vmatpush2.msra.mxu0 0.0
        %3951 = vmatprep.subr.mxu0 0.0
        %3952 = vmatpush2.msra.mxu0 0.0
        %3953 = vmatprep.subr.mxu0 0.0
        %3954 = vmatpush2.msra.mxu0 0.0
        %3955 = vmatprep.subr.mxu0 0.0
        %3956 = vmatpush2.msra.mxu0 0.0
        %3957 = vmatprep.subr.mxu0 0.0
        %3958 = vmatpush2.msra.mxu0 0.0
        %3959 = vmatprep.subr.mxu0 0.0
        %3960 = vmatpush2.msra.mxu0 0.0
        %3961 = vmatprep.subr.mxu0 0.0
        %3962 = vmatpush2.msra.mxu0 0.0
        %3963 = vmatprep.subr.mxu0 0.0
        %3964 = vmatpush2.msra.mxu0 0.0
        %3965 = vmatprep.mubr.f32.mxu0 0.0
        %3966 = vmatmul.mubr.f32.gmra.mxu0 %v2571
        %v3967 = vpop.f32.mrf.mxu0
        %v3968 = vadd.f32 0.0, %v3967
        %v3969 = vpop.f32.mrf.mxu0
        %v3970 = vadd.f32 0.0, %v3969
        %3971 = vdwg.mxu0
        %3972 = vmatprep.subr.mxu0 0.0
        %3973 = vmatpush1.msra.mxu0 0.0
        %3974 = vmatprep.subr.mxu0 0.0
        %3975 = vmatpush1.msra.mxu0 0.0
        %3976 = vmatprep.subr.mxu0 0.0
        %3977 = vmatpush1.msra.mxu0 0.0
        %3978 = vmatprep.subr.mxu0 0.0
        %3979 = vmatpush1.msra.mxu0 0.0
        %3980 = vmatprep.subr.mxu0 0.0
        %3981 = vmatpush1.msra.mxu0 0.0
        %3982 = vmatprep.subr.mxu0 0.0
        %3983 = vmatpush1.msra.mxu0 0.0
        %3984 = vmatprep.subr.mxu0 0.0
        %3985 = vmatpush1.msra.mxu0 0.0
        %3986 = vmatprep.subr.mxu0 0.0
        %3987 = vmatpush1.msra.mxu0 0.0
        %3988 = vmatprep.subr.mxu0 0.0
        %3989 = vmatpush1.msra.mxu0 %v3898
        %3990 = vmatprep.subr.mxu0 0.0
        %3991 = vmatpush1.msra.mxu0 %v3893
        %3992 = vmatprep.subr.mxu0 0.0
        %3993 = vmatpush1.msra.mxu0 %v3888
        %3994 = vmatprep.subr.mxu0 0.0
        %3995 = vmatpush1.msra.mxu0 %v3883
        %3996 = vmatprep.subr.mxu0 0.0
        %3997 = vmatpush1.msra.mxu0 %v3878
        %3998 = vmatprep.subr.mxu0 0.0
        %3999 = vmatpush1.msra.mxu0 %v3873
        %4000 = vmatprep.subr.mxu0 0.0
        %4001 = vmatpush1.msra.mxu0 %v3868
        %4002 = vmatprep.subr.mxu0 0.0
        %4003 = vmatpush1.msra.mxu0 %v3863
        %4004 = vmatprep.subr.mxu0 0.0
        %4005 = vmatpush2.msra.mxu0 0.0
        %4006 = vmatprep.subr.mxu0 0.0
        %4007 = vmatpush2.msra.mxu0 0.0
        %4008 = vmatprep.subr.mxu0 0.0
        %4009 = vmatpush2.msra.mxu0 0.0
        %4010 = vmatprep.subr.mxu0 0.0
        %4011 = vmatpush2.msra.mxu0 0.0
        %4012 = vmatprep.subr.mxu0 0.0
        %4013 = vmatpush2.msra.mxu0 0.0
        %4014 = vmatprep.subr.mxu0 0.0
        %4015 = vmatpush2.msra.mxu0 0.0
        %4016 = vmatprep.subr.mxu0 0.0
        %4017 = vmatpush2.msra.mxu0 0.0
        %4018 = vmatprep.subr.mxu0 0.0
        %4019 = vmatpush2.msra.mxu0 0.0
        %4020 = vmatprep.subr.mxu0 0.0
        %4021 = vmatpush2.msra.mxu0 0.0
        %4022 = vmatprep.subr.mxu0 0.0
        %4023 = vmatpush2.msra.mxu0 0.0
        %4024 = vmatprep.subr.mxu0 0.0
        %4025 = vmatpush2.msra.mxu0 0.0
        %4026 = vmatprep.subr.mxu0 0.0
        %4027 = vmatpush2.msra.mxu0 0.0
        %4028 = vmatprep.subr.mxu0 0.0
        %4029 = vmatpush2.msra.mxu0 0.0
        %4030 = vmatprep.subr.mxu0 0.0
        %4031 = vmatpush2.msra.mxu0 0.0
        %4032 = vmatprep.subr.mxu0 0.0
        %4033 = vmatpush2.msra.mxu0 0.0
        %4034 = vmatprep.subr.mxu0 0.0
        %4035 = vmatpush2.msra.mxu0 0.0
        %4036 = vmatprep.mubr.f32.mxu0 0.0
        %4037 = vmatmul.mubr.f32.gmra.mxu0 %v2571
        %v4038 = vpop.f32.mrf.mxu0
        %v4039 = vadd.f32 0.0, %v4038
        %v4040 = vpop.f32.mrf.mxu0
        %4041 = vdwg.mxu0
        %v4042 = vmul.f32 %v3750, %v3750
        %v4043 = vmul.f32 %v3752, %v3752
        %v4044 = vmul.f32 %v3863, %v3863
        %v4045 = vmul.f32 %v3756, %v3756
        %v4046 = vmul.f32 %v3758, %v3758
        %v4047 = vmul.f32 %v3868, %v3868
        %v4048 = vmul.f32 %v3762, %v3762
        %v4049 = vmul.f32 %v3764, %v3764
        %v4050 = vmul.f32 %v3873, %v3873
        %v4051 = vmul.f32 %v3768, %v3768
        %v4052 = vmul.f32 %v3770, %v3770
        %v4053 = vmul.f32 %v3878, %v3878
        %v4054 = vmul.f32 %v3774, %v3774
        %v4055 = vmul.f32 %v3776, %v3776
        %v4056 = vmul.f32 %v3883, %v3883
        %v4057 = vmul.f32 %v3780, %v3780
        %v4058 = vmul.f32 %v3782, %v3782
        %v4059 = vmul.f32 %v3888, %v3888
        %v4060 = vmul.f32 %v3786, %v3786
        %v4061 = vmul.f32 %v3788, %v3788
        %v4062 = vmul.f32 %v3893, %v3893
        %v4063 = vmul.f32 %v3792, %v3792
        %v4064 = vmul.f32 %v3794, %v3794
        %v4065 = vmul.f32 %v3898, %v3898
        %4066 = vmatprep.subr.mxu0 0.0
        %4067 = vmatpush1.msra.mxu0 0.0
        %4068 = vmatprep.subr.mxu0 0.0
        %4069 = vmatpush1.msra.mxu0 0.0
        %4070 = vmatprep.subr.mxu0 0.0
        %4071 = vmatpush1.msra.mxu0 0.0
        %4072 = vmatprep.subr.mxu0 0.0
        %4073 = vmatpush1.msra.mxu0 0.0
        %4074 = vmatprep.subr.mxu0 0.0
        %4075 = vmatpush1.msra.mxu0 0.0
        %4076 = vmatprep.subr.mxu0 0.0
        %4077 = vmatpush1.msra.mxu0 0.0
        %4078 = vmatprep.subr.mxu0 0.0
        %4079 = vmatpush1.msra.mxu0 0.0
        %4080 = vmatprep.subr.mxu0 0.0
        %4081 = vmatpush1.msra.mxu0 0.0
        %4082 = vmatprep.subr.mxu0 %v4064
        %4083 = vmatpush1.msra.mxu0 %v4063
        %4084 = vmatprep.subr.mxu0 %v4061
        %4085 = vmatpush1.msra.mxu0 %v4060
        %4086 = vmatprep.subr.mxu0 %v4058
        %4087 = vmatpush1.msra.mxu0 %v4057
        %4088 = vmatprep.subr.mxu0 %v4055
        %4089 = vmatpush1.msra.mxu0 %v4054
        %4090 = vmatprep.subr.mxu0 %v4052
        %4091 = vmatpush1.msra.mxu0 %v4051
        %4092 = vmatprep.subr.mxu0 %v4049
        %4093 = vmatpush1.msra.mxu0 %v4048
        %4094 = vmatprep.subr.mxu0 %v4046
        %4095 = vmatpush1.msra.mxu0 %v4045
        %4096 = vmatprep.subr.mxu0 %v4043
        %4097 = vmatpush1.msra.mxu0 %v4042
        %4098 = vmatprep.subr.mxu0 0.0
        %4099 = vmatpush2.msra.mxu0 0.0
        %4100 = vmatprep.subr.mxu0 0.0
        %4101 = vmatpush2.msra.mxu0 0.0
        %4102 = vmatprep.subr.mxu0 0.0
        %4103 = vmatpush2.msra.mxu0 0.0
        %4104 = vmatprep.subr.mxu0 0.0
        %4105 = vmatpush2.msra.mxu0 0.0
        %4106 = vmatprep.subr.mxu0 0.0
        %4107 = vmatpush2.msra.mxu0 0.0
        %4108 = vmatprep.subr.mxu0 0.0
        %4109 = vmatpush2.msra.mxu0 0.0
        %4110 = vmatprep.subr.mxu0 0.0
        %4111 = vmatpush2.msra.mxu0 0.0
        %4112 = vmatprep.subr.mxu0 0.0
        %4113 = vmatpush2.msra.mxu0 0.0
        %4114 = vmatprep.subr.mxu0 0.0
        %4115 = vmatpush2.msra.mxu0 0.0
        %4116 = vmatprep.subr.mxu0 0.0
        %4117 = vmatpush2.msra.mxu0 0.0
        %4118 = vmatprep.subr.mxu0 0.0
        %4119 = vmatpush2.msra.mxu0 0.0
        %4120 = vmatprep.subr.mxu0 0.0
        %4121 = vmatpush2.msra.mxu0 0.0
        %4122 = vmatprep.subr.mxu0 0.0
        %4123 = vmatpush2.msra.mxu0 0.0
        %4124 = vmatprep.subr.mxu0 0.0
        %4125 = vmatpush2.msra.mxu0 0.0
        %4126 = vmatprep.subr.mxu0 0.0
        %4127 = vmatpush2.msra.mxu0 0.0
        %4128 = vmatprep.subr.mxu0 0.0
        %4129 = vmatpush2.msra.mxu0 0.0
        %4130 = vmatprep.mubr.f32.mxu0 0.0
        %4131 = vmatmul.mubr.f32.gmra.mxu0 %v2571
        %v4132 = vpop.f32.mrf.mxu0
        %v4133 = vadd.f32 0.0, %v4132
        %v4134 = vpop.f32.mrf.mxu0
        %v4135 = vadd.f32 0.0, %v4134
        %4136 = vdwg.mxu0
        %4137 = vmatprep.subr.mxu0 0.0
        %4138 = vmatpush1.msra.mxu0 0.0
        %4139 = vmatprep.subr.mxu0 0.0
        %4140 = vmatpush1.msra.mxu0 0.0
        %4141 = vmatprep.subr.mxu0 0.0
        %4142 = vmatpush1.msra.mxu0 0.0
        %4143 = vmatprep.subr.mxu0 0.0
        %4144 = vmatpush1.msra.mxu0 0.0
        %4145 = vmatprep.subr.mxu0 0.0
        %4146 = vmatpush1.msra.mxu0 0.0
        %4147 = vmatprep.subr.mxu0 0.0
        %4148 = vmatpush1.msra.mxu0 0.0
        %4149 = vmatprep.subr.mxu0 0.0
        %4150 = vmatpush1.msra.mxu0 0.0
        %4151 = vmatprep.subr.mxu0 0.0
        %4152 = vmatpush1.msra.mxu0 0.0
        %4153 = vmatprep.subr.mxu0 0.0
        %4154 = vmatpush1.msra.mxu0 %v4065
        %4155 = vmatprep.subr.mxu0 0.0
        %4156 = vmatpush1.msra.mxu0 %v4062
        %4157 = vmatprep.subr.mxu0 0.0
        %4158 = vmatpush1.msra.mxu0 %v4059
        %4159 = vmatprep.subr.mxu0 0.0
        %4160 = vmatpush1.msra.mxu0 %v4056
        %4161 = vmatprep.subr.mxu0 0.0
        %4162 = vmatpush1.msra.mxu0 %v4053
        %4163 = vmatprep.subr.mxu0 0.0
        %4164 = vmatpush1.msra.mxu0 %v4050
        %4165 = vmatprep.subr.mxu0 0.0
        %4166 = vmatpush1.msra.mxu0 %v4047
        %4167 = vmatprep.subr.mxu0 0.0
        %4168 = vmatpush1.msra.mxu0 %v4044
        %4169 = vmatprep.subr.mxu0 0.0
        %4170 = vmatpush2.msra.mxu0 0.0
        %4171 = vmatprep.subr.mxu0 0.0
        %4172 = vmatpush2.msra.mxu0 0.0
        %4173 = vmatprep.subr.mxu0 0.0
        %4174 = vmatpush2.msra.mxu0 0.0
        %4175 = vmatprep.subr.mxu0 0.0
        %4176 = vmatpush2.msra.mxu0 0.0
        %4177 = vmatprep.subr.mxu0 0.0
        %4178 = vmatpush2.msra.mxu0 0.0
        %4179 = vmatprep.subr.mxu0 0.0
        %4180 = vmatpush2.msra.mxu0 0.0
        %4181 = vmatprep.subr.mxu0 0.0
        %4182 = vmatpush2.msra.mxu0 0.0
        %4183 = vmatprep.subr.mxu0 0.0
        %4184 = vmatpush2.msra.mxu0 0.0
        %4185 = vmatprep.subr.mxu0 0.0
        %4186 = vmatpush2.msra.mxu0 0.0
        %4187 = vmatprep.subr.mxu0 0.0
        %4188 = vmatpush2.msra.mxu0 0.0
        %4189 = vmatprep.subr.mxu0 0.0
        %4190 = vmatpush2.msra.mxu0 0.0
        %4191 = vmatprep.subr.mxu0 0.0
        %4192 = vmatpush2.msra.mxu0 0.0
        %4193 = vmatprep.subr.mxu0 0.0
        %4194 = vmatpush2.msra.mxu0 0.0
        %4195 = vmatprep.subr.mxu0 0.0
        %4196 = vmatpush2.msra.mxu0 0.0
        %4197 = vmatprep.subr.mxu0 0.0
        %4198 = vmatpush2.msra.mxu0 0.0
        %4199 = vmatprep.subr.mxu0 0.0
        %4200 = vmatpush2.msra.mxu0 0.0
        %4201 = vmatprep.mubr.f32.mxu0 0.0
        %4202 = vmatmul.mubr.f32.gmra.mxu0 %v2571
        %v4203 = vpop.f32.mrf.mxu0
        %v4204 = vadd.f32 0.0, %v4203
        %v4205 = vpop.f32.mrf.mxu0
        %4206 = vdwg.mxu0
        %v4207 = vmul.f32 %v3968, %v3968
        %v4208 = vmul.f32 %v3970, %v3970
        %v4209 = vmul.f32 %v4039, %v4039
        %v4210 = vsub.f32 %v4133, %v4207
        %v4211 = vsub.f32 %v4135, %v4208
        %v4212 = vsub.f32 %v4204, %v4209
        %v4213 = vadd.f32 %v4210, 1e-05
        %v4214 = vadd.f32 %v4211, 1e-05
        %v4215 = vadd.f32 %v4212, 1e-05
        %v4216 = vrsqrt.pop %v4213
        %v4217 = vrsqrt.pop %v4214
        %v4218 = vrsqrt.pop %v4215
        %v4219 = vlaneseq
        %v4220 = vshrl.u32 %v4219, 7
        %v4221 = vsub.s32 0, %v4220
        %v4222 = vrot.slane %v3968, %v4221
        %v4223 = vlaneseq
        %v4224 = vshrl.u32 %v4223, 7
        %v4225 = vsub.s32 0, %v4224
        %v4226 = vrot.slane %v3970, %v4225
        %v4227 = vlaneseq
        %v4228 = vshrl.u32 %v4227, 7
        %v4229 = vsub.s32 0, %v4228
        %v4230 = vrot.slane %v4039, %v4229
        %v4231 = vsub.f32 %v3750, %v4222
        %v4232 = vsub.f32 %v3752, %v4226
        %v4233 = vsub.f32 %v3863, %v4230
        %v4234 = vsub.f32 %v3756, %v4222
        %v4235 = vsub.f32 %v3758, %v4226
        %v4236 = vsub.f32 %v3868, %v4230
        %v4237 = vsub.f32 %v3762, %v4222
        %v4238 = vsub.f32 %v3764, %v4226
        %v4239 = vsub.f32 %v3873, %v4230
        %v4240 = vsub.f32 %v3768, %v4222
        %v4241 = vsub.f32 %v3770, %v4226
        %v4242 = vsub.f32 %v3878, %v4230
        %v4243 = vsub.f32 %v3774, %v4222
        %v4244 = vsub.f32 %v3776, %v4226
        %v4245 = vsub.f32 %v3883, %v4230
        %v4246 = vsub.f32 %v3780, %v4222
        %v4247 = vsub.f32 %v3782, %v4226
        %v4248 = vsub.f32 %v3888, %v4230
        %v4249 = vsub.f32 %v3786, %v4222
        %v4250 = vsub.f32 %v3788, %v4226
        %v4251 = vsub.f32 %v3893, %v4230
        %v4252 = vsub.f32 %v3792, %v4222
        %v4253 = vsub.f32 %v3794, %v4226
        %v4254 = vsub.f32 %v3898, %v4230
        %v4255 = vlaneseq
        %v4256 = vshrl.u32 %v4255, 7
        %v4257 = vsub.s32 0, %v4256
        %v4258 = vrot.slane %v4216, %v4257
        %v4259 = vlaneseq
        %v4260 = vshrl.u32 %v4259, 7
        %v4261 = vsub.s32 0, %v4260
        %v4262 = vrot.slane %v4217, %v4261
        %v4263 = vlaneseq
        %v4264 = vshrl.u32 %v4263, 7
        %v4265 = vsub.s32 0, %v4264
        %v4266 = vrot.slane %v4218, %v4265
        %v4267 = vmul.f32 %v4231, %v4258
        %v4268 = vmul.f32 %v4232, %v4262
        %v4269 = vmul.f32 %v4233, %v4266
        %v4270 = vmul.f32 %v4234, %v4258
        %v4271 = vmul.f32 %v4235, %v4262
        %v4272 = vmul.f32 %v4236, %v4266
        %v4273 = vmul.f32 %v4237, %v4258
        %v4274 = vmul.f32 %v4238, %v4262
        %v4275 = vmul.f32 %v4239, %v4266
        %v4276 = vmul.f32 %v4240, %v4258
        %v4277 = vmul.f32 %v4241, %v4262
        %v4278 = vmul.f32 %v4242, %v4266
        %v4279 = vmul.f32 %v4243, %v4258
        %v4280 = vmul.f32 %v4244, %v4262
        %v4281 = vmul.f32 %v4245, %v4266
        %v4282 = vmul.f32 %v4246, %v4258
        %v4283 = vmul.f32 %v4247, %v4262
        %v4284 = vmul.f32 %v4248, %v4266
        %v4285 = vmul.f32 %v4249, %v4258
        %v4286 = vmul.f32 %v4250, %v4262
        %v4287 = vmul.f32 %v4251, %v4266
        %v4288 = vmul.f32 %v4252, %v4258
        %v4289 = vmul.f32 %v4253, %v4262
        %v4290 = vmul.f32 %v4254, %v4266
        %v4291 = vmul.f32 %v4267, %v742
        %v4292 = vmul.f32 %v4268, %v742
        %v4293 = vmul.f32 %v4269, %v742
        %v4294 = vmul.f32 %v4270, %v747
        %v4295 = vmul.f32 %v4271, %v747
        %v4296 = vmul.f32 %v4272, %v747
        %v4297 = vmul.f32 %v4273, %v752
        %v4298 = vmul.f32 %v4274, %v752
        %v4299 = vmul.f32 %v4275, %v752
        %v4300 = vmul.f32 %v4276, %v757
        %v4301 = vmul.f32 %v4277, %v757
        %v4302 = vmul.f32 %v4278, %v757
        %v4303 = vmul.f32 %v4279, %v762
        %v4304 = vmul.f32 %v4280, %v762
        %v4305 = vmul.f32 %v4281, %v762
        %v4306 = vmul.f32 %v4282, %v767
        %v4307 = vmul.f32 %v4283, %v767
        %v4308 = vmul.f32 %v4284, %v767
        %v4309 = vmul.f32 %v4285, %v772
        %v4310 = vmul.f32 %v4286, %v772
        %v4311 = vmul.f32 %v4287, %v772
        %v4312 = vmul.f32 %v4288, %v777
        %v4313 = vmul.f32 %v4289, %v777
        %v4314 = vmul.f32 %v4290, %v777
        %v4315 = vadd.f32 %v4291, %v790
        %v4316 = vadd.f32 %v4292, %v790
        %v4317 = vadd.f32 %v4293, %v790
        %v4318 = vadd.f32 %v4294, %v795
        %v4319 = vadd.f32 %v4295, %v795
        %v4320 = vadd.f32 %v4296, %v795
        %v4321 = vadd.f32 %v4297, %v800
        %v4322 = vadd.f32 %v4298, %v800
        %v4323 = vadd.f32 %v4299, %v800
        %v4324 = vadd.f32 %v4300, %v805
        %v4325 = vadd.f32 %v4301, %v805
        %v4326 = vadd.f32 %v4302, %v805
        %v4327 = vadd.f32 %v4303, %v810
        %v4328 = vadd.f32 %v4304, %v810
        %v4329 = vadd.f32 %v4305, %v810
        %v4330 = vadd.f32 %v4306, %v815
        %v4331 = vadd.f32 %v4307, %v815
        %v4332 = vadd.f32 %v4308, %v815
        %v4333 = vadd.f32 %v4309, %v820
        %v4334 = vadd.f32 %v4310, %v820
        %v4335 = vadd.f32 %v4311, %v820
        %v4336 = vadd.f32 %v4312, %v825
        %v4337 = vadd.f32 %v4313, %v825
        %v4338 = vadd.f32 %v4314, %v825
        %v4339 = vmul.f32 %v4315, 0.5
        %v4340 = vmul.f32 %v4316, 0.5
        %v4341 = vmul.f32 %v4317, 0.5
        %v4342 = vmul.f32 %v4318, 0.5
        %v4343 = vmul.f32 %v4319, 0.5
        %v4344 = vmul.f32 %v4320, 0.5
        %v4345 = vmul.f32 %v4321, 0.5
        %v4346 = vmul.f32 %v4322, 0.5
        %v4347 = vmul.f32 %v4323, 0.5
        %v4348 = vmul.f32 %v4324, 0.5
        %v4349 = vmul.f32 %v4325, 0.5
        %v4350 = vmul.f32 %v4326, 0.5
        %v4351 = vmul.f32 %v4327, 0.5
        %v4352 = vmul.f32 %v4328, 0.5
        %v4353 = vmul.f32 %v4329, 0.5
        %v4354 = vmul.f32 %v4330, 0.5
        %v4355 = vmul.f32 %v4331, 0.5
        %v4356 = vmul.f32 %v4332, 0.5
        %v4357 = vmul.f32 %v4333, 0.5
        %v4358 = vmul.f32 %v4334, 0.5
        %v4359 = vmul.f32 %v4335, 0.5
        %v4360 = vmul.f32 %v4336, 0.5
        %v4361 = vmul.f32 %v4337, 0.5
        %v4362 = vmul.f32 %v4338, 0.5
        %v4363 = vmul.f32 %v4315, 0.70710677
        %v4364 = vmul.f32 %v4316, 0.70710677
        %v4365 = vmul.f32 %v4317, 0.70710677
        %v4366 = vmul.f32 %v4318, 0.70710677
        %v4367 = vmul.f32 %v4319, 0.70710677
        %v4368 = vmul.f32 %v4320, 0.70710677
        %v4369 = vmul.f32 %v4321, 0.70710677
        %v4370 = vmul.f32 %v4322, 0.70710677
        %v4371 = vmul.f32 %v4323, 0.70710677
        %v4372 = vmul.f32 %v4324, 0.70710677
        %v4373 = vmul.f32 %v4325, 0.70710677
        %v4374 = vmul.f32 %v4326, 0.70710677
        %v4375 = vmul.f32 %v4327, 0.70710677
        %v4376 = vmul.f32 %v4328, 0.70710677
        %v4377 = vmul.f32 %v4329, 0.70710677
        %v4378 = vmul.f32 %v4330, 0.70710677
        %v4379 = vmul.f32 %v4331, 0.70710677
        %v4380 = vmul.f32 %v4332, 0.70710677
        %v4381 = vmul.f32 %v4333, 0.70710677
        %v4382 = vmul.f32 %v4334, 0.70710677
        %v4383 = vmul.f32 %v4335, 0.70710677
        %v4384 = vmul.f32 %v4336, 0.70710677
        %v4385 = vmul.f32 %v4337, 0.70710677
        %v4386 = vmul.f32 %v4338, 0.70710677
        %v4387 = vand.u32 2147483647, %v4363
        %v4388 = vand.u32 2147483647, %v4364
        %v4389 = vand.u32 2147483647, %v4365
        %v4390 = vand.u32 2147483647, %v4366
        %v4391 = vand.u32 2147483647, %v4367
        %v4392 = vand.u32 2147483647, %v4368
        %v4393 = vand.u32 2147483647, %v4369
        %v4394 = vand.u32 2147483647, %v4370
        %v4395 = vand.u32 2147483647, %v4371
        %v4396 = vand.u32 2147483647, %v4372
        %v4397 = vand.u32 2147483647, %v4373
        %v4398 = vand.u32 2147483647, %v4374
        %v4399 = vand.u32 2147483647, %v4375
        %v4400 = vand.u32 2147483647, %v4376
        %v4401 = vand.u32 2147483647, %v4377
        %v4402 = vand.u32 2147483647, %v4378
        %v4403 = vand.u32 2147483647, %v4379
        %v4404 = vand.u32 2147483647, %v4380
        %v4405 = vand.u32 2147483647, %v4381
        %v4406 = vand.u32 2147483647, %v4382
        %v4407 = vand.u32 2147483647, %v4383
        %v4408 = vand.u32 2147483647, %v4384
        %v4409 = vand.u32 2147483647, %v4385
        %v4410 = vand.u32 2147483647, %v4386
        %v4411 = vmul.f32 %v4387, 0.3275911
        %v4412 = vmul.f32 %v4388, 0.3275911
        %v4413 = vmul.f32 %v4389, 0.3275911
        %v4414 = vmul.f32 %v4390, 0.3275911
        %v4415 = vmul.f32 %v4391, 0.3275911
        %v4416 = vmul.f32 %v4392, 0.3275911
        %v4417 = vmul.f32 %v4393, 0.3275911
        %v4418 = vmul.f32 %v4394, 0.3275911
        %v4419 = vmul.f32 %v4395, 0.3275911
        %v4420 = vmul.f32 %v4396, 0.3275911
        %v4421 = vmul.f32 %v4397, 0.3275911
        %v4422 = vmul.f32 %v4398, 0.3275911
        %v4423 = vmul.f32 %v4399, 0.3275911
        %v4424 = vmul.f32 %v4400, 0.3275911
        %v4425 = vmul.f32 %v4401, 0.3275911
        %v4426 = vmul.f32 %v4402, 0.3275911
        %v4427 = vmul.f32 %v4403, 0.3275911
        %v4428 = vmul.f32 %v4404, 0.3275911
        %v4429 = vmul.f32 %v4405, 0.3275911
        %v4430 = vmul.f32 %v4406, 0.3275911
        %v4431 = vmul.f32 %v4407, 0.3275911
        %v4432 = vmul.f32 %v4408, 0.3275911
        %v4433 = vmul.f32 %v4409, 0.3275911
        %v4434 = vmul.f32 %v4410, 0.3275911
        %v4435 = vadd.f32 %v4411, 1.0
        %v4436 = vadd.f32 %v4412, 1.0
        %v4437 = vadd.f32 %v4413, 1.0
        %v4438 = vadd.f32 %v4414, 1.0
        %v4439 = vadd.f32 %v4415, 1.0
        %v4440 = vadd.f32 %v4416, 1.0
        %v4441 = vadd.f32 %v4417, 1.0
        %v4442 = vadd.f32 %v4418, 1.0
        %v4443 = vadd.f32 %v4419, 1.0
        %v4444 = vadd.f32 %v4420, 1.0
        %v4445 = vadd.f32 %v4421, 1.0
        %v4446 = vadd.f32 %v4422, 1.0
        %v4447 = vadd.f32 %v4423, 1.0
        %v4448 = vadd.f32 %v4424, 1.0
        %v4449 = vadd.f32 %v4425, 1.0
        %v4450 = vadd.f32 %v4426, 1.0
        %v4451 = vadd.f32 %v4427, 1.0
        %v4452 = vadd.f32 %v4428, 1.0
        %v4453 = vadd.f32 %v4429, 1.0
        %v4454 = vadd.f32 %v4430, 1.0
        %v4455 = vadd.f32 %v4431, 1.0
        %v4456 = vadd.f32 %v4432, 1.0
        %v4457 = vadd.f32 %v4433, 1.0
        %v4458 = vadd.f32 %v4434, 1.0
        %v4459 = vrcp.pop %v4435
        %v4460 = vmul.f32 1.0, %v4459
        %v4461 = vrcp.pop %v4436
        %v4462 = vmul.f32 1.0, %v4461
        %v4463 = vrcp.pop %v4437
        %v4464 = vmul.f32 1.0, %v4463
        %v4465 = vrcp.pop %v4438
        %v4466 = vmul.f32 1.0, %v4465
        %v4467 = vrcp.pop %v4439
        %v4468 = vmul.f32 1.0, %v4467
        %v4469 = vrcp.pop %v4440
        %v4470 = vmul.f32 1.0, %v4469
        %v4471 = vrcp.pop %v4441
        %v4472 = vmul.f32 1.0, %v4471
        %v4473 = vrcp.pop %v4442
        %v4474 = vmul.f32 1.0, %v4473
        %v4475 = vrcp.pop %v4443
        %v4476 = vmul.f32 1.0, %v4475
        %v4477 = vrcp.pop %v4444
        %v4478 = vmul.f32 1.0, %v4477
        %v4479 = vrcp.pop %v4445
        %v4480 = vmul.f32 1.0, %v4479
        %v4481 = vrcp.pop %v4446
        %v4482 = vmul.f32 1.0, %v4481
        %v4483 = vrcp.pop %v4447
        %v4484 = vmul.f32 1.0, %v4483
        %v4485 = vrcp.pop %v4448
        %v4486 = vmul.f32 1.0, %v4485
        %v4487 = vrcp.pop %v4449
        %v4488 = vmul.f32 1.0, %v4487
        %v4489 = vrcp.pop %v4450
        %v4490 = vmul.f32 1.0, %v4489
        %v4491 = vrcp.pop %v4451
        %v4492 = vmul.f32 1.0, %v4491
        %v4493 = vrcp.pop %v4452
        %v4494 = vmul.f32 1.0, %v4493
        %v4495 = vrcp.pop %v4453
        %v4496 = vmul.f32 1.0, %v4495
        %v4497 = vrcp.pop %v4454
        %v4498 = vmul.f32 1.0, %v4497
        %v4499 = vrcp.pop %v4455
        %v4500 = vmul.f32 1.0, %v4499
        %v4501 = vrcp.pop %v4456
        %v4502 = vmul.f32 1.0, %v4501
        %v4503 = vrcp.pop %v4457
        %v4504 = vmul.f32 1.0, %v4503
        %v4505 = vrcp.pop %v4458
        %v4506 = vmul.f32 1.0, %v4505
        %v4507 = vmul.f32 %v4460, 1.0614054
        %v4508 = vmul.f32 %v4462, 1.0614054
        %v4509 = vmul.f32 %v4464, 1.0614054
        %v4510 = vmul.f32 %v4466, 1.0614054
        %v4511 = vmul.f32 %v4468, 1.0614054
        %v4512 = vmul.f32 %v4470, 1.0614054
        %v4513 = vmul.f32 %v4472, 1.0614054
        %v4514 = vmul.f32 %v4474, 1.0614054
        %v4515 = vmul.f32 %v4476, 1.0614054
        %v4516 = vmul.f32 %v4478, 1.0614054
        %v4517 = vmul.f32 %v4480, 1.0614054
        %v4518 = vmul.f32 %v4482, 1.0614054
        %v4519 = vmul.f32 %v4484, 1.0614054
        %v4520 = vmul.f32 %v4486, 1.0614054
        %v4521 = vmul.f32 %v4488, 1.0614054
        %v4522 = vmul.f32 %v4490, 1.0614054
        %v4523 = vmul.f32 %v4492, 1.0614054
        %v4524 = vmul.f32 %v4494, 1.0614054
        %v4525 = vmul.f32 %v4496, 1.0614054
        %v4526 = vmul.f32 %v4498, 1.0614054
        %v4527 = vmul.f32 %v4500, 1.0614054
        %v4528 = vmul.f32 %v4502, 1.0614054
        %v4529 = vmul.f32 %v4504, 1.0614054
        %v4530 = vmul.f32 %v4506, 1.0614054
        %v4531 = vadd.f32 %v4507, -1.4531521
        %v4532 = vadd.f32 %v4508, -1.4531521
        %v4533 = vadd.f32 %v4509, -1.4531521
        %v4534 = vadd.f32 %v4510, -1.4531521
        %v4535 = vadd.f32 %v4511, -1.4531521
        %v4536 = vadd.f32 %v4512, -1.4531521
        %v4537 = vadd.f32 %v4513, -1.4531521
        %v4538 = vadd.f32 %v4514, -1.4531521
        %v4539 = vadd.f32 %v4515, -1.4531521
        %v4540 = vadd.f32 %v4516, -1.4531521
        %v4541 = vadd.f32 %v4517, -1.4531521
        %v4542 = vadd.f32 %v4518, -1.4531521
        %v4543 = vadd.f32 %v4519, -1.4531521
        %v4544 = vadd.f32 %v4520, -1.4531521
        %v4545 = vadd.f32 %v4521, -1.4531521
        %v4546 = vadd.f32 %v4522, -1.4531521
        %v4547 = vadd.f32 %v4523, -1.4531521
        %v4548 = vadd.f32 %v4524, -1.4531521
        %v4549 = vadd.f32 %v4525, -1.4531521
        %v4550 = vadd.f32 %v4526, -1.4531521
        %v4551 = vadd.f32 %v4527, -1.4531521
        %v4552 = vadd.f32 %v4528, -1.4531521
        %v4553 = vadd.f32 %v4529, -1.4531521
        %v4554 = vadd.f32 %v4530, -1.4531521
        %v4555 = vmul.f32 %v4531, %v4460
        %v4556 = vmul.f32 %v4532, %v4462
        %v4557 = vmul.f32 %v4533, %v4464
        %v4558 = vmul.f32 %v4534, %v4466
        %v4559 = vmul.f32 %v4535, %v4468
        %v4560 = vmul.f32 %v4536, %v4470
        %v4561 = vmul.f32 %v4537, %v4472
        %v4562 = vmul.f32 %v4538, %v4474
        %v4563 = vmul.f32 %v4539, %v4476
        %v4564 = vmul.f32 %v4540, %v4478
        %v4565 = vmul.f32 %v4541, %v4480
        %v4566 = vmul.f32 %v4542, %v4482
        %v4567 = vmul.f32 %v4543, %v4484
        %v4568 = vmul.f32 %v4544, %v4486
        %v4569 = vmul.f32 %v4545, %v4488
        %v4570 = vmul.f32 %v4546, %v4490
        %v4571 = vmul.f32 %v4547, %v4492
        %v4572 = vmul.f32 %v4548, %v4494
        %v4573 = vmul.f32 %v4549, %v4496
        %v4574 = vmul.f32 %v4550, %v4498
        %v4575 = vmul.f32 %v4551, %v4500
        %v4576 = vmul.f32 %v4552, %v4502
        %v4577 = vmul.f32 %v4553, %v4504
        %v4578 = vmul.f32 %v4554, %v4506
        %v4579 = vadd.f32 %v4555, 1.4214138
        %v4580 = vadd.f32 %v4556, 1.4214138
        %v4581 = vadd.f32 %v4557, 1.4214138
        %v4582 = vadd.f32 %v4558, 1.4214138
        %v4583 = vadd.f32 %v4559, 1.4214138
        %v4584 = vadd.f32 %v4560, 1.4214138
        %v4585 = vadd.f32 %v4561, 1.4214138
        %v4586 = vadd.f32 %v4562, 1.4214138
        %v4587 = vadd.f32 %v4563, 1.4214138
        %v4588 = vadd.f32 %v4564, 1.4214138
        %v4589 = vadd.f32 %v4565, 1.4214138
        %v4590 = vadd.f32 %v4566, 1.4214138
        %v4591 = vadd.f32 %v4567, 1.4214138
        %v4592 = vadd.f32 %v4568, 1.4214138
        %v4593 = vadd.f32 %v4569, 1.4214138
        %v4594 = vadd.f32 %v4570, 1.4214138
        %v4595 = vadd.f32 %v4571, 1.4214138
        %v4596 = vadd.f32 %v4572, 1.4214138
        %v4597 = vadd.f32 %v4573, 1.4214138
        %v4598 = vadd.f32 %v4574, 1.4214138
        %v4599 = vadd.f32 %v4575, 1.4214138
        %v4600 = vadd.f32 %v4576, 1.4214138
        %v4601 = vadd.f32 %v4577, 1.4214138
        %v4602 = vadd.f32 %v4578, 1.4214138
        %v4603 = vmul.f32 %v4579, %v4460
        %v4604 = vmul.f32 %v4580, %v4462
        %v4605 = vmul.f32 %v4581, %v4464
        %v4606 = vmul.f32 %v4582, %v4466
        %v4607 = vmul.f32 %v4583, %v4468
        %v4608 = vmul.f32 %v4584, %v4470
        %v4609 = vmul.f32 %v4585, %v4472
        %v4610 = vmul.f32 %v4586, %v4474
        %v4611 = vmul.f32 %v4587, %v4476
        %v4612 = vmul.f32 %v4588, %v4478
        %v4613 = vmul.f32 %v4589, %v4480
        %v4614 = vmul.f32 %v4590, %v4482
        %v4615 = vmul.f32 %v4591, %v4484
        %v4616 = vmul.f32 %v4592, %v4486
        %v4617 = vmul.f32 %v4593, %v4488
        %v4618 = vmul.f32 %v4594, %v4490
        %v4619 = vmul.f32 %v4595, %v4492
        %v4620 = vmul.f32 %v4596, %v4494
        %v4621 = vmul.f32 %v4597, %v4496
        %v4622 = vmul.f32 %v4598, %v4498
        %v4623 = vmul.f32 %v4599, %v4500
        %v4624 = vmul.f32 %v4600, %v4502
        %v4625 = vmul.f32 %v4601, %v4504
        %v4626 = vmul.f32 %v4602, %v4506
        %v4627 = vadd.f32 %v4603, -0.28449672
        %v4628 = vadd.f32 %v4604, -0.28449672
        %v4629 = vadd.f32 %v4605, -0.28449672
        %v4630 = vadd.f32 %v4606, -0.28449672
        %v4631 = vadd.f32 %v4607, -0.28449672
        %v4632 = vadd.f32 %v4608, -0.28449672
        %v4633 = vadd.f32 %v4609, -0.28449672
        %v4634 = vadd.f32 %v4610, -0.28449672
        %v4635 = vadd.f32 %v4611, -0.28449672
        %v4636 = vadd.f32 %v4612, -0.28449672
        %v4637 = vadd.f32 %v4613, -0.28449672
        %v4638 = vadd.f32 %v4614, -0.28449672
        %v4639 = vadd.f32 %v4615, -0.28449672
        %v4640 = vadd.f32 %v4616, -0.28449672
        %v4641 = vadd.f32 %v4617, -0.28449672
        %v4642 = vadd.f32 %v4618, -0.28449672
        %v4643 = vadd.f32 %v4619, -0.28449672
        %v4644 = vadd.f32 %v4620, -0.28449672
        %v4645 = vadd.f32 %v4621, -0.28449672
        %v4646 = vadd.f32 %v4622, -0.28449672
        %v4647 = vadd.f32 %v4623, -0.28449672
        %v4648 = vadd.f32 %v4624, -0.28449672
        %v4649 = vadd.f32 %v4625, -0.28449672
        %v4650 = vadd.f32 %v4626, -0.28449672
        %v4651 = vmul.f32 %v4627, %v4460
        %v4652 = vmul.f32 %v4628, %v4462
        %v4653 = vmul.f32 %v4629, %v4464
        %v4654 = vmul.f32 %v4630, %v4466
        %v4655 = vmul.f32 %v4631, %v4468
        %v4656 = vmul.f32 %v4632, %v4470
        %v4657 = vmul.f32 %v4633, %v4472
        %v4658 = vmul.f32 %v4634, %v4474
        %v4659 = vmul.f32 %v4635, %v4476
        %v4660 = vmul.f32 %v4636, %v4478
        %v4661 = vmul.f32 %v4637, %v4480
        %v4662 = vmul.f32 %v4638, %v4482
        %v4663 = vmul.f32 %v4639, %v4484
        %v4664 = vmul.f32 %v4640, %v4486
        %v4665 = vmul.f32 %v4641, %v4488
        %v4666 = vmul.f32 %v4642, %v4490
        %v4667 = vmul.f32 %v4643, %v4492
        %v4668 = vmul.f32 %v4644, %v4494
        %v4669 = vmul.f32 %v4645, %v4496
        %v4670 = vmul.f32 %v4646, %v4498
        %v4671 = vmul.f32 %v4647, %v4500
        %v4672 = vmul.f32 %v4648, %v4502
        %v4673 = vmul.f32 %v4649, %v4504
        %v4674 = vmul.f32 %v4650, %v4506
        %v4675 = vadd.f32 %v4651, 0.2548296
        %v4676 = vadd.f32 %v4652, 0.2548296
        %v4677 = vadd.f32 %v4653, 0.2548296
        %v4678 = vadd.f32 %v4654, 0.2548296
        %v4679 = vadd.f32 %v4655, 0.2548296
        %v4680 = vadd.f32 %v4656, 0.2548296
        %v4681 = vadd.f32 %v4657, 0.2548296
        %v4682 = vadd.f32 %v4658, 0.2548296
        %v4683 = vadd.f32 %v4659, 0.2548296
        %v4684 = vadd.f32 %v4660, 0.2548296
        %v4685 = vadd.f32 %v4661, 0.2548296
        %v4686 = vadd.f32 %v4662, 0.2548296
        %v4687 = vadd.f32 %v4663, 0.2548296
        %v4688 = vadd.f32 %v4664, 0.2548296
        %v4689 = vadd.f32 %v4665, 0.2548296
        %v4690 = vadd.f32 %v4666, 0.2548296
        %v4691 = vadd.f32 %v4667, 0.2548296
        %v4692 = vadd.f32 %v4668, 0.2548296
        %v4693 = vadd.f32 %v4669, 0.2548296
        %v4694 = vadd.f32 %v4670, 0.2548296
        %v4695 = vadd.f32 %v4671, 0.2548296
        %v4696 = vadd.f32 %v4672, 0.2548296
        %v4697 = vadd.f32 %v4673, 0.2548296
        %v4698 = vadd.f32 %v4674, 0.2548296
        %v4699 = vmul.f32 %v4675, %v4460
        %v4700 = vmul.f32 %v4676, %v4462
        %v4701 = vmul.f32 %v4677, %v4464
        %v4702 = vmul.f32 %v4678, %v4466
        %v4703 = vmul.f32 %v4679, %v4468
        %v4704 = vmul.f32 %v4680, %v4470
        %v4705 = vmul.f32 %v4681, %v4472
        %v4706 = vmul.f32 %v4682, %v4474
        %v4707 = vmul.f32 %v4683, %v4476
        %v4708 = vmul.f32 %v4684, %v4478
        %v4709 = vmul.f32 %v4685, %v4480
        %v4710 = vmul.f32 %v4686, %v4482
        %v4711 = vmul.f32 %v4687, %v4484
        %v4712 = vmul.f32 %v4688, %v4486
        %v4713 = vmul.f32 %v4689, %v4488
        %v4714 = vmul.f32 %v4690, %v4490
        %v4715 = vmul.f32 %v4691, %v4492
        %v4716 = vmul.f32 %v4692, %v4494
        %v4717 = vmul.f32 %v4693, %v4496
        %v4718 = vmul.f32 %v4694, %v4498
        %v4719 = vmul.f32 %v4695, %v4500
        %v4720 = vmul.f32 %v4696, %v4502
        %v4721 = vmul.f32 %v4697, %v4504
        %v4722 = vmul.f32 %v4698, %v4506
        %v4723 = vsub.f32 0.0, %v4387
        %v4724 = vsub.f32 0.0, %v4388
        %v4725 = vsub.f32 0.0, %v4389
        %v4726 = vsub.f32 0.0, %v4390
        %v4727 = vsub.f32 0.0, %v4391
        %v4728 = vsub.f32 0.0, %v4392
        %v4729 = vsub.f32 0.0, %v4393
        %v4730 = vsub.f32 0.0, %v4394
        %v4731 = vsub.f32 0.0, %v4395
        %v4732 = vsub.f32 0.0, %v4396
        %v4733 = vsub.f32 0.0, %v4397
        %v4734 = vsub.f32 0.0, %v4398
        %v4735 = vsub.f32 0.0, %v4399
        %v4736 = vsub.f32 0.0, %v4400
        %v4737 = vsub.f32 0.0, %v4401
        %v4738 = vsub.f32 0.0, %v4402
        %v4739 = vsub.f32 0.0, %v4403
        %v4740 = vsub.f32 0.0, %v4404
        %v4741 = vsub.f32 0.0, %v4405
        %v4742 = vsub.f32 0.0, %v4406
        %v4743 = vsub.f32 0.0, %v4407
        %v4744 = vsub.f32 0.0, %v4408
        %v4745 = vsub.f32 0.0, %v4409
        %v4746 = vsub.f32 0.0, %v4410
        %v4747 = vmul.f32 %v4723, %v4387
        %v4748 = vmul.f32 %v4724, %v4388
        %v4749 = vmul.f32 %v4725, %v4389
        %v4750 = vmul.f32 %v4726, %v4390
        %v4751 = vmul.f32 %v4727, %v4391
        %v4752 = vmul.f32 %v4728, %v4392
        %v4753 = vmul.f32 %v4729, %v4393
        %v4754 = vmul.f32 %v4730, %v4394
        %v4755 = vmul.f32 %v4731, %v4395
        %v4756 = vmul.f32 %v4732, %v4396
        %v4757 = vmul.f32 %v4733, %v4397
        %v4758 = vmul.f32 %v4734, %v4398
        %v4759 = vmul.f32 %v4735, %v4399
        %v4760 = vmul.f32 %v4736, %v4400
        %v4761 = vmul.f32 %v4737, %v4401
        %v4762 = vmul.f32 %v4738, %v4402
        %v4763 = vmul.f32 %v4739, %v4403
        %v4764 = vmul.f32 %v4740, %v4404
        %v4765 = vmul.f32 %v4741, %v4405
        %v4766 = vmul.f32 %v4742, %v4406
        %v4767 = vmul.f32 %v4743, %v4407
        %v4768 = vmul.f32 %v4744, %v4408
        %v4769 = vmul.f32 %v4745, %v4409
        %v4770 = vmul.f32 %v4746, %v4410
        %v4771 = vmul.f32 %v4747, 1.442695
        %v4772 = vpow.pop %v4771
        %v4773 = vmul.f32 %v4748, 1.442695
        %v4774 = vpow.pop %v4773
        %v4775 = vmul.f32 %v4749, 1.442695
        %v4776 = vpow.pop %v4775
        %v4777 = vmul.f32 %v4750, 1.442695
        %v4778 = vpow.pop %v4777
        %v4779 = vmul.f32 %v4751, 1.442695
        %v4780 = vpow.pop %v4779
        %v4781 = vmul.f32 %v4752, 1.442695
        %v4782 = vpow.pop %v4781
        %v4783 = vmul.f32 %v4753, 1.442695
        %v4784 = vpow.pop %v4783
        %v4785 = vmul.f32 %v4754, 1.442695
        %v4786 = vpow.pop %v4785
        %v4787 = vmul.f32 %v4755, 1.442695
        %v4788 = vpow.pop %v4787
        %v4789 = vmul.f32 %v4756, 1.442695
        %v4790 = vpow.pop %v4789
        %v4791 = vmul.f32 %v4757, 1.442695
        %v4792 = vpow.pop %v4791
        %v4793 = vmul.f32 %v4758, 1.442695
        %v4794 = vpow.pop %v4793
        %v4795 = vmul.f32 %v4759, 1.442695
        %v4796 = vpow.pop %v4795
        %v4797 = vmul.f32 %v4760, 1.442695
        %v4798 = vpow.pop %v4797
        %v4799 = vmul.f32 %v4761, 1.442695
        %v4800 = vpow.pop %v4799
        %v4801 = vmul.f32 %v4762, 1.442695
        %v4802 = vpow.pop %v4801
        %v4803 = vmul.f32 %v4763, 1.442695
        %v4804 = vpow.pop %v4803
        %v4805 = vmul.f32 %v4764, 1.442695
        %v4806 = vpow.pop %v4805
        %v4807 = vmul.f32 %v4765, 1.442695
        %v4808 = vpow.pop %v4807
        %v4809 = vmul.f32 %v4766, 1.442695
        %v4810 = vpow.pop %v4809
        %v4811 = vmul.f32 %v4767, 1.442695
        %v4812 = vpow.pop %v4811
        %v4813 = vmul.f32 %v4768, 1.442695
        %v4814 = vpow.pop %v4813
        %v4815 = vmul.f32 %v4769, 1.442695
        %v4816 = vpow.pop %v4815
        %v4817 = vmul.f32 %v4770, 1.442695
        %v4818 = vpow.pop %v4817
        %v4819 = vmul.f32 %v4699, %v4772
        %v4820 = vmul.f32 %v4700, %v4774
        %v4821 = vmul.f32 %v4701, %v4776
        %v4822 = vmul.f32 %v4702, %v4778
        %v4823 = vmul.f32 %v4703, %v4780
        %v4824 = vmul.f32 %v4704, %v4782
        %v4825 = vmul.f32 %v4705, %v4784
        %v4826 = vmul.f32 %v4706, %v4786
        %v4827 = vmul.f32 %v4707, %v4788
        %v4828 = vmul.f32 %v4708, %v4790
        %v4829 = vmul.f32 %v4709, %v4792
        %v4830 = vmul.f32 %v4710, %v4794
        %v4831 = vmul.f32 %v4711, %v4796
        %v4832 = vmul.f32 %v4712, %v4798
        %v4833 = vmul.f32 %v4713, %v4800
        %v4834 = vmul.f32 %v4714, %v4802
        %v4835 = vmul.f32 %v4715, %v4804
        %v4836 = vmul.f32 %v4716, %v4806
        %v4837 = vmul.f32 %v4717, %v4808
        %v4838 = vmul.f32 %v4718, %v4810
        %v4839 = vmul.f32 %v4719, %v4812
        %v4840 = vmul.f32 %v4720, %v4814
        %v4841 = vmul.f32 %v4721, %v4816
        %v4842 = vmul.f32 %v4722, %v4818
        %v4843 = vsub.f32 1.0, %v4819
        %v4844 = vsub.f32 1.0, %v4820
        %v4845 = vsub.f32 1.0, %v4821
        %v4846 = vsub.f32 1.0, %v4822
        %v4847 = vsub.f32 1.0, %v4823
        %v4848 = vsub.f32 1.0, %v4824
        %v4849 = vsub.f32 1.0, %v4825
        %v4850 = vsub.f32 1.0, %v4826
        %v4851 = vsub.f32 1.0, %v4827
        %v4852 = vsub.f32 1.0, %v4828
        %v4853 = vsub.f32 1.0, %v4829
        %v4854 = vsub.f32 1.0, %v4830
        %v4855 = vsub.f32 1.0, %v4831
        %v4856 = vsub.f32 1.0, %v4832
        %v4857 = vsub.f32 1.0, %v4833
        %v4858 = vsub.f32 1.0, %v4834
        %v4859 = vsub.f32 1.0, %v4835
        %v4860 = vsub.f32 1.0, %v4836
        %v4861 = vsub.f32 1.0, %v4837
        %v4862 = vsub.f32 1.0, %v4838
        %v4863 = vsub.f32 1.0, %v4839
        %v4864 = vsub.f32 1.0, %v4840
        %v4865 = vsub.f32 1.0, %v4841
        %v4866 = vsub.f32 1.0, %v4842
        %vm4867 = vcmp.lt.f32.partialorder %v4363, 0.0
        %vm4868 = vcmp.lt.f32.partialorder %v4364, 0.0
        %vm4869 = vcmp.lt.f32.partialorder %v4365, 0.0
        %vm4870 = vcmp.lt.f32.partialorder %v4366, 0.0
        %vm4871 = vcmp.lt.f32.partialorder %v4367, 0.0
        %vm4872 = vcmp.lt.f32.partialorder %v4368, 0.0
        %vm4873 = vcmp.lt.f32.partialorder %v4369, 0.0
        %vm4874 = vcmp.lt.f32.partialorder %v4370, 0.0
        %vm4875 = vcmp.lt.f32.partialorder %v4371, 0.0
        %vm4876 = vcmp.lt.f32.partialorder %v4372, 0.0
        %vm4877 = vcmp.lt.f32.partialorder %v4373, 0.0
        %vm4878 = vcmp.lt.f32.partialorder %v4374, 0.0
        %vm4879 = vcmp.lt.f32.partialorder %v4375, 0.0
        %vm4880 = vcmp.lt.f32.partialorder %v4376, 0.0
        %vm4881 = vcmp.lt.f32.partialorder %v4377, 0.0
        %vm4882 = vcmp.lt.f32.partialorder %v4378, 0.0
        %vm4883 = vcmp.lt.f32.partialorder %v4379, 0.0
        %vm4884 = vcmp.lt.f32.partialorder %v4380, 0.0
        %vm4885 = vcmp.lt.f32.partialorder %v4381, 0.0
        %vm4886 = vcmp.lt.f32.partialorder %v4382, 0.0
        %vm4887 = vcmp.lt.f32.partialorder %v4383, 0.0
        %vm4888 = vcmp.lt.f32.partialorder %v4384, 0.0
        %vm4889 = vcmp.lt.f32.partialorder %v4385, 0.0
        %vm4890 = vcmp.lt.f32.partialorder %v4386, 0.0
        %v4891 = vsub.f32 0.0, %v4843
        %v4892 = vsub.f32 0.0, %v4844
        %v4893 = vsub.f32 0.0, %v4845
        %v4894 = vsub.f32 0.0, %v4846
        %v4895 = vsub.f32 0.0, %v4847
        %v4896 = vsub.f32 0.0, %v4848
        %v4897 = vsub.f32 0.0, %v4849
        %v4898 = vsub.f32 0.0, %v4850
        %v4899 = vsub.f32 0.0, %v4851
        %v4900 = vsub.f32 0.0, %v4852
        %v4901 = vsub.f32 0.0, %v4853
        %v4902 = vsub.f32 0.0, %v4854
        %v4903 = vsub.f32 0.0, %v4855
        %v4904 = vsub.f32 0.0, %v4856
        %v4905 = vsub.f32 0.0, %v4857
        %v4906 = vsub.f32 0.0, %v4858
        %v4907 = vsub.f32 0.0, %v4859
        %v4908 = vsub.f32 0.0, %v4860
        %v4909 = vsub.f32 0.0, %v4861
        %v4910 = vsub.f32 0.0, %v4862
        %v4911 = vsub.f32 0.0, %v4863
        %v4912 = vsub.f32 0.0, %v4864
        %v4913 = vsub.f32 0.0, %v4865
        %v4914 = vsub.f32 0.0, %v4866
        %v4915 = vsel %vm4867, %v4891, %v4843
        %v4916 = vsel %vm4868, %v4892, %v4844
        %v4917 = vsel %vm4869, %v4893, %v4845
        %v4918 = vsel %vm4870, %v4894, %v4846
        %v4919 = vsel %vm4871, %v4895, %v4847
        %v4920 = vsel %vm4872, %v4896, %v4848
        %v4921 = vsel %vm4873, %v4897, %v4849
        %v4922 = vsel %vm4874, %v4898, %v4850
        %v4923 = vsel %vm4875, %v4899, %v4851
        %v4924 = vsel %vm4876, %v4900, %v4852
        %v4925 = vsel %vm4877, %v4901, %v4853
        %v4926 = vsel %vm4878, %v4902, %v4854
        %v4927 = vsel %vm4879, %v4903, %v4855
        %v4928 = vsel %vm4880, %v4904, %v4856
        %v4929 = vsel %vm4881, %v4905, %v4857
        %v4930 = vsel %vm4882, %v4906, %v4858
        %v4931 = vsel %vm4883, %v4907, %v4859
        %v4932 = vsel %vm4884, %v4908, %v4860
        %v4933 = vsel %vm4885, %v4909, %v4861
        %v4934 = vsel %vm4886, %v4910, %v4862
        %v4935 = vsel %vm4887, %v4911, %v4863
        %v4936 = vsel %vm4888, %v4912, %v4864
        %v4937 = vsel %vm4889, %v4913, %v4865
        %v4938 = vsel %vm4890, %v4914, %v4866
        %v4939 = vadd.f32 %v4915, 1.0
        %v4940 = vadd.f32 %v4916, 1.0
        %v4941 = vadd.f32 %v4917, 1.0
        %v4942 = vadd.f32 %v4918, 1.0
        %v4943 = vadd.f32 %v4919, 1.0
        %v4944 = vadd.f32 %v4920, 1.0
        %v4945 = vadd.f32 %v4921, 1.0
        %v4946 = vadd.f32 %v4922, 1.0
        %v4947 = vadd.f32 %v4923, 1.0
        %v4948 = vadd.f32 %v4924, 1.0
        %v4949 = vadd.f32 %v4925, 1.0
        %v4950 = vadd.f32 %v4926, 1.0
        %v4951 = vadd.f32 %v4927, 1.0
        %v4952 = vadd.f32 %v4928, 1.0
        %v4953 = vadd.f32 %v4929, 1.0
        %v4954 = vadd.f32 %v4930, 1.0
        %v4955 = vadd.f32 %v4931, 1.0
        %v4956 = vadd.f32 %v4932, 1.0
        %v4957 = vadd.f32 %v4933, 1.0
        %v4958 = vadd.f32 %v4934, 1.0
        %v4959 = vadd.f32 %v4935, 1.0
        %v4960 = vadd.f32 %v4936, 1.0
        %v4961 = vadd.f32 %v4937, 1.0
        %v4962 = vadd.f32 %v4938, 1.0
        %v4963 = vmul.f32 %v4339, %v4939
        %v4964 = vmul.f32 %v4340, %v4940
        %v4965 = vmul.f32 %v4341, %v4941
        %v4966 = vmul.f32 %v4342, %v4942
        %v4967 = vmul.f32 %v4343, %v4943
        %v4968 = vmul.f32 %v4344, %v4944
        %v4969 = vmul.f32 %v4345, %v4945
        %v4970 = vmul.f32 %v4346, %v4946
        %v4971 = vmul.f32 %v4347, %v4947
        %v4972 = vmul.f32 %v4348, %v4948
        %v4973 = vmul.f32 %v4349, %v4949
        %v4974 = vmul.f32 %v4350, %v4950
        %v4975 = vmul.f32 %v4351, %v4951
        %v4976 = vmul.f32 %v4352, %v4952
        %v4977 = vmul.f32 %v4353, %v4953
        %v4978 = vmul.f32 %v4354, %v4954
        %v4979 = vmul.f32 %v4355, %v4955
        %v4980 = vmul.f32 %v4356, %v4956
        %v4981 = vmul.f32 %v4357, %v4957
        %v4982 = vmul.f32 %v4358, %v4958
        %v4983 = vmul.f32 %v4359, %v4959
        %v4984 = vmul.f32 %v4360, %v4960
        %v4985 = vmul.f32 %v4361, %v4961
        %v4986 = vmul.f32 %v4362, %v4962
        %v4988 = vsel %vm2569, %v386, 0
        %4990 = vmatprep.subr.mxu0 0.0
        %4991 = vmatpush1.msra.mxu0 0.0
        %4992 = vmatprep.subr.mxu0 0.0
        %4993 = vmatpush1.msra.mxu0 0.0
        %4994 = vmatprep.subr.mxu0 0.0
        %4995 = vmatpush1.msra.mxu0 0.0
        %4996 = vmatprep.subr.mxu0 0.0
        %4997 = vmatpush1.msra.mxu0 0.0
        %4998 = vmatprep.subr.mxu0 0.0
        %4999 = vmatpush1.msra.mxu0 0.0
        %5000 = vmatprep.subr.mxu0 0.0
        %5001 = vmatpush1.msra.mxu0 0.0
        %5002 = vmatprep.subr.mxu0 0.0
        %5003 = vmatpush1.msra.mxu0 0.0
        %5004 = vmatprep.subr.mxu0 0.0
        %5005 = vmatpush1.msra.mxu0 0.0
        %5006 = vmatprep.subr.mxu0 %v4985
        %5007 = vmatpush1.msra.mxu0 %v4984
        %5008 = vmatprep.subr.mxu0 %v4982
        %5009 = vmatpush1.msra.mxu0 %v4981
        %5010 = vmatprep.subr.mxu0 %v4979
        %5011 = vmatpush1.msra.mxu0 %v4978
        %5012 = vmatprep.subr.mxu0 %v4976
        %5013 = vmatpush1.msra.mxu0 %v4975
        %5014 = vmatprep.subr.mxu0 %v4973
        %5015 = vmatpush1.msra.mxu0 %v4972
        %5016 = vmatprep.subr.mxu0 %v4970
        %5017 = vmatpush1.msra.mxu0 %v4969
        %5018 = vmatprep.subr.mxu0 %v4967
        %5019 = vmatpush1.msra.mxu0 %v4966
        %5020 = vmatprep.subr.mxu0 %v4964
        %5021 = vmatpush1.msra.mxu0 %v4963
        %5022 = vmatprep.subr.mxu0 0.0
        %5023 = vmatpush2.msra.mxu0 0.0
        %5024 = vmatprep.subr.mxu0 0.0
        %5025 = vmatpush2.msra.mxu0 0.0
        %5026 = vmatprep.subr.mxu0 0.0
        %5027 = vmatpush2.msra.mxu0 0.0
        %5028 = vmatprep.subr.mxu0 0.0
        %5029 = vmatpush2.msra.mxu0 0.0
        %5030 = vmatprep.subr.mxu0 0.0
        %5031 = vmatpush2.msra.mxu0 0.0
        %5032 = vmatprep.subr.mxu0 0.0
        %5033 = vmatpush2.msra.mxu0 0.0
        %5034 = vmatprep.subr.mxu0 0.0
        %5035 = vmatpush2.msra.mxu0 0.0
        %5036 = vmatprep.subr.mxu0 0.0
        %5037 = vmatpush2.msra.mxu0 0.0
        %5038 = vmatprep.subr.mxu0 0.0
        %5039 = vmatpush2.msra.mxu0 0.0
        %5040 = vmatprep.subr.mxu0 0.0
        %5041 = vmatpush2.msra.mxu0 0.0
        %5042 = vmatprep.subr.mxu0 0.0
        %5043 = vmatpush2.msra.mxu0 0.0
        %5044 = vmatprep.subr.mxu0 0.0
        %5045 = vmatpush2.msra.mxu0 0.0
        %5046 = vmatprep.subr.mxu0 0.0
        %5047 = vmatpush2.msra.mxu0 0.0
        %5048 = vmatprep.subr.mxu0 0.0
        %5049 = vmatpush2.msra.mxu0 0.0
        %5050 = vmatprep.subr.mxu0 0.0
        %5051 = vmatpush2.msra.mxu0 0.0
        %5052 = vmatprep.subr.mxu0 0.0
        %5053 = vmatpush2.msra.mxu0 0.0
        %5054 = vmatprep.mubr.f32.mxu0 0.0
        %5055 = vmatmul.mubr.f32.gmra.mxu0 %v4988
        %v5056 = vpop.f32.mrf.mxu0
        %v5057 = vadd.f32 %v879, %v5056
        %v5058 = vpop.f32.mrf.mxu0
        %v5059 = vadd.f32 %v879, %v5058
        %5060 = vdwg.mxu0
        %5061 = vmatprep.subr.mxu0 0.0
        %5062 = vmatpush1.msra.mxu0 0.0
        %5063 = vmatprep.subr.mxu0 0.0
        %5064 = vmatpush1.msra.mxu0 0.0
        %5065 = vmatprep.subr.mxu0 0.0
        %5066 = vmatpush1.msra.mxu0 0.0
        %5067 = vmatprep.subr.mxu0 0.0
        %5068 = vmatpush1.msra.mxu0 0.0
        %5069 = vmatprep.subr.mxu0 0.0
        %5070 = vmatpush1.msra.mxu0 0.0
        %5071 = vmatprep.subr.mxu0 0.0
        %5072 = vmatpush1.msra.mxu0 0.0
        %5073 = vmatprep.subr.mxu0 0.0
        %5074 = vmatpush1.msra.mxu0 0.0
        %5075 = vmatprep.subr.mxu0 0.0
        %5076 = vmatpush1.msra.mxu0 0.0
        %5077 = vmatprep.subr.mxu0 0.0
        %5078 = vmatpush1.msra.mxu0 %v4986
        %5079 = vmatprep.subr.mxu0 0.0
        %5080 = vmatpush1.msra.mxu0 %v4983
        %5081 = vmatprep.subr.mxu0 0.0
        %5082 = vmatpush1.msra.mxu0 %v4980
        %5083 = vmatprep.subr.mxu0 0.0
        %5084 = vmatpush1.msra.mxu0 %v4977
        %5085 = vmatprep.subr.mxu0 0.0
        %5086 = vmatpush1.msra.mxu0 %v4974
        %5087 = vmatprep.subr.mxu0 0.0
        %5088 = vmatpush1.msra.mxu0 %v4971
        %5089 = vmatprep.subr.mxu0 0.0
        %5090 = vmatpush1.msra.mxu0 %v4968
        %5091 = vmatprep.subr.mxu0 0.0
        %5092 = vmatpush1.msra.mxu0 %v4965
        %5093 = vmatprep.subr.mxu0 0.0
        %5094 = vmatpush2.msra.mxu0 0.0
        %5095 = vmatprep.subr.mxu0 0.0
        %5096 = vmatpush2.msra.mxu0 0.0
        %5097 = vmatprep.subr.mxu0 0.0
        %5098 = vmatpush2.msra.mxu0 0.0
        %5099 = vmatprep.subr.mxu0 0.0
        %5100 = vmatpush2.msra.mxu0 0.0
        %5101 = vmatprep.subr.mxu0 0.0
        %5102 = vmatpush2.msra.mxu0 0.0
        %5103 = vmatprep.subr.mxu0 0.0
        %5104 = vmatpush2.msra.mxu0 0.0
        %5105 = vmatprep.subr.mxu0 0.0
        %5106 = vmatpush2.msra.mxu0 0.0
        %5107 = vmatprep.subr.mxu0 0.0
        %5108 = vmatpush2.msra.mxu0 0.0
        %5109 = vmatprep.subr.mxu0 0.0
        %5110 = vmatpush2.msra.mxu0 0.0
        %5111 = vmatprep.subr.mxu0 0.0
        %5112 = vmatpush2.msra.mxu0 0.0
        %5113 = vmatprep.subr.mxu0 0.0
        %5114 = vmatpush2.msra.mxu0 0.0
        %5115 = vmatprep.subr.mxu0 0.0
        %5116 = vmatpush2.msra.mxu0 0.0
        %5117 = vmatprep.subr.mxu0 0.0
        %5118 = vmatpush2.msra.mxu0 0.0
        %5119 = vmatprep.subr.mxu0 0.0
        %5120 = vmatpush2.msra.mxu0 0.0
        %5121 = vmatprep.subr.mxu0 0.0
        %5122 = vmatpush2.msra.mxu0 0.0
        %5123 = vmatprep.subr.mxu0 0.0
        %5124 = vmatpush2.msra.mxu0 0.0
        %5125 = vmatprep.mubr.f32.mxu0 0.0
        %5126 = vmatmul.mubr.f32.gmra.mxu0 %v4988
        %v5127 = vpop.f32.mrf.mxu0
        %v5128 = vadd.f32 %v879, %v5127
        %v5129 = vpop.f32.mrf.mxu0
        %5130 = vdwg.mxu0
        %5131 = vst [vmem:[%s368] sm:$0xff] %v5057
        %5132 = vst [vmem:[%s368 + $0x8] sm:$0xff] %v5059
        %5133 = vst [vmem:[%s368 + $0x10] sm:$0xff] %v5128
        %s5134 = sand.u32 %s244, 1
        %s5135 = scalar_lea.sflag [#allocation4], %s5134
        %s5136 = sand.u32 %s244, 1
        %s5137 = smul.addr %s5136, 24
        %s5138 = scalar_lea.vmem [#allocation5], %s5137
        // Predicated region
        $region61: #{tpu_custom_call.1} parent=55 // pred_check
          %p5139 = pneg %p254
        $region62: #{tpu_custom_call.1} parent=55 // pred_check_branch
          %5141 = sbr.rel (%p5139) target = $region64
        $region63: #{tpu_custom_call.1} parent=55 // pred_region
          %s5142 = smul.u32 3, %s31
          %s5144 = ssub.s32 384, 384
          %5145 = vsyncadd %s5135, %s5144
          %s5146 = smul.addr %s30, 3
          %s5147 = sadd.s32 %s5142, %s5146
          %s5148 = smul.addr %s5147, 128
          %s5149 = scalar_lea.hbm %s9, %s5148
          %s5151 = sshll.u32 %s5138, 4
          %s5152 = int_to_ptr.vmem [resolvable:$true] %s5151
          %5154 = dma.vmem_to_hbm [thread:$0]  %s5152, 384, %s5149, %s5135
        $region64: #{tpu_custom_call.1} parent=55 // pred_fallthru
          _
      $region56: #{tpu_custom_call.1} parent=5 // pred_fallthru
        _
      %p5155 = scmp.le.s32.totalorder 2, %s21
      // Predicated region
      $region65: #{tpu_custom_call.1} parent=5 // pred_check
        %p5156 = pneg %p5155
      $region66: #{tpu_custom_call.1} parent=5 // pred_check_branch
        %5158 = sbr.rel (%p5156) target = $region68
      $region67: #{tpu_custom_call.1} parent=5 // pred_region
        %s5159 = ssub.s32 %s21, 2
        // Predicated region
        $region69: #{tpu_custom_call.1} parent=67 // pred_check
          %p5160 = pneg %p260
        $region70: #{tpu_custom_call.1} parent=67 // pred_check_branch
          %5162 = sbr.rel (%p5160) target = $region72
        $region71: #{tpu_custom_call.1} parent=67 // pred_region
          %s5163 = sand.u32 %s245, 1
          %s5164 = scalar_lea.sflag [#allocation4], %s5163
          %s5165 = sand.u32 %s245, 1
          %s5166 = smul.addr %s5165, 24
          %s5167 = scalar_lea.vmem [#allocation5], %s5166
          %5168 = dma.done %s5164, 384
        $region72: #{tpu_custom_call.1} parent=67 // pred_fallthru
          _
      $region68: #{tpu_custom_call.1} parent=5 // pred_fallthru
        _
    $region6: #{tpu_custom_call.1} parent=1 // loop_footer
      %s25 = sadd.s32 1, %s21
    $region7: #{tpu_custom_call.1} parent=1 // loop_footer_branch
      %20 = sbr.rel target = $region3
    $region8: #{tpu_custom_call.1} parent=1 // loop_exit
      _
    %5169 = vsyncpa [#allocation3], 1
    %s5170 = scalar_lea.sflag [#allocation3], 1
    %5171 = vsyncpa %s5170, 1
    %5172 = vsyncpa [#allocation4], 1
    %s5173 = scalar_lea.sflag [#allocation4], 1
    %5174 = vsyncpa %s5173, 1

</llo_original>
